<compile_context>
chip_gen: v6e
topology: v6e:2x2x1
jax: 0.10.0
libtpu: 0.0.40
codegen_flags: <defaults>
</compile_context>

<pallas_src>
import jax
import jax.numpy as jnp
import numpy as np
from jax import lax
from jax.experimental import pallas as pl
from jax.experimental.pallas import tpu as pltpu


N_MODAL = 3


def _vmem_spec():
    return pl.BlockSpec(memory_space=pltpu.MemorySpace.VMEM)


# ------------------------------- fused kernel ---------------------------------
def fused_kernel(inv_len_ref, seq_ref, wih_ref, whh_ref, gb_ref, bhhn_ref,
                 fcw_ref, fcb_ref, clfw_ref, clfb_ref, out_ref):
    f32 = jnp.float32
    GP = whh_ref.shape[1]               # padded packed hidden width (128)
    Nb = seq_ref.shape[1]               # batch / utterance count
    Fd = fcb_ref.shape[1] // N_MODAL    # fc_dim

    # --- temporal mean pooling: multiply by precomputed 1/length ---------------
    x = jnp.sum(seq_ref[...], axis=0) * inv_len_ref[...]          # (N, Dtot) f32
    xb = x.astype(jnp.bfloat16)

    # --- packed input projections for both directions (off the serial path) ----
    # bih (all gates) + bhh (r,z) are already folded into gb.
    xp_f = jnp.dot(xb, wih_ref[0], preferred_element_type=f32) + gb_ref[0]
    xp_b = jnp.dot(xb, wih_ref[1], preferred_element_type=f32) + gb_ref[1]

    def gate_split(a):                  # vreg-aligned slices (0 / GP / 2*GP)
        return a[:, 0:GP], a[:, GP:2 * GP], a[:, 2 * GP:3 * GP]

    xrf, xzf, xnf = gate_split(xp_f)
    xrb, xzb, xnb = gate_split(xp_b)
    bnf = bhhn_ref[0]                   # (1, GP)   n-gate hidden bias, fwd
    bnb = bhhn_ref[1]

    def cell(h, d, xr, xz, xn, bn):
        # One block-diagonal dot covers all 3 modalities x 3 gates.
        hp = jnp.dot(h.astype(jnp.bfloat16), whh_ref[d],
                     preferred_element_type=f32)                  # (1, 3*GP)
        hr, hz, hn = gate_split(hp)
        r = jax.nn.sigmoid(xr + hr)
        z = jax.nn.sigmoid(xz + hz)
        n = jnp.tanh(xn + r * (hn + bn))
        return (1.0 - z) * n + z * h

    # --- interleaved fwd/bwd recurrences, fully unrolled (Nb static & small) ----
    h_f = jnp.zeros((1, GP), f32)
    h_b = jnp.zeros((1, GP), f32)
    hs_f = [None] * Nb
    hs_b = [None] * Nb
    for t in range(Nb):
        tb = Nb - 1 - t
        h_f = cell(h_f, 0, xrf[t:t + 1], xzf[t:t + 1], xnf[t:t + 1], bnf)
        h_b = cell(h_b, 1, xrb[tb:tb + 1], xzb[tb:tb + 1], xnb[tb:tb + 1], bnb)
        hs_f[t] = h_f
        hs_b[tb] = h_b

    hsF = jnp.concatenate(hs_f, axis=0)            # (N, GP)
    hsB = jnp.concatenate(hs_b, axis=0)            # (N, GP)

    # --- packed FC + ReLU (f32) -------------------------------------------------
    m_all = jnp.maximum(
        jnp.dot(hsF, fcw_ref[0], preferred_element_type=f32)
        + jnp.dot(hsB, fcw_ref[1], preferred_element_type=f32)
        + fcb_ref[...], 0.0)                       # (N, 3*Fd)
    # TODO(synk): F.dropout(fc_dropout) is stochastic; identity here (eval mode).

    mt = m_all[:, 0:Fd]
    ma = m_all[:, Fd:2 * Fd]
    mv = m_all[:, 2 * Fd:3 * Fd]

    # --- bi-modal attention (f32) ----------------------------------------------
    def softmax_rows(s):
        e = jnp.exp(s - jnp.max(s, axis=1, keepdims=True))
        return e * pl.reciprocal(jnp.sum(e, axis=1, keepdims=True), approx=True)

    def attn_pair(m1, m2):
        dn = (((1,), (1,)), ((), ()))              # contract feature axis
        M1 = lax.dot_general(m1, m2, dn, preferred_element_type=f32)
        M2 = lax.dot_general(m2, m1, dn, preferred_element_type=f32)
        O1 = jnp.dot(softmax_rows(M1), m2, preferred_element_type=f32)
        O2 = jnp.dot(softmax_rows(M2), m1, preferred_element_type=f32)
        return O1 * m1, O2 * m2

    pieces = []
    for (m1, m2) in ((mt, ma), (ma, mv), (mv, mt)):    # (t,a), (a,v), (v,t)
        a1, a2 = attn_pair(m1, m2)
        pieces += [a1, a2]
    pieces += [mt, ma, mv]

    # --- classifier: single K = 9*Fd contraction ---------------------------------
    concat = jnp.concatenate(pieces, axis=1)           # (N, 9*Fd)
    out_ref[...] = (jnp.dot(concat, clfw_ref[...], preferred_element_type=f32)
                    + clfb_ref[...])


# ------------------------------ forward wrapper --------------------------------
def mmmu_ba_forward(sequences, lengths, prep, modal):
    seq_all = jnp.concatenate([sequences[m] for m in modal], axis=2)  # (T,N,Dtot)
    N = seq_all.shape[1]
    inv_len = (1.0 / lengths.astype(jnp.float32)).reshape(N, 1)
    out_dim = prep["clf_b"].shape[1]

    inputs = [inv_len, seq_all,
              prep["wihT"], prep["whhT"], prep["gate_bias"], prep["bhh_n"],
              prep["fcwT"], prep["fcb"], prep["clf_wT"], prep["clf_b"]]

    return pl.pallas_call(
        fused_kernel,
        out_shape=jax.ShapeDtypeStruct((N, out_dim), jnp.float32),
        in_specs=[_vmem_spec()] * len(inputs),
        out_specs=_vmem_spec(),
    )(*inputs)


# ------------------------ one-time parameter preparation ------------------------
def prepare_params(params, modal):
    """Pack all per-modality GRU/FC weights into block-diagonal, gate-aligned
    buffers (done once, outside the forward path)."""
    n_modal = len(modal)
    H = int(params[modal[0]]["whh_f"].shape[1])
    assert all(int(params[m]["whh_f"].shape[1]) == H for m in modal), \
        "block-diagonal packing requires equal hidden dims"
    Ds = [int(params[m]["wih_f"].shape[1]) for m in modal]
    Dtot = sum(Ds)
    Fd = int(params[modal[0]]["fc_w"].shape[0])
    GP = ((n_modal * H + 127) // 128) * 128            # gate block width (lanes)

    wih = np.zeros((2, Dtot, 3 * GP), np.float32)      # [dir, Dtot, gate*GP]
    whh = np.zeros((2, GP, 3 * GP), np.float32)        # block-diag hidden weights
    gb = np.zeros((2, 1, 3 * GP), np.float32)          # bih(all) + bhh(r,z)
    bnn = np.zeros((2, 1, GP), np.float32)             # bhh(n) only
    fcw = np.zeros((2, GP, n_modal * Fd), np.float32)  # [fwd-half, bwd-half]
    fcb = np.zeros((1, n_modal * Fd), np.float32)

    doff = 0
    for mi, m in enumerate(modal):
        p = {k: np.asarray(v) for k, v in params[m].items()}
        D = Ds[mi]
        hoff = mi * H
        for di, suf in enumerate(("_f", "_b")):
            wih_m, whh_m = p["wih" + suf], p["whh" + suf]
            bih_m, bhh_m = p["bih" + suf], p["bhh" + suf]
            for g in range(3):                         # gate order: r, z, n
                cs = g * GP + hoff
                wih[di, doff:doff + D, cs:cs + H] = wih_m[g * H:(g + 1) * H, :].T
                whh[di, hoff:hoff + H, cs:cs + H] = whh_m[g * H:(g + 1) * H, :].T
                if g < 2:       # r,z: both biases fold into the input projection
                    gb[di, 0, cs:cs + H] = (bih_m[g * H:(g + 1) * H]
                                            + bhh_m[g * H:(g + 1) * H])
                else:           # n: only bih folds; bhh_n applied inside r*(...)
                    gb[di, 0, cs:cs + H] = bih_m[2 * H:3 * H]
            bnn[di, 0, hoff:hoff + H] = bhh_m[2 * H:3 * H]
        fc_w = p["fc_w"]                               # (Fd, 2H)
        fcw[0, hoff:hoff + H, mi * Fd:(mi + 1) * Fd] = fc_w[:, :H].T
        fcw[1, hoff:hoff + H, mi * Fd:(mi + 1) * Fd] = fc_w[:, H:].T
        fcb[0, mi * Fd:(mi + 1) * Fd] = p["fc_b"]
        doff += D

    return {
        "wihT": jnp.asarray(wih, jnp.bfloat16),
        "whhT": jnp.asarray(whh, jnp.bfloat16),
        "gate_bias": jnp.asarray(gb, jnp.float32),
        "bhh_n": jnp.asarray(bnn, jnp.float32),
        "fcwT": jnp.asarray(fcw, jnp.float32),
        "fcb": jnp.asarray(fcb, jnp.float32),
        "clf_wT": jnp.asarray(np.asarray(params["clf_w"]).T, jnp.float32),
        "clf_b": jnp.asarray(np.asarray(params["clf_b"]).reshape(1, -1), jnp.float32),
    }


# ---------------------------- parameter creation --------------------------------
def init_params(key, modal, input_dims, hidden_dims, fc_dim, output_dim):
    def uni(k, shape, scale):
        return jax.random.uniform(k, shape, jnp.float32, -scale, scale)

    params = {}
    for idx, m in enumerate(modal):
        D, H = input_dims[m], hidden_dims[m]
        sc = 1.0 / np.sqrt(H)
        sf = 1.0 / np.sqrt(2 * H)
        ks = jax.random.split(jax.random.fold_in(key, idx), 10)
        params[m] = {
            "wih_f": uni(ks[0], (3 * H, D), sc), "whh_f": uni(ks[1], (3 * H, H), sc),
            "bih_f": uni(ks[2], (3 * H,), sc),   "bhh_f": uni(ks[3], (3 * H,), sc),
            "wih_b": uni(ks[4], (3 * H, D), sc), "whh_b": uni(ks[5], (3 * H, H), sc),
            "bih_b": uni(ks[6], (3 * H,), sc),   "bhh_b": uni(ks[7], (3 * H,), sc),
            "fc_w": uni(ks[8], (fc_dim, 2 * H), sf),
            "fc_b": uni(ks[9], (fc_dim,), sf),
        }
    kc = jax.random.split(jax.random.fold_in(key, 100), 2)
    sclf = 1.0 / np.sqrt(9 * fc_dim)
    params["clf_w"] = uni(kc[0], (output_dim, 9 * fc_dim), sclf)
    params["clf_b"] = uni(kc[1], (output_dim,), sclf)
    return params


# ------------------------------ pure-JAX reference -------------------------------
def ref_forward(sequences, lengths, params, modal):
    def gru_dir(x, wih, whh, bih, bhh, reverse):
        H = whh.shape[1]
        xs = x[::-1] if reverse else x

        def step(h, x_t):
            xp = x_t @ wih.T + bih
            hp = h @ whh.T + bhh
            r = jax.nn.sigmoid(xp[0:H] + hp[0:H])
            z = jax.nn.sigmoid(xp[H:2 * H] + hp[H:2 * H])
            n = jnp.tanh(xp[2 * H:] + r * hp[2 * H:])
            h_new = (1.0 - z) * n + z * h
            return h_new, h_new

        _, hs = lax.scan(step, jnp.zeros((H,), jnp.float32), xs)
        return hs[::-1] if reverse else hs

    all_m = {}
    for m in modal:
        pooled = jnp.sum(sequences[m], axis=0) / lengths.astype(jnp.float32)[:, None]
        p = params[m]
        hf = gru_dir(pooled, p["wih_f"], p["whh_f"], p["bih_f"], p["bhh_f"], False)
        hb = gru_dir(pooled, p["wih_b"], p["whh_b"], p["bih_b"], p["bhh_b"], True)
        hs = jnp.concatenate([hf, hb], axis=1)
        all_m[m] = jax.nn.relu(hs @ p["fc_w"].T + p["fc_b"])

    def attn(m1, m2):
        N1 = jax.nn.softmax(m1 @ m2.T, axis=1)
        N2 = jax.nn.softmax(m2 @ m1.T, axis=1)
        return jnp.concatenate([(N1 @ m2) * m1, (N2 @ m1) * m2], axis=1)

    pairs = list(zip(modal, tuple(modal[1:]) + tuple(modal[:1])))
    all_mm = [attn(all_m[a], all_m[b]) for a, b in pairs]
    concat = jnp.concatenate(all_mm + [all_m[m] for m in modal], axis=1)
    return concat @ params["clf_w"].T + params["clf_b"]


if __name__ == "__main__":
    modal = ("t", "a", "v")
    input_dims = {"t": 32, "a": 24, "v": 16}
    hidden_dims = {"t": 32, "a": 32, "v": 32}
    fc_dim, output_dim = 32, 4
    T, N = 10, 8

    key = jax.random.PRNGKey(0)
    params = init_params(key, modal, input_dims, hidden_dims, fc_dim, output_dim)
    prep = prepare_params(params, modal)

    dkeys = jax.random.split(jax.random.fold_in(key, 777), len(modal))
    sequences = {m: jax.random.normal(dkeys[i], (T, N, input_dims[m]), jnp.float32)
                 for i, m in enumerate(modal)}
    lengths = jnp.array([10, 7, 5, 10, 3, 8, 6, 9], dtype=jnp.int32)

    fwd = jax.jit(mmmu_ba_forward, static_argnames=("modal",))
    out = fwd(sequences, lengths, prep, modal=modal)
    out = jax.block_until_ready(out)

    ref = ref_forward(sequences, lengths, params, modal)
    np.testing.assert_allclose(np.asarray(out), np.asarray(ref), rtol=5e-2, atol=5e-2)
    print("KERNEL_OK")
</pallas_src>

<mosaic_0001>
module attributes {stable_mosaic.version = 11 : i64} {
  func.func @fused_kernel(%arg0: memref<8x1xf32, #tpu.memory_space<vmem>>, %arg1: memref<10x8x72xf32, #tpu.memory_space<vmem>>, %arg2: memref<2x72x384xbf16, #tpu.memory_space<vmem>>, %arg3: memref<2x128x384xbf16, #tpu.memory_space<vmem>>, %arg4: memref<2x1x384xf32, #tpu.memory_space<vmem>>, %arg5: memref<2x1x128xf32, #tpu.memory_space<vmem>>, %arg6: memref<2x128x96xf32, #tpu.memory_space<vmem>>, %arg7: memref<1x96xf32, #tpu.memory_space<vmem>>, %arg8: memref<288x4xf32, #tpu.memory_space<vmem>>, %arg9: memref<1x4xf32, #tpu.memory_space<vmem>>, %arg10: memref<8x4xf32, #tpu.memory_space<vmem>>) attributes {dimension_semantics = [], scalar_prefetch = 0 : i64, scratch_operands = 0 : i64, tpu.core_type = #tpu.core_type<tc>} {
    %c0 = arith.constant 0 : index
    %c0_0 = arith.constant 0 : index
    %c0_1 = arith.constant 0 : index
    %0 = vector.load %arg1[%c0, %c0_0, %c0_1] : memref<10x8x72xf32, #tpu.memory_space<vmem>>, vector<10x8x72xf32>
    %cst = arith.constant dense<0.000000e+00> : vector<8x72xf32>
    %1 = vector.multi_reduction <add>, %0, %cst [0] : vector<10x8x72xf32> to vector<8x72xf32>
    %c0_2 = arith.constant 0 : index
    %c0_3 = arith.constant 0 : index
    %2 = vector.load %arg0[%c0_2, %c0_3] : memref<8x1xf32, #tpu.memory_space<vmem>>, vector<8x1xf32>
    %3 = vector.broadcast %2 : vector<8x1xf32> to vector<8x72xf32>
    %4 = arith.mulf %1, %3 : vector<8x72xf32>
    %5 = arith.truncf %4 : vector<8x72xf32> to vector<8x72xbf16>
    %c0_4 = arith.constant 0 : index
    %c0_5 = arith.constant 0 : index
    %c0_6 = arith.constant 0 : index
    %6 = vector.load %arg2[%c0_4, %c0_5, %c0_6] : memref<2x72x384xbf16, #tpu.memory_space<vmem>>, vector<1x72x384xbf16>
    %7 = vector.shape_cast %6 : vector<1x72x384xbf16> to vector<72x384xbf16>
    %cst_7 = arith.constant dense<0.000000e+00> : vector<8x384xf32>
    %8 = tpu.matmul %5, %7, %cst_7 {dimension_numbers = #tpu.dot_dimension_numbers<[1], [0], [0], [1], [0, 0, 1, 1], [], []>} : vector<8x72xbf16>, vector<72x384xbf16>, vector<8x384xf32> -> vector<8x384xf32>
    %c0_8 = arith.constant 0 : index
    %c0_9 = arith.constant 0 : index
    %c0_10 = arith.constant 0 : index
    %9 = vector.load %arg4[%c0_8, %c0_9, %c0_10] : memref<2x1x384xf32, #tpu.memory_space<vmem>>, vector<1x1x384xf32>
    %10 = vector.shape_cast %9 : vector<1x1x384xf32> to vector<1x384xf32>
    %11 = vector.broadcast %10 : vector<1x384xf32> to vector<8x384xf32>
    %12 = arith.addf %8, %11 : vector<8x384xf32>
    %c1 = arith.constant 1 : index
    %c0_11 = arith.constant 0 : index
    %c0_12 = arith.constant 0 : index
    %13 = vector.load %arg2[%c1, %c0_11, %c0_12] : memref<2x72x384xbf16, #tpu.memory_space<vmem>>, vector<1x72x384xbf16>
    %14 = vector.shape_cast %13 : vector<1x72x384xbf16> to vector<72x384xbf16>
    %cst_13 = arith.constant dense<0.000000e+00> : vector<8x384xf32>
    %15 = tpu.matmul %5, %14, %cst_13 {dimension_numbers = #tpu.dot_dimension_numbers<[1], [0], [0], [1], [0, 0, 1, 1], [], []>} : vector<8x72xbf16>, vector<72x384xbf16>, vector<8x384xf32> -> vector<8x384xf32>
    %c1_14 = arith.constant 1 : index
    %c0_15 = arith.constant 0 : index
    %c0_16 = arith.constant 0 : index
    %16 = vector.load %arg4[%c1_14, %c0_15, %c0_16] : memref<2x1x384xf32, #tpu.memory_space<vmem>>, vector<1x1x384xf32>
    %17 = vector.shape_cast %16 : vector<1x1x384xf32> to vector<1x384xf32>
    %18 = vector.broadcast %17 : vector<1x384xf32> to vector<8x384xf32>
    %19 = arith.addf %15, %18 : vector<8x384xf32>
    %20 = vector.extract_strided_slice %12 {offsets = [0, 0], sizes = [8, 128], strides = [1, 1]} : vector<8x384xf32> to vector<8x128xf32>
    %21 = vector.extract_strided_slice %12 {offsets = [0, 128], sizes = [8, 128], strides = [1, 1]} : vector<8x384xf32> to vector<8x128xf32>
    %22 = vector.extract_strided_slice %12 {offsets = [0, 256], sizes = [8, 128], strides = [1, 1]} : vector<8x384xf32> to vector<8x128xf32>
    %23 = vector.extract_strided_slice %19 {offsets = [0, 0], sizes = [8, 128], strides = [1, 1]} : vector<8x384xf32> to vector<8x128xf32>
    %24 = vector.extract_strided_slice %19 {offsets = [0, 128], sizes = [8, 128], strides = [1, 1]} : vector<8x384xf32> to vector<8x128xf32>
    %25 = vector.extract_strided_slice %19 {offsets = [0, 256], sizes = [8, 128], strides = [1, 1]} : vector<8x384xf32> to vector<8x128xf32>
    %c0_17 = arith.constant 0 : index
    %c0_18 = arith.constant 0 : index
    %c0_19 = arith.constant 0 : index
    %26 = vector.load %arg5[%c0_17, %c0_18, %c0_19] : memref<2x1x128xf32, #tpu.memory_space<vmem>>, vector<1x1x128xf32>
    %27 = vector.shape_cast %26 : vector<1x1x128xf32> to vector<1x128xf32>
    %c1_20 = arith.constant 1 : index
    %c0_21 = arith.constant 0 : index
    %c0_22 = arith.constant 0 : index
    %28 = vector.load %arg5[%c1_20, %c0_21, %c0_22] : memref<2x1x128xf32, #tpu.memory_space<vmem>>, vector<1x1x128xf32>
    %29 = vector.shape_cast %28 : vector<1x1x128xf32> to vector<1x128xf32>
    %cst_23 = arith.constant 0.000000e+00 : f32
    %30 = vector.broadcast %cst_23 : f32 to vector<1x128xf32>
    %cst_24 = arith.constant 0.000000e+00 : f32
    %31 = vector.broadcast %cst_24 : f32 to vector<1x128xf32>
    %32 = vector.extract_strided_slice %20 {offsets = [0, 0], sizes = [1, 128], strides = [1, 1]} : vector<8x128xf32> to vector<1x128xf32>
    %33 = vector.extract_strided_slice %21 {offsets = [0, 0], sizes = [1, 128], strides = [1, 1]} : vector<8x128xf32> to vector<1x128xf32>
    %34 = vector.extract_strided_slice %22 {offsets = [0, 0], sizes = [1, 128], strides = [1, 1]} : vector<8x128xf32> to vector<1x128xf32>
    %35 = arith.truncf %30 : vector<1x128xf32> to vector<1x128xbf16>
    %c0_25 = arith.constant 0 : index
    %c0_26 = arith.constant 0 : index
    %c0_27 = arith.constant 0 : index
    %36 = vector.load %arg3[%c0_25, %c0_26, %c0_27] : memref<2x128x384xbf16, #tpu.memory_space<vmem>>, vector<1x128x384xbf16>
    %37 = vector.shape_cast %36 : vector<1x128x384xbf16> to vector<128x384xbf16>
    %cst_28 = arith.constant dense<0.000000e+00> : vector<1x384xf32>
    %38 = tpu.matmul %35, %37, %cst_28 {dimension_numbers = #tpu.dot_dimension_numbers<[1], [0], [0], [1], [0, 0, 1, 1], [], []>} : vector<1x128xbf16>, vector<128x384xbf16>, vector<1x384xf32> -> vector<1x384xf32>
    %39 = vector.extract_strided_slice %38 {offsets = [0, 0], sizes = [1, 128], strides = [1, 1]} : vector<1x384xf32> to vector<1x128xf32>
    %40 = vector.extract_strided_slice %38 {offsets = [0, 128], sizes = [1, 128], strides = [1, 1]} : vector<1x384xf32> to vector<1x128xf32>
    %41 = vector.extract_strided_slice %38 {offsets = [0, 256], sizes = [1, 128], strides = [1, 1]} : vector<1x384xf32> to vector<1x128xf32>
    %42 = arith.addf %32, %39 : vector<1x128xf32>
    %43 = arith.negf %42 : vector<1x128xf32>
    %44 = math.exp %43 : vector<1x128xf32>
    %cst_29 = arith.constant 1.000000e+00 : f32
    %45 = vector.broadcast %cst_29 : f32 to vector<1x128xf32>
    %46 = arith.addf %45, %44 : vector<1x128xf32>
    %47 = arith.divf %45, %46 : vector<1x128xf32>
    %48 = arith.addf %33, %40 : vector<1x128xf32>
    %49 = arith.negf %48 : vector<1x128xf32>
    %50 = math.exp %49 : vector<1x128xf32>
    %cst_30 = arith.constant 1.000000e+00 : f32
    %51 = vector.broadcast %cst_30 : f32 to vector<1x128xf32>
    %52 = arith.addf %51, %50 : vector<1x128xf32>
    %53 = arith.divf %51, %52 : vector<1x128xf32>
    %54 = arith.addf %41, %27 : vector<1x128xf32>
    %55 = arith.mulf %47, %54 : vector<1x128xf32>
    %56 = arith.addf %34, %55 : vector<1x128xf32>
    %57 = math.tanh %56 : vector<1x128xf32>
    %cst_31 = arith.constant 1.000000e+00 : f32
    %58 = vector.broadcast %cst_31 : f32 to vector<1x128xf32>
    %59 = arith.subf %58, %53 : vector<1x128xf32>
    %60 = arith.mulf %59, %57 : vector<1x128xf32>
    %61 = arith.mulf %53, %30 : vector<1x128xf32>
    %62 = arith.addf %60, %61 : vector<1x128xf32>
    %63 = vector.extract_strided_slice %23 {offsets = [7, 0], sizes = [1, 128], strides = [1, 1]} : vector<8x128xf32> to vector<1x128xf32>
    %64 = vector.extract_strided_slice %24 {offsets = [7, 0], sizes = [1, 128], strides = [1, 1]} : vector<8x128xf32> to vector<1x128xf32>
    %65 = vector.extract_strided_slice %25 {offsets = [7, 0], sizes = [1, 128], strides = [1, 1]} : vector<8x128xf32> to vector<1x128xf32>
    %66 = arith.truncf %31 : vector<1x128xf32> to vector<1x128xbf16>
    %c1_32 = arith.constant 1 : index
    %c0_33 = arith.constant 0 : index
    %c0_34 = arith.constant 0 : index
    %67 = vector.load %arg3[%c1_32, %c0_33, %c0_34] : memref<2x128x384xbf16, #tpu.memory_space<vmem>>, vector<1x128x384xbf16>
    %68 = vector.shape_cast %67 : vector<1x128x384xbf16> to vector<128x384xbf16>
    %cst_35 = arith.constant dense<0.000000e+00> : vector<1x384xf32>
    %69 = tpu.matmul %66, %68, %cst_35 {dimension_numbers = #tpu.dot_dimension_numbers<[1], [0], [0], [1], [0, 0, 1, 1], [], []>} : vector<1x128xbf16>, vector<128x384xbf16>, vector<1x384xf32> -> vector<1x384xf32>
    %70 = vector.extract_strided_slice %69 {offsets = [0, 0], sizes = [1, 128], strides = [1, 1]} : vector<1x384xf32> to vector<1x128xf32>
    %71 = vector.extract_strided_slice %69 {offsets = [0, 128], sizes = [1, 128], strides = [1, 1]} : vector<1x384xf32> to vector<1x128xf32>
    %72 = vector.extract_strided_slice %69 {offsets = [0, 256], sizes = [1, 128], strides = [1, 1]} : vector<1x384xf32> to vector<1x128xf32>
    %73 = arith.addf %63, %70 : vector<1x128xf32>
    %74 = arith.negf %73 : vector<1x128xf32>
    %75 = math.exp %74 : vector<1x128xf32>
    %cst_36 = arith.constant 1.000000e+00 : f32
    %76 = vector.broadcast %cst_36 : f32 to vector<1x128xf32>
    %77 = arith.addf %76, %75 : vector<1x128xf32>
    %78 = arith.divf %76, %77 : vector<1x128xf32>
    %79 = arith.addf %64, %71 : vector<1x128xf32>
    %80 = arith.negf %79 : vector<1x128xf32>
    %81 = math.exp %80 : vector<1x128xf32>
    %cst_37 = arith.constant 1.000000e+00 : f32
    %82 = vector.broadcast %cst_37 : f32 to vector<1x128xf32>
    %83 = arith.addf %82, %81 : vector<1x128xf32>
    %84 = arith.divf %82, %83 : vector<1x128xf32>
    %85 = arith.addf %72, %29 : vector<1x128xf32>
    %86 = arith.mulf %78, %85 : vector<1x128xf32>
    %87 = arith.addf %65, %86 : vector<1x128xf32>
    %88 = math.tanh %87 : vector<1x128xf32>
    %cst_38 = arith.constant 1.000000e+00 : f32
    %89 = vector.broadcast %cst_38 : f32 to vector<1x128xf32>
    %90 = arith.subf %89, %84 : vector<1x128xf32>
    %91 = arith.mulf %90, %88 : vector<1x128xf32>
    %92 = arith.mulf %84, %31 : vector<1x128xf32>
    %93 = arith.addf %91, %92 : vector<1x128xf32>
    %94 = vector.extract_strided_slice %20 {offsets = [1, 0], sizes = [1, 128], strides = [1, 1]} : vector<8x128xf32> to vector<1x128xf32>
    %95 = vector.extract_strided_slice %21 {offsets = [1, 0], sizes = [1, 128], strides = [1, 1]} : vector<8x128xf32> to vector<1x128xf32>
    %96 = vector.extract_strided_slice %22 {offsets = [1, 0], sizes = [1, 128], strides = [1, 1]} : vector<8x128xf32> to vector<1x128xf32>
    %97 = arith.truncf %62 : vector<1x128xf32> to vector<1x128xbf16>
    %c0_39 = arith.constant 0 : index
    %c0_40 = arith.constant 0 : index
    %c0_41 = arith.constant 0 : index
    %98 = vector.load %arg3[%c0_39, %c0_40, %c0_41] : memref<2x128x384xbf16, #tpu.memory_space<vmem>>, vector<1x128x384xbf16>
    %99 = vector.shape_cast %98 : vector<1x128x384xbf16> to vector<128x384xbf16>
    %cst_42 = arith.constant dense<0.000000e+00> : vector<1x384xf32>
    %100 = tpu.matmul %97, %99, %cst_42 {dimension_numbers = #tpu.dot_dimension_numbers<[1], [0], [0], [1], [0, 0, 1, 1], [], []>} : vector<1x128xbf16>, vector<128x384xbf16>, vector<1x384xf32> -> vector<1x384xf32>
    %101 = vector.extract_strided_slice %100 {offsets = [0, 0], sizes = [1, 128], strides = [1, 1]} : vector<1x384xf32> to vector<1x128xf32>
    %102 = vector.extract_strided_slice %100 {offsets = [0, 128], sizes = [1, 128], strides = [1, 1]} : vector<1x384xf32> to vector<1x128xf32>
    %103 = vector.extract_strided_slice %100 {offsets = [0, 256], sizes = [1, 128], strides = [1, 1]} : vector<1x384xf32> to vector<1x128xf32>
    %104 = arith.addf %94, %101 : vector<1x128xf32>
    %105 = arith.negf %104 : vector<1x128xf32>
    %106 = math.exp %105 : vector<1x128xf32>
    %cst_43 = arith.constant 1.000000e+00 : f32
    %107 = vector.broadcast %cst_43 : f32 to vector<1x128xf32>
    %108 = arith.addf %107, %106 : vector<1x128xf32>
    %109 = arith.divf %107, %108 : vector<1x128xf32>
    %110 = arith.addf %95, %102 : vector<1x128xf32>
    %111 = arith.negf %110 : vector<1x128xf32>
    %112 = math.exp %111 : vector<1x128xf32>
    %cst_44 = arith.constant 1.000000e+00 : f32
    %113 = vector.broadcast %cst_44 : f32 to vector<1x128xf32>
    %114 = arith.addf %113, %112 : vector<1x128xf32>
    %115 = arith.divf %113, %114 : vector<1x128xf32>
    %116 = arith.addf %103, %27 : vector<1x128xf32>
    %117 = arith.mulf %109, %116 : vector<1x128xf32>
    %118 = arith.addf %96, %117 : vector<1x128xf32>
    %119 = math.tanh %118 : vector<1x128xf32>
    %cst_45 = arith.constant 1.000000e+00 : f32
    %120 = vector.broadcast %cst_45 : f32 to vector<1x128xf32>
    %121 = arith.subf %120, %115 : vector<1x128xf32>
    %122 = arith.mulf %121, %119 : vector<1x128xf32>
    %123 = arith.mulf %115, %62 : vector<1x128xf32>
    %124 = arith.addf %122, %123 : vector<1x128xf32>
    %125 = vector.extract_strided_slice %23 {offsets = [6, 0], sizes = [1, 128], strides = [1, 1]} : vector<8x128xf32> to vector<1x128xf32>
    %126 = vector.extract_strided_slice %24 {offsets = [6, 0], sizes = [1, 128], strides = [1, 1]} : vector<8x128xf32> to vector<1x128xf32>
    %127 = vector.extract_strided_slice %25 {offsets = [6, 0], sizes = [1, 128], strides = [1, 1]} : vector<8x128xf32> to vector<1x128xf32>
    %128 = arith.truncf %93 : vector<1x128xf32> to vector<1x128xbf16>
    %c1_46 = arith.constant 1 : index
    %c0_47 = arith.constant 0 : index
    %c0_48 = arith.constant 0 : index
    %129 = vector.load %arg3[%c1_46, %c0_47, %c0_48] : memref<2x128x384xbf16, #tpu.memory_space<vmem>>, vector<1x128x384xbf16>
    %130 = vector.shape_cast %129 : vector<1x128x384xbf16> to vector<128x384xbf16>
    %cst_49 = arith.constant dense<0.000000e+00> : vector<1x384xf32>
    %131 = tpu.matmul %128, %130, %cst_49 {dimension_numbers = #tpu.dot_dimension_numbers<[1], [0], [0], [1], [0, 0, 1, 1], [], []>} : vector<1x128xbf16>, vector<128x384xbf16>, vector<1x384xf32> -> vector<1x384xf32>
    %132 = vector.extract_strided_slice %131 {offsets = [0, 0], sizes = [1, 128], strides = [1, 1]} : vector<1x384xf32> to vector<1x128xf32>
    %133 = vector.extract_strided_slice %131 {offsets = [0, 128], sizes = [1, 128], strides = [1, 1]} : vector<1x384xf32> to vector<1x128xf32>
    %134 = vector.extract_strided_slice %131 {offsets = [0, 256], sizes = [1, 128], strides = [1, 1]} : vector<1x384xf32> to vector<1x128xf32>
    %135 = arith.addf %125, %132 : vector<1x128xf32>
    %136 = arith.negf %135 : vector<1x128xf32>
    %137 = math.exp %136 : vector<1x128xf32>
    %cst_50 = arith.constant 1.000000e+00 : f32
    %138 = vector.broadcast %cst_50 : f32 to vector<1x128xf32>
    %139 = arith.addf %138, %137 : vector<1x128xf32>
    %140 = arith.divf %138, %139 : vector<1x128xf32>
    %141 = arith.addf %126, %133 : vector<1x128xf32>
    %142 = arith.negf %141 : vector<1x128xf32>
    %143 = math.exp %142 : vector<1x128xf32>
    %cst_51 = arith.constant 1.000000e+00 : f32
    %144 = vector.broadcast %cst_51 : f32 to vector<1x128xf32>
    %145 = arith.addf %144, %143 : vector<1x128xf32>
    %146 = arith.divf %144, %145 : vector<1x128xf32>
    %147 = arith.addf %134, %29 : vector<1x128xf32>
    %148 = arith.mulf %140, %147 : vector<1x128xf32>
    %149 = arith.addf %127, %148 : vector<1x128xf32>
    %150 = math.tanh %149 : vector<1x128xf32>
    %cst_52 = arith.constant 1.000000e+00 : f32
    %151 = vector.broadcast %cst_52 : f32 to vector<1x128xf32>
    %152 = arith.subf %151, %146 : vector<1x128xf32>
    %153 = arith.mulf %152, %150 : vector<1x128xf32>
    %154 = arith.mulf %146, %93 : vector<1x128xf32>
    %155 = arith.addf %153, %154 : vector<1x128xf32>
    %156 = vector.extract_strided_slice %20 {offsets = [2, 0], sizes = [1, 128], strides = [1, 1]} : vector<8x128xf32> to vector<1x128xf32>
    %157 = vector.extract_strided_slice %21 {offsets = [2, 0], sizes = [1, 128], strides = [1, 1]} : vector<8x128xf32> to vector<1x128xf32>
    %158 = vector.extract_strided_slice %22 {offsets = [2, 0], sizes = [1, 128], strides = [1, 1]} : vector<8x128xf32> to vector<1x128xf32>
    %159 = arith.truncf %124 : vector<1x128xf32> to vector<1x128xbf16>
    %c0_53 = arith.constant 0 : index
    %c0_54 = arith.constant 0 : index
    %c0_55 = arith.constant 0 : index
    %160 = vector.load %arg3[%c0_53, %c0_54, %c0_55] : memref<2x128x384xbf16, #tpu.memory_space<vmem>>, vector<1x128x384xbf16>
    %161 = vector.shape_cast %160 : vector<1x128x384xbf16> to vector<128x384xbf16>
    %cst_56 = arith.constant dense<0.000000e+00> : vector<1x384xf32>
    %162 = tpu.matmul %159, %161, %cst_56 {dimension_numbers = #tpu.dot_dimension_numbers<[1], [0], [0], [1], [0, 0, 1, 1], [], []>} : vector<1x128xbf16>, vector<128x384xbf16>, vector<1x384xf32> -> vector<1x384xf32>
    %163 = vector.extract_strided_slice %162 {offsets = [0, 0], sizes = [1, 128], strides = [1, 1]} : vector<1x384xf32> to vector<1x128xf32>
    %164 = vector.extract_strided_slice %162 {offsets = [0, 128], sizes = [1, 128], strides = [1, 1]} : vector<1x384xf32> to vector<1x128xf32>
    %165 = vector.extract_strided_slice %162 {offsets = [0, 256], sizes = [1, 128], strides = [1, 1]} : vector<1x384xf32> to vector<1x128xf32>
    %166 = arith.addf %156, %163 : vector<1x128xf32>
    %167 = arith.negf %166 : vector<1x128xf32>
    %168 = math.exp %167 : vector<1x128xf32>
    %cst_57 = arith.constant 1.000000e+00 : f32
    %169 = vector.broadcast %cst_57 : f32 to vector<1x128xf32>
    %170 = arith.addf %169, %168 : vector<1x128xf32>
    %171 = arith.divf %169, %170 : vector<1x128xf32>
    %172 = arith.addf %157, %164 : vector<1x128xf32>
    %173 = arith.negf %172 : vector<1x128xf32>
    %174 = math.exp %173 : vector<1x128xf32>
    %cst_58 = arith.constant 1.000000e+00 : f32
    %175 = vector.broadcast %cst_58 : f32 to vector<1x128xf32>
    %176 = arith.addf %175, %174 : vector<1x128xf32>
    %177 = arith.divf %175, %176 : vector<1x128xf32>
    %178 = arith.addf %165, %27 : vector<1x128xf32>
    %179 = arith.mulf %171, %178 : vector<1x128xf32>
    %180 = arith.addf %158, %179 : vector<1x128xf32>
    %181 = math.tanh %180 : vector<1x128xf32>
    %cst_59 = arith.constant 1.000000e+00 : f32
    %182 = vector.broadcast %cst_59 : f32 to vector<1x128xf32>
    %183 = arith.subf %182, %177 : vector<1x128xf32>
    %184 = arith.mulf %183, %181 : vector<1x128xf32>
    %185 = arith.mulf %177, %124 : vector<1x128xf32>
    %186 = arith.addf %184, %185 : vector<1x128xf32>
    %187 = vector.extract_strided_slice %23 {offsets = [5, 0], sizes = [1, 128], strides = [1, 1]} : vector<8x128xf32> to vector<1x128xf32>
    %188 = vector.extract_strided_slice %24 {offsets = [5, 0], sizes = [1, 128], strides = [1, 1]} : vector<8x128xf32> to vector<1x128xf32>
    %189 = vector.extract_strided_slice %25 {offsets = [5, 0], sizes = [1, 128], strides = [1, 1]} : vector<8x128xf32> to vector<1x128xf32>
    %190 = arith.truncf %155 : vector<1x128xf32> to vector<1x128xbf16>
    %c1_60 = arith.constant 1 : index
    %c0_61 = arith.constant 0 : index
    %c0_62 = arith.constant 0 : index
    %191 = vector.load %arg3[%c1_60, %c0_61, %c0_62] : memref<2x128x384xbf16, #tpu.memory_space<vmem>>, vector<1x128x384xbf16>
    %192 = vector.shape_cast %191 : vector<1x128x384xbf16> to vector<128x384xbf16>
    %cst_63 = arith.constant dense<0.000000e+00> : vector<1x384xf32>
    %193 = tpu.matmul %190, %192, %cst_63 {dimension_numbers = #tpu.dot_dimension_numbers<[1], [0], [0], [1], [0, 0, 1, 1], [], []>} : vector<1x128xbf16>, vector<128x384xbf16>, vector<1x384xf32> -> vector<1x384xf32>
    %194 = vector.extract_strided_slice %193 {offsets = [0, 0], sizes = [1, 128], strides = [1, 1]} : vector<1x384xf32> to vector<1x128xf32>
    %195 = vector.extract_strided_slice %193 {offsets = [0, 128], sizes = [1, 128], strides = [1, 1]} : vector<1x384xf32> to vector<1x128xf32>
    %196 = vector.extract_strided_slice %193 {offsets = [0, 256], sizes = [1, 128], strides = [1, 1]} : vector<1x384xf32> to vector<1x128xf32>
    %197 = arith.addf %187, %194 : vector<1x128xf32>
    %198 = arith.negf %197 : vector<1x128xf32>
    %199 = math.exp %198 : vector<1x128xf32>
    %cst_64 = arith.constant 1.000000e+00 : f32
    %200 = vector.broadcast %cst_64 : f32 to vector<1x128xf32>
    %201 = arith.addf %200, %199 : vector<1x128xf32>
    %202 = arith.divf %200, %201 : vector<1x128xf32>
    %203 = arith.addf %188, %195 : vector<1x128xf32>
    %204 = arith.negf %203 : vector<1x128xf32>
    %205 = math.exp %204 : vector<1x128xf32>
    %cst_65 = arith.constant 1.000000e+00 : f32
    %206 = vector.broadcast %cst_65 : f32 to vector<1x128xf32>
    %207 = arith.addf %206, %205 : vector<1x128xf32>
    %208 = arith.divf %206, %207 : vector<1x128xf32>
    %209 = arith.addf %196, %29 : vector<1x128xf32>
    %210 = arith.mulf %202, %209 : vector<1x128xf32>
    %211 = arith.addf %189, %210 : vector<1x128xf32>
    %212 = math.tanh %211 : vector<1x128xf32>
    %cst_66 = arith.constant 1.000000e+00 : f32
    %213 = vector.broadcast %cst_66 : f32 to vector<1x128xf32>
    %214 = arith.subf %213, %208 : vector<1x128xf32>
    %215 = arith.mulf %214, %212 : vector<1x128xf32>
    %216 = arith.mulf %208, %155 : vector<1x128xf32>
    %217 = arith.addf %215, %216 : vector<1x128xf32>
    %218 = vector.extract_strided_slice %20 {offsets = [3, 0], sizes = [1, 128], strides = [1, 1]} : vector<8x128xf32> to vector<1x128xf32>
    %219 = vector.extract_strided_slice %21 {offsets = [3, 0], sizes = [1, 128], strides = [1, 1]} : vector<8x128xf32> to vector<1x128xf32>
    %220 = vector.extract_strided_slice %22 {offsets = [3, 0], sizes = [1, 128], strides = [1, 1]} : vector<8x128xf32> to vector<1x128xf32>
    %221 = arith.truncf %186 : vector<1x128xf32> to vector<1x128xbf16>
    %c0_67 = arith.constant 0 : index
    %c0_68 = arith.constant 0 : index
    %c0_69 = arith.constant 0 : index
    %222 = vector.load %arg3[%c0_67, %c0_68, %c0_69] : memref<2x128x384xbf16, #tpu.memory_space<vmem>>, vector<1x128x384xbf16>
    %223 = vector.shape_cast %222 : vector<1x128x384xbf16> to vector<128x384xbf16>
    %cst_70 = arith.constant dense<0.000000e+00> : vector<1x384xf32>
    %224 = tpu.matmul %221, %223, %cst_70 {dimension_numbers = #tpu.dot_dimension_numbers<[1], [0], [0], [1], [0, 0, 1, 1], [], []>} : vector<1x128xbf16>, vector<128x384xbf16>, vector<1x384xf32> -> vector<1x384xf32>
    %225 = vector.extract_strided_slice %224 {offsets = [0, 0], sizes = [1, 128], strides = [1, 1]} : vector<1x384xf32> to vector<1x128xf32>
    %226 = vector.extract_strided_slice %224 {offsets = [0, 128], sizes = [1, 128], strides = [1, 1]} : vector<1x384xf32> to vector<1x128xf32>
    %227 = vector.extract_strided_slice %224 {offsets = [0, 256], sizes = [1, 128], strides = [1, 1]} : vector<1x384xf32> to vector<1x128xf32>
    %228 = arith.addf %218, %225 : vector<1x128xf32>
    %229 = arith.negf %228 : vector<1x128xf32>
    %230 = math.exp %229 : vector<1x128xf32>
    %cst_71 = arith.constant 1.000000e+00 : f32
    %231 = vector.broadcast %cst_71 : f32 to vector<1x128xf32>
    %232 = arith.addf %231, %230 : vector<1x128xf32>
    %233 = arith.divf %231, %232 : vector<1x128xf32>
    %234 = arith.addf %219, %226 : vector<1x128xf32>
    %235 = arith.negf %234 : vector<1x128xf32>
    %236 = math.exp %235 : vector<1x128xf32>
    %cst_72 = arith.constant 1.000000e+00 : f32
    %237 = vector.broadcast %cst_72 : f32 to vector<1x128xf32>
    %238 = arith.addf %237, %236 : vector<1x128xf32>
    %239 = arith.divf %237, %238 : vector<1x128xf32>
    %240 = arith.addf %227, %27 : vector<1x128xf32>
    %241 = arith.mulf %233, %240 : vector<1x128xf32>
    %242 = arith.addf %220, %241 : vector<1x128xf32>
    %243 = math.tanh %242 : vector<1x128xf32>
    %cst_73 = arith.constant 1.000000e+00 : f32
    %244 = vector.broadcast %cst_73 : f32 to vector<1x128xf32>
    %245 = arith.subf %244, %239 : vector<1x128xf32>
    %246 = arith.mulf %245, %243 : vector<1x128xf32>
    %247 = arith.mulf %239, %186 : vector<1x128xf32>
    %248 = arith.addf %246, %247 : vector<1x128xf32>
    %249 = vector.extract_strided_slice %23 {offsets = [4, 0], sizes = [1, 128], strides = [1, 1]} : vector<8x128xf32> to vector<1x128xf32>
    %250 = vector.extract_strided_slice %24 {offsets = [4, 0], sizes = [1, 128], strides = [1, 1]} : vector<8x128xf32> to vector<1x128xf32>
    %251 = vector.extract_strided_slice %25 {offsets = [4, 0], sizes = [1, 128], strides = [1, 1]} : vector<8x128xf32> to vector<1x128xf32>
    %252 = arith.truncf %217 : vector<1x128xf32> to vector<1x128xbf16>
    %c1_74 = arith.constant 1 : index
    %c0_75 = arith.constant 0 : index
    %c0_76 = arith.constant 0 : index
    %253 = vector.load %arg3[%c1_74, %c0_75, %c0_76] : memref<2x128x384xbf16, #tpu.memory_space<vmem>>, vector<1x128x384xbf16>
    %254 = vector.shape_cast %253 : vector<1x128x384xbf16> to vector<128x384xbf16>
    %cst_77 = arith.constant dense<0.000000e+00> : vector<1x384xf32>
    %255 = tpu.matmul %252, %254, %cst_77 {dimension_numbers = #tpu.dot_dimension_numbers<[1], [0], [0], [1], [0, 0, 1, 1], [], []>} : vector<1x128xbf16>, vector<128x384xbf16>, vector<1x384xf32> -> vector<1x384xf32>
    %256 = vector.extract_strided_slice %255 {offsets = [0, 0], sizes = [1, 128], strides = [1, 1]} : vector<1x384xf32> to vector<1x128xf32>
    %257 = vector.extract_strided_slice %255 {offsets = [0, 128], sizes = [1, 128], strides = [1, 1]} : vector<1x384xf32> to vector<1x128xf32>
    %258 = vector.extract_strided_slice %255 {offsets = [0, 256], sizes = [1, 128], strides = [1, 1]} : vector<1x384xf32> to vector<1x128xf32>
    %259 = arith.addf %249, %256 : vector<1x128xf32>
    %260 = arith.negf %259 : vector<1x128xf32>
    %261 = math.exp %260 : vector<1x128xf32>
    %cst_78 = arith.constant 1.000000e+00 : f32
    %262 = vector.broadcast %cst_78 : f32 to vector<1x128xf32>
    %263 = arith.addf %262, %261 : vector<1x128xf32>
    %264 = arith.divf %262, %263 : vector<1x128xf32>
    %265 = arith.addf %250, %257 : vector<1x128xf32>
    %266 = arith.negf %265 : vector<1x128xf32>
    %267 = math.exp %266 : vector<1x128xf32>
    %cst_79 = arith.constant 1.000000e+00 : f32
    %268 = vector.broadcast %cst_79 : f32 to vector<1x128xf32>
    %269 = arith.addf %268, %267 : vector<1x128xf32>
    %270 = arith.divf %268, %269 : vector<1x128xf32>
    %271 = arith.addf %258, %29 : vector<1x128xf32>
    %272 = arith.mulf %264, %271 : vector<1x128xf32>
    %273 = arith.addf %251, %272 : vector<1x128xf32>
    %274 = math.tanh %273 : vector<1x128xf32>
    %cst_80 = arith.constant 1.000000e+00 : f32
    %275 = vector.broadcast %cst_80 : f32 to vector<1x128xf32>
    %276 = arith.subf %275, %270 : vector<1x128xf32>
    %277 = arith.mulf %276, %274 : vector<1x128xf32>
    %278 = arith.mulf %270, %217 : vector<1x128xf32>
    %279 = arith.addf %277, %278 : vector<1x128xf32>
    %280 = vector.extract_strided_slice %20 {offsets = [4, 0], sizes = [1, 128], strides = [1, 1]} : vector<8x128xf32> to vector<1x128xf32>
    %281 = vector.extract_strided_slice %21 {offsets = [4, 0], sizes = [1, 128], strides = [1, 1]} : vector<8x128xf32> to vector<1x128xf32>
    %282 = vector.extract_strided_slice %22 {offsets = [4, 0], sizes = [1, 128], strides = [1, 1]} : vector<8x128xf32> to vector<1x128xf32>
    %283 = arith.truncf %248 : vector<1x128xf32> to vector<1x128xbf16>
    %c0_81 = arith.constant 0 : index
    %c0_82 = arith.constant 0 : index
    %c0_83 = arith.constant 0 : index
    %284 = vector.load %arg3[%c0_81, %c0_82, %c0_83] : memref<2x128x384xbf16, #tpu.memory_space<vmem>>, vector<1x128x384xbf16>
    %285 = vector.shape_cast %284 : vector<1x128x384xbf16> to vector<128x384xbf16>
    %cst_84 = arith.constant dense<0.000000e+00> : vector<1x384xf32>
    %286 = tpu.matmul %283, %285, %cst_84 {dimension_numbers = #tpu.dot_dimension_numbers<[1], [0], [0], [1], [0, 0, 1, 1], [], []>} : vector<1x128xbf16>, vector<128x384xbf16>, vector<1x384xf32> -> vector<1x384xf32>
    %287 = vector.extract_strided_slice %286 {offsets = [0, 0], sizes = [1, 128], strides = [1, 1]} : vector<1x384xf32> to vector<1x128xf32>
    %288 = vector.extract_strided_slice %286 {offsets = [0, 128], sizes = [1, 128], strides = [1, 1]} : vector<1x384xf32> to vector<1x128xf32>
    %289 = vector.extract_strided_slice %286 {offsets = [0, 256], sizes = [1, 128], strides = [1, 1]} : vector<1x384xf32> to vector<1x128xf32>
    %290 = arith.addf %280, %287 : vector<1x128xf32>
    %291 = arith.negf %290 : vector<1x128xf32>
    %292 = math.exp %291 : vector<1x128xf32>
    %cst_85 = arith.constant 1.000000e+00 : f32
    %293 = vector.broadcast %cst_85 : f32 to vector<1x128xf32>
    %294 = arith.addf %293, %292 : vector<1x128xf32>
    %295 = arith.divf %293, %294 : vector<1x128xf32>
    %296 = arith.addf %281, %288 : vector<1x128xf32>
    %297 = arith.negf %296 : vector<1x128xf32>
    %298 = math.exp %297 : vector<1x128xf32>
    %cst_86 = arith.constant 1.000000e+00 : f32
    %299 = vector.broadcast %cst_86 : f32 to vector<1x128xf32>
    %300 = arith.addf %299, %298 : vector<1x128xf32>
    %301 = arith.divf %299, %300 : vector<1x128xf32>
    %302 = arith.addf %289, %27 : vector<1x128xf32>
    %303 = arith.mulf %295, %302 : vector<1x128xf32>
    %304 = arith.addf %282, %303 : vector<1x128xf32>
    %305 = math.tanh %304 : vector<1x128xf32>
    %cst_87 = arith.constant 1.000000e+00 : f32
    %306 = vector.broadcast %cst_87 : f32 to vector<1x128xf32>
    %307 = arith.subf %306, %301 : vector<1x128xf32>
    %308 = arith.mulf %307, %305 : vector<1x128xf32>
    %309 = arith.mulf %301, %248 : vector<1x128xf32>
    %310 = arith.addf %308, %309 : vector<1x128xf32>
    %311 = vector.extract_strided_slice %23 {offsets = [3, 0], sizes = [1, 128], strides = [1, 1]} : vector<8x128xf32> to vector<1x128xf32>
    %312 = vector.extract_strided_slice %24 {offsets = [3, 0], sizes = [1, 128], strides = [1, 1]} : vector<8x128xf32> to vector<1x128xf32>
    %313 = vector.extract_strided_slice %25 {offsets = [3, 0], sizes = [1, 128], strides = [1, 1]} : vector<8x128xf32> to vector<1x128xf32>
    %314 = arith.truncf %279 : vector<1x128xf32> to vector<1x128xbf16>
    %c1_88 = arith.constant 1 : index
    %c0_89 = arith.constant 0 : index
    %c0_90 = arith.constant 0 : index
    %315 = vector.load %arg3[%c1_88, %c0_89, %c0_90] : memref<2x128x384xbf16, #tpu.memory_space<vmem>>, vector<1x128x384xbf16>
    %316 = vector.shape_cast %315 : vector<1x128x384xbf16> to vector<128x384xbf16>
    %cst_91 = arith.constant dense<0.000000e+00> : vector<1x384xf32>
    %317 = tpu.matmul %314, %316, %cst_91 {dimension_numbers = #tpu.dot_dimension_numbers<[1], [0], [0], [1], [0, 0, 1, 1], [], []>} : vector<1x128xbf16>, vector<128x384xbf16>, vector<1x384xf32> -> vector<1x384xf32>
    %318 = vector.extract_strided_slice %317 {offsets = [0, 0], sizes = [1, 128], strides = [1, 1]} : vector<1x384xf32> to vector<1x128xf32>
    %319 = vector.extract_strided_slice %317 {offsets = [0, 128], sizes = [1, 128], strides = [1, 1]} : vector<1x384xf32> to vector<1x128xf32>
    %320 = vector.extract_strided_slice %317 {offsets = [0, 256], sizes = [1, 128], strides = [1, 1]} : vector<1x384xf32> to vector<1x128xf32>
    %321 = arith.addf %311, %318 : vector<1x128xf32>
    %322 = arith.negf %321 : vector<1x128xf32>
    %323 = math.exp %322 : vector<1x128xf32>
    %cst_92 = arith.constant 1.000000e+00 : f32
    %324 = vector.broadcast %cst_92 : f32 to vector<1x128xf32>
    %325 = arith.addf %324, %323 : vector<1x128xf32>
    %326 = arith.divf %324, %325 : vector<1x128xf32>
    %327 = arith.addf %312, %319 : vector<1x128xf32>
    %328 = arith.negf %327 : vector<1x128xf32>
    %329 = math.exp %328 : vector<1x128xf32>
    %cst_93 = arith.constant 1.000000e+00 : f32
    %330 = vector.broadcast %cst_93 : f32 to vector<1x128xf32>
    %331 = arith.addf %330, %329 : vector<1x128xf32>
    %332 = arith.divf %330, %331 : vector<1x128xf32>
    %333 = arith.addf %320, %29 : vector<1x128xf32>
    %334 = arith.mulf %326, %333 : vector<1x128xf32>
    %335 = arith.addf %313, %334 : vector<1x128xf32>
    %336 = math.tanh %335 : vector<1x128xf32>
    %cst_94 = arith.constant 1.000000e+00 : f32
    %337 = vector.broadcast %cst_94 : f32 to vector<1x128xf32>
    %338 = arith.subf %337, %332 : vector<1x128xf32>
    %339 = arith.mulf %338, %336 : vector<1x128xf32>
    %340 = arith.mulf %332, %279 : vector<1x128xf32>
    %341 = arith.addf %339, %340 : vector<1x128xf32>
    %342 = vector.extract_strided_slice %20 {offsets = [5, 0], sizes = [1, 128], strides = [1, 1]} : vector<8x128xf32> to vector<1x128xf32>
    %343 = vector.extract_strided_slice %21 {offsets = [5, 0], sizes = [1, 128], strides = [1, 1]} : vector<8x128xf32> to vector<1x128xf32>
    %344 = vector.extract_strided_slice %22 {offsets = [5, 0], sizes = [1, 128], strides = [1, 1]} : vector<8x128xf32> to vector<1x128xf32>
    %345 = arith.truncf %310 : vector<1x128xf32> to vector<1x128xbf16>
    %c0_95 = arith.constant 0 : index
    %c0_96 = arith.constant 0 : index
    %c0_97 = arith.constant 0 : index
    %346 = vector.load %arg3[%c0_95, %c0_96, %c0_97] : memref<2x128x384xbf16, #tpu.memory_space<vmem>>, vector<1x128x384xbf16>
    %347 = vector.shape_cast %346 : vector<1x128x384xbf16> to vector<128x384xbf16>
    %cst_98 = arith.constant dense<0.000000e+00> : vector<1x384xf32>
    %348 = tpu.matmul %345, %347, %cst_98 {dimension_numbers = #tpu.dot_dimension_numbers<[1], [0], [0], [1], [0, 0, 1, 1], [], []>} : vector<1x128xbf16>, vector<128x384xbf16>, vector<1x384xf32> -> vector<1x384xf32>
    %349 = vector.extract_strided_slice %348 {offsets = [0, 0], sizes = [1, 128], strides = [1, 1]} : vector<1x384xf32> to vector<1x128xf32>
    %350 = vector.extract_strided_slice %348 {offsets = [0, 128], sizes = [1, 128], strides = [1, 1]} : vector<1x384xf32> to vector<1x128xf32>
    %351 = vector.extract_strided_slice %348 {offsets = [0, 256], sizes = [1, 128], strides = [1, 1]} : vector<1x384xf32> to vector<1x128xf32>
    %352 = arith.addf %342, %349 : vector<1x128xf32>
    %353 = arith.negf %352 : vector<1x128xf32>
    %354 = math.exp %353 : vector<1x128xf32>
    %cst_99 = arith.constant 1.000000e+00 : f32
    %355 = vector.broadcast %cst_99 : f32 to vector<1x128xf32>
    %356 = arith.addf %355, %354 : vector<1x128xf32>
    %357 = arith.divf %355, %356 : vector<1x128xf32>
    %358 = arith.addf %343, %350 : vector<1x128xf32>
    %359 = arith.negf %358 : vector<1x128xf32>
    %360 = math.exp %359 : vector<1x128xf32>
    %cst_100 = arith.constant 1.000000e+00 : f32
    %361 = vector.broadcast %cst_100 : f32 to vector<1x128xf32>
    %362 = arith.addf %361, %360 : vector<1x128xf32>
    %363 = arith.divf %361, %362 : vector<1x128xf32>
    %364 = arith.addf %351, %27 : vector<1x128xf32>
    %365 = arith.mulf %357, %364 : vector<1x128xf32>
    %366 = arith.addf %344, %365 : vector<1x128xf32>
    %367 = math.tanh %366 : vector<1x128xf32>
    %cst_101 = arith.constant 1.000000e+00 : f32
    %368 = vector.broadcast %cst_101 : f32 to vector<1x128xf32>
    %369 = arith.subf %368, %363 : vector<1x128xf32>
    %370 = arith.mulf %369, %367 : vector<1x128xf32>
    %371 = arith.mulf %363, %310 : vector<1x128xf32>
    %372 = arith.addf %370, %371 : vector<1x128xf32>
    %373 = vector.extract_strided_slice %23 {offsets = [2, 0], sizes = [1, 128], strides = [1, 1]} : vector<8x128xf32> to vector<1x128xf32>
    %374 = vector.extract_strided_slice %24 {offsets = [2, 0], sizes = [1, 128], strides = [1, 1]} : vector<8x128xf32> to vector<1x128xf32>
    %375 = vector.extract_strided_slice %25 {offsets = [2, 0], sizes = [1, 128], strides = [1, 1]} : vector<8x128xf32> to vector<1x128xf32>
    %376 = arith.truncf %341 : vector<1x128xf32> to vector<1x128xbf16>
    %c1_102 = arith.constant 1 : index
    %c0_103 = arith.constant 0 : index
    %c0_104 = arith.constant 0 : index
    %377 = vector.load %arg3[%c1_102, %c0_103, %c0_104] : memref<2x128x384xbf16, #tpu.memory_space<vmem>>, vector<1x128x384xbf16>
    %378 = vector.shape_cast %377 : vector<1x128x384xbf16> to vector<128x384xbf16>
    %cst_105 = arith.constant dense<0.000000e+00> : vector<1x384xf32>
    %379 = tpu.matmul %376, %378, %cst_105 {dimension_numbers = #tpu.dot_dimension_numbers<[1], [0], [0], [1], [0, 0, 1, 1], [], []>} : vector<1x128xbf16>, vector<128x384xbf16>, vector<1x384xf32> -> vector<1x384xf32>
    %380 = vector.extract_strided_slice %379 {offsets = [0, 0], sizes = [1, 128], strides = [1, 1]} : vector<1x384xf32> to vector<1x128xf32>
    %381 = vector.extract_strided_slice %379 {offsets = [0, 128], sizes = [1, 128], strides = [1, 1]} : vector<1x384xf32> to vector<1x128xf32>
    %382 = vector.extract_strided_slice %379 {offsets = [0, 256], sizes = [1, 128], strides = [1, 1]} : vector<1x384xf32> to vector<1x128xf32>
    %383 = arith.addf %373, %380 : vector<1x128xf32>
    %384 = arith.negf %383 : vector<1x128xf32>
    %385 = math.exp %384 : vector<1x128xf32>
    %cst_106 = arith.constant 1.000000e+00 : f32
    %386 = vector.broadcast %cst_106 : f32 to vector<1x128xf32>
    %387 = arith.addf %386, %385 : vector<1x128xf32>
    %388 = arith.divf %386, %387 : vector<1x128xf32>
    %389 = arith.addf %374, %381 : vector<1x128xf32>
    %390 = arith.negf %389 : vector<1x128xf32>
    %391 = math.exp %390 : vector<1x128xf32>
    %cst_107 = arith.constant 1.000000e+00 : f32
    %392 = vector.broadcast %cst_107 : f32 to vector<1x128xf32>
    %393 = arith.addf %392, %391 : vector<1x128xf32>
    %394 = arith.divf %392, %393 : vector<1x128xf32>
    %395 = arith.addf %382, %29 : vector<1x128xf32>
    %396 = arith.mulf %388, %395 : vector<1x128xf32>
    %397 = arith.addf %375, %396 : vector<1x128xf32>
    %398 = math.tanh %397 : vector<1x128xf32>
    %cst_108 = arith.constant 1.000000e+00 : f32
    %399 = vector.broadcast %cst_108 : f32 to vector<1x128xf32>
    %400 = arith.subf %399, %394 : vector<1x128xf32>
    %401 = arith.mulf %400, %398 : vector<1x128xf32>
    %402 = arith.mulf %394, %341 : vector<1x128xf32>
    %403 = arith.addf %401, %402 : vector<1x128xf32>
    %404 = vector.extract_strided_slice %20 {offsets = [6, 0], sizes = [1, 128], strides = [1, 1]} : vector<8x128xf32> to vector<1x128xf32>
    %405 = vector.extract_strided_slice %21 {offsets = [6, 0], sizes = [1, 128], strides = [1, 1]} : vector<8x128xf32> to vector<1x128xf32>
    %406 = vector.extract_strided_slice %22 {offsets = [6, 0], sizes = [1, 128], strides = [1, 1]} : vector<8x128xf32> to vector<1x128xf32>
    %407 = arith.truncf %372 : vector<1x128xf32> to vector<1x128xbf16>
    %c0_109 = arith.constant 0 : index
    %c0_110 = arith.constant 0 : index
    %c0_111 = arith.constant 0 : index
    %408 = vector.load %arg3[%c0_109, %c0_110, %c0_111] : memref<2x128x384xbf16, #tpu.memory_space<vmem>>, vector<1x128x384xbf16>
    %409 = vector.shape_cast %408 : vector<1x128x384xbf16> to vector<128x384xbf16>
    %cst_112 = arith.constant dense<0.000000e+00> : vector<1x384xf32>
    %410 = tpu.matmul %407, %409, %cst_112 {dimension_numbers = #tpu.dot_dimension_numbers<[1], [0], [0], [1], [0, 0, 1, 1], [], []>} : vector<1x128xbf16>, vector<128x384xbf16>, vector<1x384xf32> -> vector<1x384xf32>
    %411 = vector.extract_strided_slice %410 {offsets = [0, 0], sizes = [1, 128], strides = [1, 1]} : vector<1x384xf32> to vector<1x128xf32>
    %412 = vector.extract_strided_slice %410 {offsets = [0, 128], sizes = [1, 128], strides = [1, 1]} : vector<1x384xf32> to vector<1x128xf32>
    %413 = vector.extract_strided_slice %410 {offsets = [0, 256], sizes = [1, 128], strides = [1, 1]} : vector<1x384xf32> to vector<1x128xf32>
    %414 = arith.addf %404, %411 : vector<1x128xf32>
    %415 = arith.negf %414 : vector<1x128xf32>
    %416 = math.exp %415 : vector<1x128xf32>
    %cst_113 = arith.constant 1.000000e+00 : f32
    %417 = vector.broadcast %cst_113 : f32 to vector<1x128xf32>
    %418 = arith.addf %417, %416 : vector<1x128xf32>
    %419 = arith.divf %417, %418 : vector<1x128xf32>
    %420 = arith.addf %405, %412 : vector<1x128xf32>
    %421 = arith.negf %420 : vector<1x128xf32>
    %422 = math.exp %421 : vector<1x128xf32>
    %cst_114 = arith.constant 1.000000e+00 : f32
    %423 = vector.broadcast %cst_114 : f32 to vector<1x128xf32>
    %424 = arith.addf %423, %422 : vector<1x128xf32>
    %425 = arith.divf %423, %424 : vector<1x128xf32>
    %426 = arith.addf %413, %27 : vector<1x128xf32>
    %427 = arith.mulf %419, %426 : vector<1x128xf32>
    %428 = arith.addf %406, %427 : vector<1x128xf32>
    %429 = math.tanh %428 : vector<1x128xf32>
    %cst_115 = arith.constant 1.000000e+00 : f32
    %430 = vector.broadcast %cst_115 : f32 to vector<1x128xf32>
    %431 = arith.subf %430, %425 : vector<1x128xf32>
    %432 = arith.mulf %431, %429 : vector<1x128xf32>
    %433 = arith.mulf %425, %372 : vector<1x128xf32>
    %434 = arith.addf %432, %433 : vector<1x128xf32>
    %435 = vector.extract_strided_slice %23 {offsets = [1, 0], sizes = [1, 128], strides = [1, 1]} : vector<8x128xf32> to vector<1x128xf32>
    %436 = vector.extract_strided_slice %24 {offsets = [1, 0], sizes = [1, 128], strides = [1, 1]} : vector<8x128xf32> to vector<1x128xf32>
    %437 = vector.extract_strided_slice %25 {offsets = [1, 0], sizes = [1, 128], strides = [1, 1]} : vector<8x128xf32> to vector<1x128xf32>
    %438 = arith.truncf %403 : vector<1x128xf32> to vector<1x128xbf16>
    %c1_116 = arith.constant 1 : index
    %c0_117 = arith.constant 0 : index
    %c0_118 = arith.constant 0 : index
    %439 = vector.load %arg3[%c1_116, %c0_117, %c0_118] : memref<2x128x384xbf16, #tpu.memory_space<vmem>>, vector<1x128x384xbf16>
    %440 = vector.shape_cast %439 : vector<1x128x384xbf16> to vector<128x384xbf16>
    %cst_119 = arith.constant dense<0.000000e+00> : vector<1x384xf32>
    %441 = tpu.matmul %438, %440, %cst_119 {dimension_numbers = #tpu.dot_dimension_numbers<[1], [0], [0], [1], [0, 0, 1, 1], [], []>} : vector<1x128xbf16>, vector<128x384xbf16>, vector<1x384xf32> -> vector<1x384xf32>
    %442 = vector.extract_strided_slice %441 {offsets = [0, 0], sizes = [1, 128], strides = [1, 1]} : vector<1x384xf32> to vector<1x128xf32>
    %443 = vector.extract_strided_slice %441 {offsets = [0, 128], sizes = [1, 128], strides = [1, 1]} : vector<1x384xf32> to vector<1x128xf32>
    %444 = vector.extract_strided_slice %441 {offsets = [0, 256], sizes = [1, 128], strides = [1, 1]} : vector<1x384xf32> to vector<1x128xf32>
    %445 = arith.addf %435, %442 : vector<1x128xf32>
    %446 = arith.negf %445 : vector<1x128xf32>
    %447 = math.exp %446 : vector<1x128xf32>
    %cst_120 = arith.constant 1.000000e+00 : f32
    %448 = vector.broadcast %cst_120 : f32 to vector<1x128xf32>
    %449 = arith.addf %448, %447 : vector<1x128xf32>
    %450 = arith.divf %448, %449 : vector<1x128xf32>
    %451 = arith.addf %436, %443 : vector<1x128xf32>
    %452 = arith.negf %451 : vector<1x128xf32>
    %453 = math.exp %452 : vector<1x128xf32>
    %cst_121 = arith.constant 1.000000e+00 : f32
    %454 = vector.broadcast %cst_121 : f32 to vector<1x128xf32>
    %455 = arith.addf %454, %453 : vector<1x128xf32>
    %456 = arith.divf %454, %455 : vector<1x128xf32>
    %457 = arith.addf %444, %29 : vector<1x128xf32>
    %458 = arith.mulf %450, %457 : vector<1x128xf32>
    %459 = arith.addf %437, %458 : vector<1x128xf32>
    %460 = math.tanh %459 : vector<1x128xf32>
    %cst_122 = arith.constant 1.000000e+00 : f32
    %461 = vector.broadcast %cst_122 : f32 to vector<1x128xf32>
    %462 = arith.subf %461, %456 : vector<1x128xf32>
    %463 = arith.mulf %462, %460 : vector<1x128xf32>
    %464 = arith.mulf %456, %403 : vector<1x128xf32>
    %465 = arith.addf %463, %464 : vector<1x128xf32>
    %466 = vector.extract_strided_slice %20 {offsets = [7, 0], sizes = [1, 128], strides = [1, 1]} : vector<8x128xf32> to vector<1x128xf32>
    %467 = vector.extract_strided_slice %21 {offsets = [7, 0], sizes = [1, 128], strides = [1, 1]} : vector<8x128xf32> to vector<1x128xf32>
    %468 = vector.extract_strided_slice %22 {offsets = [7, 0], sizes = [1, 128], strides = [1, 1]} : vector<8x128xf32> to vector<1x128xf32>
    %469 = arith.truncf %434 : vector<1x128xf32> to vector<1x128xbf16>
    %c0_123 = arith.constant 0 : index
    %c0_124 = arith.constant 0 : index
    %c0_125 = arith.constant 0 : index
    %470 = vector.load %arg3[%c0_123, %c0_124, %c0_125] : memref<2x128x384xbf16, #tpu.memory_space<vmem>>, vector<1x128x384xbf16>
    %471 = vector.shape_cast %470 : vector<1x128x384xbf16> to vector<128x384xbf16>
    %cst_126 = arith.constant dense<0.000000e+00> : vector<1x384xf32>
    %472 = tpu.matmul %469, %471, %cst_126 {dimension_numbers = #tpu.dot_dimension_numbers<[1], [0], [0], [1], [0, 0, 1, 1], [], []>} : vector<1x128xbf16>, vector<128x384xbf16>, vector<1x384xf32> -> vector<1x384xf32>
    %473 = vector.extract_strided_slice %472 {offsets = [0, 0], sizes = [1, 128], strides = [1, 1]} : vector<1x384xf32> to vector<1x128xf32>
    %474 = vector.extract_strided_slice %472 {offsets = [0, 128], sizes = [1, 128], strides = [1, 1]} : vector<1x384xf32> to vector<1x128xf32>
    %475 = vector.extract_strided_slice %472 {offsets = [0, 256], sizes = [1, 128], strides = [1, 1]} : vector<1x384xf32> to vector<1x128xf32>
    %476 = arith.addf %466, %473 : vector<1x128xf32>
    %477 = arith.negf %476 : vector<1x128xf32>
    %478 = math.exp %477 : vector<1x128xf32>
    %cst_127 = arith.constant 1.000000e+00 : f32
    %479 = vector.broadcast %cst_127 : f32 to vector<1x128xf32>
    %480 = arith.addf %479, %478 : vector<1x128xf32>
    %481 = arith.divf %479, %480 : vector<1x128xf32>
    %482 = arith.addf %467, %474 : vector<1x128xf32>
    %483 = arith.negf %482 : vector<1x128xf32>
    %484 = math.exp %483 : vector<1x128xf32>
    %cst_128 = arith.constant 1.000000e+00 : f32
    %485 = vector.broadcast %cst_128 : f32 to vector<1x128xf32>
    %486 = arith.addf %485, %484 : vector<1x128xf32>
    %487 = arith.divf %485, %486 : vector<1x128xf32>
    %488 = arith.addf %475, %27 : vector<1x128xf32>
    %489 = arith.mulf %481, %488 : vector<1x128xf32>
    %490 = arith.addf %468, %489 : vector<1x128xf32>
    %491 = math.tanh %490 : vector<1x128xf32>
    %cst_129 = arith.constant 1.000000e+00 : f32
    %492 = vector.broadcast %cst_129 : f32 to vector<1x128xf32>
    %493 = arith.subf %492, %487 : vector<1x128xf32>
    %494 = arith.mulf %493, %491 : vector<1x128xf32>
    %495 = arith.mulf %487, %434 : vector<1x128xf32>
    %496 = arith.addf %494, %495 : vector<1x128xf32>
    %497 = vector.extract_strided_slice %23 {offsets = [0, 0], sizes = [1, 128], strides = [1, 1]} : vector<8x128xf32> to vector<1x128xf32>
    %498 = vector.extract_strided_slice %24 {offsets = [0, 0], sizes = [1, 128], strides = [1, 1]} : vector<8x128xf32> to vector<1x128xf32>
    %499 = vector.extract_strided_slice %25 {offsets = [0, 0], sizes = [1, 128], strides = [1, 1]} : vector<8x128xf32> to vector<1x128xf32>
    %500 = arith.truncf %465 : vector<1x128xf32> to vector<1x128xbf16>
    %c1_130 = arith.constant 1 : index
    %c0_131 = arith.constant 0 : index
    %c0_132 = arith.constant 0 : index
    %501 = vector.load %arg3[%c1_130, %c0_131, %c0_132] : memref<2x128x384xbf16, #tpu.memory_space<vmem>>, vector<1x128x384xbf16>
    %502 = vector.shape_cast %501 : vector<1x128x384xbf16> to vector<128x384xbf16>
    %cst_133 = arith.constant dense<0.000000e+00> : vector<1x384xf32>
    %503 = tpu.matmul %500, %502, %cst_133 {dimension_numbers = #tpu.dot_dimension_numbers<[1], [0], [0], [1], [0, 0, 1, 1], [], []>} : vector<1x128xbf16>, vector<128x384xbf16>, vector<1x384xf32> -> vector<1x384xf32>
    %504 = vector.extract_strided_slice %503 {offsets = [0, 0], sizes = [1, 128], strides = [1, 1]} : vector<1x384xf32> to vector<1x128xf32>
    %505 = vector.extract_strided_slice %503 {offsets = [0, 128], sizes = [1, 128], strides = [1, 1]} : vector<1x384xf32> to vector<1x128xf32>
    %506 = vector.extract_strided_slice %503 {offsets = [0, 256], sizes = [1, 128], strides = [1, 1]} : vector<1x384xf32> to vector<1x128xf32>
    %507 = arith.addf %497, %504 : vector<1x128xf32>
    %508 = arith.negf %507 : vector<1x128xf32>
    %509 = math.exp %508 : vector<1x128xf32>
    %cst_134 = arith.constant 1.000000e+00 : f32
    %510 = vector.broadcast %cst_134 : f32 to vector<1x128xf32>
    %511 = arith.addf %510, %509 : vector<1x128xf32>
    %512 = arith.divf %510, %511 : vector<1x128xf32>
    %513 = arith.addf %498, %505 : vector<1x128xf32>
    %514 = arith.negf %513 : vector<1x128xf32>
    %515 = math.exp %514 : vector<1x128xf32>
    %cst_135 = arith.constant 1.000000e+00 : f32
    %516 = vector.broadcast %cst_135 : f32 to vector<1x128xf32>
    %517 = arith.addf %516, %515 : vector<1x128xf32>
    %518 = arith.divf %516, %517 : vector<1x128xf32>
    %519 = arith.addf %506, %29 : vector<1x128xf32>
    %520 = arith.mulf %512, %519 : vector<1x128xf32>
    %521 = arith.addf %499, %520 : vector<1x128xf32>
    %522 = math.tanh %521 : vector<1x128xf32>
    %cst_136 = arith.constant 1.000000e+00 : f32
    %523 = vector.broadcast %cst_136 : f32 to vector<1x128xf32>
    %524 = arith.subf %523, %518 : vector<1x128xf32>
    %525 = arith.mulf %524, %522 : vector<1x128xf32>
    %526 = arith.mulf %518, %465 : vector<1x128xf32>
    %527 = arith.addf %525, %526 : vector<1x128xf32>
    %528 = tpu.concatenate %62, %124, %186, %248, %310, %372, %434, %496 in 0 : vector<1x128xf32>, vector<1x128xf32>, vector<1x128xf32>, vector<1x128xf32>, vector<1x128xf32>, vector<1x128xf32>, vector<1x128xf32>, vector<1x128xf32> -> vector<8x128xf32>
    %529 = tpu.concatenate %527, %465, %403, %341, %279, %217, %155, %93 in 0 : vector<1x128xf32>, vector<1x128xf32>, vector<1x128xf32>, vector<1x128xf32>, vector<1x128xf32>, vector<1x128xf32>, vector<1x128xf32>, vector<1x128xf32> -> vector<8x128xf32>
    %c0_137 = arith.constant 0 : index
    %c0_138 = arith.constant 0 : index
    %c0_139 = arith.constant 0 : index
    %530 = vector.load %arg6[%c0_137, %c0_138, %c0_139] : memref<2x128x96xf32, #tpu.memory_space<vmem>>, vector<1x128x96xf32>
    %531 = vector.shape_cast %530 : vector<1x128x96xf32> to vector<128x96xf32>
    %cst_140 = arith.constant dense<0.000000e+00> : vector<8x96xf32>
    %532 = tpu.matmul %528, %531, %cst_140 {dimension_numbers = #tpu.dot_dimension_numbers<[1], [0], [0], [1], [0, 0, 1, 1], [], []>} : vector<8x128xf32>, vector<128x96xf32>, vector<8x96xf32> -> vector<8x96xf32>
    %c1_141 = arith.constant 1 : index
    %c0_142 = arith.constant 0 : index
    %c0_143 = arith.constant 0 : index
    %533 = vector.load %arg6[%c1_141, %c0_142, %c0_143] : memref<2x128x96xf32, #tpu.memory_space<vmem>>, vector<1x128x96xf32>
    %534 = vector.shape_cast %533 : vector<1x128x96xf32> to vector<128x96xf32>
    %cst_144 = arith.constant dense<0.000000e+00> : vector<8x96xf32>
    %535 = tpu.matmul %529, %534, %cst_144 {dimension_numbers = #tpu.dot_dimension_numbers<[1], [0], [0], [1], [0, 0, 1, 1], [], []>} : vector<8x128xf32>, vector<128x96xf32>, vector<8x96xf32> -> vector<8x96xf32>
    %536 = arith.addf %532, %535 : vector<8x96xf32>
    %c0_145 = arith.constant 0 : index
    %c0_146 = arith.constant 0 : index
    %537 = vector.load %arg7[%c0_145, %c0_146] : memref<1x96xf32, #tpu.memory_space<vmem>>, vector<1x96xf32>
    %538 = vector.broadcast %537 : vector<1x96xf32> to vector<8x96xf32>
    %539 = arith.addf %536, %538 : vector<8x96xf32>
    %cst_147 = arith.constant 0.000000e+00 : f32
    %540 = vector.broadcast %cst_147 : f32 to vector<8x96xf32>
    %541 = arith.maximumf %539, %540 : vector<8x96xf32>
    %542 = vector.extract_strided_slice %541 {offsets = [0, 0], sizes = [8, 32], strides = [1, 1]} : vector<8x96xf32> to vector<8x32xf32>
    %543 = vector.extract_strided_slice %541 {offsets = [0, 32], sizes = [8, 32], strides = [1, 1]} : vector<8x96xf32> to vector<8x32xf32>
    %544 = vector.extract_strided_slice %541 {offsets = [0, 64], sizes = [8, 32], strides = [1, 1]} : vector<8x96xf32> to vector<8x32xf32>
    %cst_148 = arith.constant dense<0.000000e+00> : vector<8x8xf32>
    %545 = tpu.matmul %542, %543, %cst_148 {dimension_numbers = #tpu.dot_dimension_numbers<[1], [1], [0], [0], [0, 0, 1, 0], [], []>} : vector<8x32xf32>, vector<8x32xf32>, vector<8x8xf32> -> vector<8x8xf32>
    %cst_149 = arith.constant dense<0.000000e+00> : vector<8x8xf32>
    %546 = tpu.matmul %543, %542, %cst_149 {dimension_numbers = #tpu.dot_dimension_numbers<[1], [1], [0], [0], [0, 0, 1, 0], [], []>} : vector<8x32xf32>, vector<8x32xf32>, vector<8x8xf32> -> vector<8x8xf32>
    %cst_150 = arith.constant dense<0xFF800000> : vector<8xf32>
    %547 = vector.multi_reduction <maximumf>, %545, %cst_150 [1] : vector<8x8xf32> to vector<8xf32>
    %548 = vector.shape_cast %547 : vector<8xf32> to vector<8x1xf32>
    %549 = vector.broadcast %548 : vector<8x1xf32> to vector<8x8xf32>
    %550 = arith.subf %545, %549 : vector<8x8xf32>
    %551 = math.exp %550 : vector<8x8xf32>
    %cst_151 = arith.constant dense<0.000000e+00> : vector<8xf32>
    %552 = vector.multi_reduction <add>, %551, %cst_151 [1] : vector<8x8xf32> to vector<8xf32>
    %553 = vector.shape_cast %552 : vector<8xf32> to vector<8x1xf32>
    %554 = tpu.reciprocal %553 {approx = true} : vector<8x1xf32> -> vector<8x1xf32>
    %555 = vector.broadcast %554 : vector<8x1xf32> to vector<8x8xf32>
    %556 = arith.mulf %551, %555 : vector<8x8xf32>
    %cst_152 = arith.constant dense<0.000000e+00> : vector<8x32xf32>
    %557 = tpu.matmul %556, %543, %cst_152 {dimension_numbers = #tpu.dot_dimension_numbers<[1], [0], [0], [1], [0, 0, 1, 1], [], []>} : vector<8x8xf32>, vector<8x32xf32>, vector<8x32xf32> -> vector<8x32xf32>
    %cst_153 = arith.constant dense<0xFF800000> : vector<8xf32>
    %558 = vector.multi_reduction <maximumf>, %546, %cst_153 [1] : vector<8x8xf32> to vector<8xf32>
    %559 = vector.shape_cast %558 : vector<8xf32> to vector<8x1xf32>
    %560 = vector.broadcast %559 : vector<8x1xf32> to vector<8x8xf32>
    %561 = arith.subf %546, %560 : vector<8x8xf32>
    %562 = math.exp %561 : vector<8x8xf32>
    %cst_154 = arith.constant dense<0.000000e+00> : vector<8xf32>
    %563 = vector.multi_reduction <add>, %562, %cst_154 [1] : vector<8x8xf32> to vector<8xf32>
    %564 = vector.shape_cast %563 : vector<8xf32> to vector<8x1xf32>
    %565 = tpu.reciprocal %564 {approx = true} : vector<8x1xf32> -> vector<8x1xf32>
    %566 = vector.broadcast %565 : vector<8x1xf32> to vector<8x8xf32>
    %567 = arith.mulf %562, %566 : vector<8x8xf32>
    %cst_155 = arith.constant dense<0.000000e+00> : vector<8x32xf32>
    %568 = tpu.matmul %567, %542, %cst_155 {dimension_numbers = #tpu.dot_dimension_numbers<[1], [0], [0], [1], [0, 0, 1, 1], [], []>} : vector<8x8xf32>, vector<8x32xf32>, vector<8x32xf32> -> vector<8x32xf32>
    %569 = arith.mulf %557, %542 : vector<8x32xf32>
    %570 = arith.mulf %568, %543 : vector<8x32xf32>
    %cst_156 = arith.constant dense<0.000000e+00> : vector<8x8xf32>
    %571 = tpu.matmul %543, %544, %cst_156 {dimension_numbers = #tpu.dot_dimension_numbers<[1], [1], [0], [0], [0, 0, 1, 0], [], []>} : vector<8x32xf32>, vector<8x32xf32>, vector<8x8xf32> -> vector<8x8xf32>
    %cst_157 = arith.constant dense<0.000000e+00> : vector<8x8xf32>
    %572 = tpu.matmul %544, %543, %cst_157 {dimension_numbers = #tpu.dot_dimension_numbers<[1], [1], [0], [0], [0, 0, 1, 0], [], []>} : vector<8x32xf32>, vector<8x32xf32>, vector<8x8xf32> -> vector<8x8xf32>
    %cst_158 = arith.constant dense<0xFF800000> : vector<8xf32>
    %573 = vector.multi_reduction <maximumf>, %571, %cst_158 [1] : vector<8x8xf32> to vector<8xf32>
    %574 = vector.shape_cast %573 : vector<8xf32> to vector<8x1xf32>
    %575 = vector.broadcast %574 : vector<8x1xf32> to vector<8x8xf32>
    %576 = arith.subf %571, %575 : vector<8x8xf32>
    %577 = math.exp %576 : vector<8x8xf32>
    %cst_159 = arith.constant dense<0.000000e+00> : vector<8xf32>
    %578 = vector.multi_reduction <add>, %577, %cst_159 [1] : vector<8x8xf32> to vector<8xf32>
    %579 = vector.shape_cast %578 : vector<8xf32> to vector<8x1xf32>
    %580 = tpu.reciprocal %579 {approx = true} : vector<8x1xf32> -> vector<8x1xf32>
    %581 = vector.broadcast %580 : vector<8x1xf32> to vector<8x8xf32>
    %582 = arith.mulf %577, %581 : vector<8x8xf32>
    %cst_160 = arith.constant dense<0.000000e+00> : vector<8x32xf32>
    %583 = tpu.matmul %582, %544, %cst_160 {dimension_numbers = #tpu.dot_dimension_numbers<[1], [0], [0], [1], [0, 0, 1, 1], [], []>} : vector<8x8xf32>, vector<8x32xf32>, vector<8x32xf32> -> vector<8x32xf32>
    %cst_161 = arith.constant dense<0xFF800000> : vector<8xf32>
    %584 = vector.multi_reduction <maximumf>, %572, %cst_161 [1] : vector<8x8xf32> to vector<8xf32>
    %585 = vector.shape_cast %584 : vector<8xf32> to vector<8x1xf32>
    %586 = vector.broadcast %585 : vector<8x1xf32> to vector<8x8xf32>
    %587 = arith.subf %572, %586 : vector<8x8xf32>
    %588 = math.exp %587 : vector<8x8xf32>
    %cst_162 = arith.constant dense<0.000000e+00> : vector<8xf32>
    %589 = vector.multi_reduction <add>, %588, %cst_162 [1] : vector<8x8xf32> to vector<8xf32>
    %590 = vector.shape_cast %589 : vector<8xf32> to vector<8x1xf32>
    %591 = tpu.reciprocal %590 {approx = true} : vector<8x1xf32> -> vector<8x1xf32>
    %592 = vector.broadcast %591 : vector<8x1xf32> to vector<8x8xf32>
    %593 = arith.mulf %588, %592 : vector<8x8xf32>
    %cst_163 = arith.constant dense<0.000000e+00> : vector<8x32xf32>
    %594 = tpu.matmul %593, %543, %cst_163 {dimension_numbers = #tpu.dot_dimension_numbers<[1], [0], [0], [1], [0, 0, 1, 1], [], []>} : vector<8x8xf32>, vector<8x32xf32>, vector<8x32xf32> -> vector<8x32xf32>
    %595 = arith.mulf %583, %543 : vector<8x32xf32>
    %596 = arith.mulf %594, %544 : vector<8x32xf32>
    %cst_164 = arith.constant dense<0.000000e+00> : vector<8x8xf32>
    %597 = tpu.matmul %544, %542, %cst_164 {dimension_numbers = #tpu.dot_dimension_numbers<[1], [1], [0], [0], [0, 0, 1, 0], [], []>} : vector<8x32xf32>, vector<8x32xf32>, vector<8x8xf32> -> vector<8x8xf32>
    %cst_165 = arith.constant dense<0.000000e+00> : vector<8x8xf32>
    %598 = tpu.matmul %542, %544, %cst_165 {dimension_numbers = #tpu.dot_dimension_numbers<[1], [1], [0], [0], [0, 0, 1, 0], [], []>} : vector<8x32xf32>, vector<8x32xf32>, vector<8x8xf32> -> vector<8x8xf32>
    %cst_166 = arith.constant dense<0xFF800000> : vector<8xf32>
    %599 = vector.multi_reduction <maximumf>, %597, %cst_166 [1] : vector<8x8xf32> to vector<8xf32>
    %600 = vector.shape_cast %599 : vector<8xf32> to vector<8x1xf32>
    %601 = vector.broadcast %600 : vector<8x1xf32> to vector<8x8xf32>
    %602 = arith.subf %597, %601 : vector<8x8xf32>
    %603 = math.exp %602 : vector<8x8xf32>
    %cst_167 = arith.constant dense<0.000000e+00> : vector<8xf32>
    %604 = vector.multi_reduction <add>, %603, %cst_167 [1] : vector<8x8xf32> to vector<8xf32>
    %605 = vector.shape_cast %604 : vector<8xf32> to vector<8x1xf32>
    %606 = tpu.reciprocal %605 {approx = true} : vector<8x1xf32> -> vector<8x1xf32>
    %607 = vector.broadcast %606 : vector<8x1xf32> to vector<8x8xf32>
    %608 = arith.mulf %603, %607 : vector<8x8xf32>
    %cst_168 = arith.constant dense<0.000000e+00> : vector<8x32xf32>
    %609 = tpu.matmul %608, %542, %cst_168 {dimension_numbers = #tpu.dot_dimension_numbers<[1], [0], [0], [1], [0, 0, 1, 1], [], []>} : vector<8x8xf32>, vector<8x32xf32>, vector<8x32xf32> -> vector<8x32xf32>
    %cst_169 = arith.constant dense<0xFF800000> : vector<8xf32>
    %610 = vector.multi_reduction <maximumf>, %598, %cst_169 [1] : vector<8x8xf32> to vector<8xf32>
    %611 = vector.shape_cast %610 : vector<8xf32> to vector<8x1xf32>
    %612 = vector.broadcast %611 : vector<8x1xf32> to vector<8x8xf32>
    %613 = arith.subf %598, %612 : vector<8x8xf32>
    %614 = math.exp %613 : vector<8x8xf32>
    %cst_170 = arith.constant dense<0.000000e+00> : vector<8xf32>
    %615 = vector.multi_reduction <add>, %614, %cst_170 [1] : vector<8x8xf32> to vector<8xf32>
    %616 = vector.shape_cast %615 : vector<8xf32> to vector<8x1xf32>
    %617 = tpu.reciprocal %616 {approx = true} : vector<8x1xf32> -> vector<8x1xf32>
    %618 = vector.broadcast %617 : vector<8x1xf32> to vector<8x8xf32>
    %619 = arith.mulf %614, %618 : vector<8x8xf32>
    %cst_171 = arith.constant dense<0.000000e+00> : vector<8x32xf32>
    %620 = tpu.matmul %619, %544, %cst_171 {dimension_numbers = #tpu.dot_dimension_numbers<[1], [0], [0], [1], [0, 0, 1, 1], [], []>} : vector<8x8xf32>, vector<8x32xf32>, vector<8x32xf32> -> vector<8x32xf32>
    %621 = arith.mulf %609, %544 : vector<8x32xf32>
    %622 = arith.mulf %620, %542 : vector<8x32xf32>
    %623 = tpu.concatenate %569, %570, %595, %596, %621, %622, %542, %543, %544 in 1 : vector<8x32xf32>, vector<8x32xf32>, vector<8x32xf32>, vector<8x32xf32>, vector<8x32xf32>, vector<8x32xf32>, vector<8x32xf32>, vector<8x32xf32>, vector<8x32xf32> -> vector<8x288xf32>
    %c0_172 = arith.constant 0 : index
    %c0_173 = arith.constant 0 : index
    %624 = vector.load %arg8[%c0_172, %c0_173] : memref<288x4xf32, #tpu.memory_space<vmem>>, vector<288x4xf32>
    %cst_174 = arith.constant dense<0.000000e+00> : vector<8x4xf32>
    %625 = tpu.matmul %623, %624, %cst_174 {dimension_numbers = #tpu.dot_dimension_numbers<[1], [0], [0], [1], [0, 0, 1, 1], [], []>} : vector<8x288xf32>, vector<288x4xf32>, vector<8x4xf32> -> vector<8x4xf32>
    %c0_175 = arith.constant 0 : index
    %c0_176 = arith.constant 0 : index
    %626 = vector.load %arg9[%c0_175, %c0_176] : memref<1x4xf32, #tpu.memory_space<vmem>>, vector<1x4xf32>
    %627 = vector.broadcast %626 : vector<1x4xf32> to vector<8x4xf32>
    %628 = arith.addf %625, %627 : vector<8x4xf32>
    %c0_177 = arith.constant 0 : index
    %c0_178 = arith.constant 0 : index
    %629 = vector.load %arg10[%c0_177, %c0_178] : memref<8x4xf32, #tpu.memory_space<vmem>>, vector<8x4xf32>
    tpu.vector_store %arg10[%c0_177, %c0_178], %628 {strides = array<i32>} : memref<8x4xf32, #tpu.memory_space<vmem>>, vector<8x4xf32>,
    return
  }
}

</mosaic_0001>

<llo_original>
// kernel: mmmu_ba_forward.1
$region0: #{mmmu_ba_forward.1}
  #allocation0 [shape = 'u32[]', space=smem, size = 0x4, offset = 0x4, fixed_abs, tag = 'smem constant byte address 0x4 - core index']
  #allocation1 [shape = 'u32[144,128]{1,0:T(1,128)}', space=vmem, size = 0x12000, scoped, tag = 'internal scratch']
  %s0 = inlined_call_operand.vmem [shape: f32[8,1], index: 0, kind: input, shape index: {}]
  %s1 = inlined_call_operand.vmem [shape: f32[10,8,72], index: 1, kind: input, shape index: {}]
  %s2 = inlined_call_operand.vmem [shape: bf16[2,72,384], index: 2, kind: input, shape index: {}]
  %s3 = inlined_call_operand.vmem [shape: bf16[2,128,384], index: 3, kind: input, shape index: {}]
  %s4 = inlined_call_operand.vmem [shape: f32[2,1,384], index: 4, kind: input, shape index: {}]
  %s5 = inlined_call_operand.vmem [shape: f32[2,1,128], index: 5, kind: input, shape index: {}]
  %s6 = inlined_call_operand.vmem [shape: f32[2,128,96], index: 6, kind: input, shape index: {}]
  %s7 = inlined_call_operand.vmem [shape: f32[1,96], index: 7, kind: input, shape index: {}]
  %s8 = inlined_call_operand.vmem [shape: f32[288,4], index: 8, kind: input, shape index: {}]
  %s9 = inlined_call_operand.vmem [shape: f32[1,4], index: 9, kind: input, shape index: {}]
  %s10 = inlined_call_operand.vmem [shape: f32[8,4], index: 10, kind: output, shape index: {}]
  %s11 = sld [smem:[#allocation0]]
  $region50: #{mmmu_ba_forward.1} parent=0
    _
  %s13 = ssub.s32 1, %s11
  %s14 = scalar_select 0, %s13, %s11
  // Predicated region
  $region2: #{mmmu_ba_forward.1} parent=0 // pred_check
    _
  $region3: #{mmmu_ba_forward.1} parent=0 // pred_check_branch
    %16 = sbr.rel (0) target = $region5
  $region4: #{mmmu_ba_forward.1} parent=0 // pred_region
    _
  $region5: #{mmmu_ba_forward.1} parent=0 // pred_fallthru
    _
  // Predicated region
  $region6: #{mmmu_ba_forward.1} parent=0 // pred_check
    _
  $region7: #{mmmu_ba_forward.1} parent=0 // pred_check_branch
    %18 = sbr.rel (0) target = $region9
  $region8: #{mmmu_ba_forward.1} parent=0 // pred_region
    _
  $region9: #{mmmu_ba_forward.1} parent=0 // pred_fallthru
    _
  // Predicated region
  $region10: #{mmmu_ba_forward.1} parent=0 // pred_check
    _
  $region11: #{mmmu_ba_forward.1} parent=0 // pred_check_branch
    %20 = sbr.rel (0) target = $region13
  $region12: #{mmmu_ba_forward.1} parent=0 // pred_region
    _
  $region13: #{mmmu_ba_forward.1} parent=0 // pred_fallthru
    _
  // Predicated region
  $region14: #{mmmu_ba_forward.1} parent=0 // pred_check
    _
  $region15: #{mmmu_ba_forward.1} parent=0 // pred_check_branch
    %22 = sbr.rel (0) target = $region17
  $region16: #{mmmu_ba_forward.1} parent=0 // pred_region
    _
  $region17: #{mmmu_ba_forward.1} parent=0 // pred_fallthru
    _
  // Predicated region
  $region18: #{mmmu_ba_forward.1} parent=0 // pred_check
    _
  $region19: #{mmmu_ba_forward.1} parent=0 // pred_check_branch
    %24 = sbr.rel (0) target = $region21
  $region20: #{mmmu_ba_forward.1} parent=0 // pred_region
    _
  $region21: #{mmmu_ba_forward.1} parent=0 // pred_fallthru
    _
  // Predicated region
  $region22: #{mmmu_ba_forward.1} parent=0 // pred_check
    _
  $region23: #{mmmu_ba_forward.1} parent=0 // pred_check_branch
    %26 = sbr.rel (0) target = $region25
  $region24: #{mmmu_ba_forward.1} parent=0 // pred_region
    _
  $region25: #{mmmu_ba_forward.1} parent=0 // pred_fallthru
    _
  // Predicated region
  $region26: #{mmmu_ba_forward.1} parent=0 // pred_check
    _
  $region27: #{mmmu_ba_forward.1} parent=0 // pred_check_branch
    %28 = sbr.rel (0) target = $region29
  $region28: #{mmmu_ba_forward.1} parent=0 // pred_region
    _
  $region29: #{mmmu_ba_forward.1} parent=0 // pred_fallthru
    _
  // Predicated region
  $region30: #{mmmu_ba_forward.1} parent=0 // pred_check
    _
  $region31: #{mmmu_ba_forward.1} parent=0 // pred_check_branch
    %30 = sbr.rel (0) target = $region33
  $region32: #{mmmu_ba_forward.1} parent=0 // pred_region
    _
  $region33: #{mmmu_ba_forward.1} parent=0 // pred_fallthru
    _
  // Predicated region
  $region34: #{mmmu_ba_forward.1} parent=0 // pred_check
    _
  $region35: #{mmmu_ba_forward.1} parent=0 // pred_check_branch
    %32 = sbr.rel (0) target = $region37
  $region36: #{mmmu_ba_forward.1} parent=0 // pred_region
    _
  $region37: #{mmmu_ba_forward.1} parent=0 // pred_fallthru
    _
  // Predicated region
  $region38: #{mmmu_ba_forward.1} parent=0 // pred_check
    _
  $region39: #{mmmu_ba_forward.1} parent=0 // pred_check_branch
    %34 = sbr.rel (0) target = $region41
  $region40: #{mmmu_ba_forward.1} parent=0 // pred_region
    _
  $region41: #{mmmu_ba_forward.1} parent=0 // pred_fallthru
    _
  %v36 = vld [vmem:[%s1] sm:$0xff]
  %v37 = vld [vmem:[%s1 + $0x8] sm:$0xff]
  %v38 = vld [vmem:[%s1 + $0x10] sm:$0xff]
  %v39 = vld [vmem:[%s1 + $0x18] sm:$0xff]
  %v40 = vld [vmem:[%s1 + $0x20] sm:$0xff]
  %v41 = vld [vmem:[%s1 + $0x28] sm:$0xff]
  %v42 = vld [vmem:[%s1 + $0x30] sm:$0xff]
  %v43 = vld [vmem:[%s1 + $0x38] sm:$0xff]
  %v44 = vld [vmem:[%s1 + $0x40] sm:$0xff]
  %v45 = vld [vmem:[%s1 + $0x48] sm:$0xff]
  %vm46 = vcmask 588800
  %v47 = vsel %vm46, %v36, 0.0
  %v48 = vsel %vm46, %v37, 0.0
  %v49 = vadd.f32 %v47, %v48
  %v50 = vsel %vm46, %v38, 0.0
  %v51 = vadd.f32 %v49, %v50
  %v52 = vsel %vm46, %v39, 0.0
  %v53 = vadd.f32 %v51, %v52
  %v54 = vsel %vm46, %v40, 0.0
  %v55 = vadd.f32 %v53, %v54
  %v56 = vsel %vm46, %v41, 0.0
  %v57 = vadd.f32 %v55, %v56
  %v58 = vsel %vm46, %v42, 0.0
  %v59 = vadd.f32 %v57, %v58
  %v60 = vsel %vm46, %v43, 0.0
  %v61 = vadd.f32 %v59, %v60
  %v62 = vsel %vm46, %v44, 0.0
  %v63 = vadd.f32 %v61, %v62
  %v64 = vsel %vm46, %v45, 0.0
  %v65 = vadd.f32 %v63, %v64
  %v66 = vld [vmem:[%s0] sm:$0xff]
  %68 = vset.pattern.permute.xlu0 0
  %69 = vperm.xlu0 %68, %v66
  %v70 = vpop.permute.xlu0 %69
  %v72 = vmul.f32 %v65, %v70
  %v73 = vpack.c.bf16 %v72, %v72
  %v74 = vld [vmem:[%s2] sm:$0xff]
  %v75 = vld [vmem:[%s2 + $0x8] sm:$0xf]
  %v76 = vld [vmem:[%s2 + $0xc] sm:$0xff]
  %v77 = vld [vmem:[%s2 + $0x14] sm:$0xf]
  %v78 = vld [vmem:[%s2 + $0x18] sm:$0xff]
  %v79 = vld [vmem:[%s2 + $0x20] sm:$0xf]
  %v80 = vld [vmem:[%s2 + $0x24] sm:$0xff]
  %v81 = vld [vmem:[%s2 + $0x2c] sm:$0xf]
  %v82 = vld [vmem:[%s2 + $0x30] sm:$0xff]
  %v83 = vld [vmem:[%s2 + $0x38] sm:$0xf]
  %v84 = vld [vmem:[%s2 + $0x3c] sm:$0xff]
  %v85 = vld [vmem:[%s2 + $0x44] sm:$0xf]
  %v86 = vld [vmem:[%s2 + $0x48] sm:$0xff]
  %v87 = vld [vmem:[%s2 + $0x50] sm:$0xf]
  %v88 = vld [vmem:[%s2 + $0x54] sm:$0xff]
  %v89 = vld [vmem:[%s2 + $0x5c] sm:$0xf]
  %v90 = vld [vmem:[%s2 + $0x60] sm:$0xff]
  %v91 = vld [vmem:[%s2 + $0x68] sm:$0xf]
  %v92 = vld [vmem:[%s4] sm:$0x7]
  %v94 = vlaneseq
  %v95 = vshrl.u32 %v94, 7
  %v96 = vsub.s32 0, %v95
  %v97 = vrot.slane %v92, %v96
  %v98 = vlaneseq
  %v99 = vshrl.u32 %v98, 7
  %v100 = vsub.s32 1, %v99
  %v101 = vrot.slane %v92, %v100
  %v102 = vlaneseq
  %v103 = vshrl.u32 %v102, 7
  %v104 = vsub.s32 2, %v103
  %v105 = vrot.slane %v92, %v104
  %v127 = vunpack.c.l.b16 %v74
  %v128 = vunpack.c.h.b16 %v74
  %v129 = vunpack.c.l.b16 %v75
  %v130 = vunpack.c.l.b16 %v76
  %v131 = vunpack.c.h.b16 %v76
  %v132 = vunpack.c.l.b16 %v77
  %v133 = vunpack.c.l.b16 %v78
  %v134 = vunpack.c.h.b16 %v78
  %v135 = vunpack.c.l.b16 %v79
  %v136 = vunpack.c.l.b16 %v80
  %v137 = vunpack.c.h.b16 %v80
  %v138 = vunpack.c.l.b16 %v81
  %v139 = vunpack.c.l.b16 %v82
  %v140 = vunpack.c.h.b16 %v82
  %v141 = vunpack.c.l.b16 %v83
  %v142 = vunpack.c.l.b16 %v84
  %v143 = vunpack.c.h.b16 %v84
  %v144 = vunpack.c.l.b16 %v85
  %v145 = vunpack.c.l.b16 %v86
  %v146 = vunpack.c.h.b16 %v86
  %v147 = vunpack.c.l.b16 %v87
  %v148 = vunpack.c.l.b16 %v88
  %v149 = vunpack.c.h.b16 %v88
  %v150 = vunpack.c.l.b16 %v89
  %v151 = vunpack.c.l.b16 %v90
  %v152 = vunpack.c.h.b16 %v90
  %v153 = vunpack.c.l.b16 %v91
  %v154 = vpack.c.b16 %v130, %v127
  %v155 = vpack.c.b16 %v131, %v128
  %v156 = vpack.c.b16 %v132, %v129
  %v157 = vpack.c.b16 %v136, %v133
  %v158 = vpack.c.b16 %v137, %v134
  %v159 = vpack.c.b16 %v138, %v135
  %v160 = vpack.c.b16 %v142, %v139
  %v161 = vpack.c.b16 %v143, %v140
  %v162 = vpack.c.b16 %v144, %v141
  %v163 = vpack.c.b16 %v148, %v145
  %v164 = vpack.c.b16 %v149, %v146
  %v165 = vpack.c.b16 %v150, %v147
  %v166 = vpack.c.b16 %v151, %v151
  %v167 = vpack.c.b16 %v152, %v152
  %v168 = vpack.c.b16 %v153, %v153
  %v182 = vsel %vm46, %v73, 0
  %vm184 = vcmask 1043456
  %v186 = vsel %vm184, %v166, 0
  %v189 = vsel %vm184, %v167, 0
  %v192 = vsel %vm184, %v168, 0
  %194 = vmatprep.subr.bf16.mxu0 0
  %195 = vmatpush1.bf16.msra.mxu0 0
  %196 = vmatprep.subr.bf16.mxu0 0
  %197 = vmatpush1.bf16.msra.mxu0 0
  %198 = vmatprep.subr.bf16.mxu0 0
  %199 = vmatpush1.bf16.msra.mxu0 0
  %200 = vmatprep.subr.bf16.mxu0 %v189
  %201 = vmatpush1.bf16.msra.mxu0 %v186
  %202 = vmatprep.subr.bf16.mxu0 %v164
  %203 = vmatpush1.bf16.msra.mxu0 %v163
  %204 = vmatprep.subr.bf16.mxu0 %v161
  %205 = vmatpush1.bf16.msra.mxu0 %v160
  %206 = vmatprep.subr.bf16.mxu0 %v158
  %207 = vmatpush1.bf16.msra.mxu0 %v157
  %208 = vmatprep.subr.bf16.mxu0 %v155
  %209 = vmatpush1.bf16.msra.mxu0 %v154
  %210 = vmatprep.subr.bf16.mxu0 0
  %211 = vmatpush2.bf16.msra.mxu0 0
  %212 = vmatprep.subr.bf16.mxu0 0
  %213 = vmatpush2.bf16.msra.mxu0 0
  %214 = vmatprep.subr.bf16.mxu0 0
  %215 = vmatpush2.bf16.msra.mxu0 0
  %216 = vmatprep.subr.bf16.mxu0 0
  %217 = vmatpush2.bf16.msra.mxu0 0
  %218 = vmatprep.subr.bf16.mxu0 0
  %219 = vmatpush2.bf16.msra.mxu0 0
  %220 = vmatprep.subr.bf16.mxu0 0
  %221 = vmatpush2.bf16.msra.mxu0 0
  %222 = vmatprep.subr.bf16.mxu0 0
  %223 = vmatpush2.bf16.msra.mxu0 0
  %224 = vmatprep.subr.bf16.mxu0 0
  %225 = vmatpush2.bf16.msra.mxu0 0
  %226 = vmatprep.mubr.bf16.mxu0 0
  %227 = vmatmul.mubr.bf16.gmra.mxu0 %v182
  %v228 = vpop.f32.mrf.mxu0
  %v229 = vadd.f32 %v97, %v228
  %v230 = vpop.f32.mrf.mxu0
  %v231 = vadd.f32 %v101, %v230
  %v232 = vpop.f32.mrf.mxu0
  %v233 = vpop.f32.mrf.mxu0
  %234 = vdwg.mxu0
  %235 = vmatprep.subr.bf16.mxu0 0
  %236 = vmatpush1.bf16.msra.mxu0 0
  %237 = vmatprep.subr.bf16.mxu0 0
  %238 = vmatpush1.bf16.msra.mxu0 0
  %239 = vmatprep.subr.bf16.mxu0 0
  %240 = vmatpush1.bf16.msra.mxu0 0
  %241 = vmatprep.subr.bf16.mxu0 0
  %242 = vmatpush1.bf16.msra.mxu0 %v192
  %243 = vmatprep.subr.bf16.mxu0 0
  %244 = vmatpush1.bf16.msra.mxu0 %v165
  %245 = vmatprep.subr.bf16.mxu0 0
  %246 = vmatpush1.bf16.msra.mxu0 %v162
  %247 = vmatprep.subr.bf16.mxu0 0
  %248 = vmatpush1.bf16.msra.mxu0 %v159
  %249 = vmatprep.subr.bf16.mxu0 0
  %250 = vmatpush1.bf16.msra.mxu0 %v156
  %251 = vmatprep.subr.bf16.mxu0 0
  %252 = vmatpush2.bf16.msra.mxu0 0
  %253 = vmatprep.subr.bf16.mxu0 0
  %254 = vmatpush2.bf16.msra.mxu0 0
  %255 = vmatprep.subr.bf16.mxu0 0
  %256 = vmatpush2.bf16.msra.mxu0 0
  %257 = vmatprep.subr.bf16.mxu0 0
  %258 = vmatpush2.bf16.msra.mxu0 0
  %259 = vmatprep.subr.bf16.mxu0 0
  %260 = vmatpush2.bf16.msra.mxu0 0
  %261 = vmatprep.subr.bf16.mxu0 0
  %262 = vmatpush2.bf16.msra.mxu0 0
  %263 = vmatprep.subr.bf16.mxu0 0
  %264 = vmatpush2.bf16.msra.mxu0 0
  %265 = vmatprep.subr.bf16.mxu0 0
  %266 = vmatpush2.bf16.msra.mxu0 0
  %267 = vmatprep.mubr.bf16.mxu0 0
  %268 = vmatmul.mubr.bf16.gmra.mxu0 %v182
  %v269 = vpop.f32.mrf.mxu0
  %v270 = vadd.f32 %v105, %v269
  %v271 = vpop.f32.mrf.mxu0
  %v272 = vpop.f32.mrf.mxu0
  %v273 = vpop.f32.mrf.mxu0
  %274 = vdwg.mxu0
  %s275 = scalar_lea.vmem %s2, 108
  %v276 = vld [vmem:[%s275] sm:$0xff]
  %v277 = vld [vmem:[%s275 + $0x8] sm:$0xf]
  %v278 = vld [vmem:[%s275 + $0xc] sm:$0xff]
  %v279 = vld [vmem:[%s275 + $0x14] sm:$0xf]
  %v280 = vld [vmem:[%s275 + $0x18] sm:$0xff]
  %v281 = vld [vmem:[%s275 + $0x20] sm:$0xf]
  %v282 = vld [vmem:[%s275 + $0x24] sm:$0xff]
  %v283 = vld [vmem:[%s275 + $0x2c] sm:$0xf]
  %v284 = vld [vmem:[%s275 + $0x30] sm:$0xff]
  %v285 = vld [vmem:[%s275 + $0x38] sm:$0xf]
  %v286 = vld [vmem:[%s275 + $0x3c] sm:$0xff]
  %v287 = vld [vmem:[%s275 + $0x44] sm:$0xf]
  %v288 = vld [vmem:[%s275 + $0x48] sm:$0xff]
  %v289 = vld [vmem:[%s275 + $0x50] sm:$0xf]
  %v290 = vld [vmem:[%s275 + $0x54] sm:$0xff]
  %v291 = vld [vmem:[%s275 + $0x5c] sm:$0xf]
  %v292 = vld [vmem:[%s275 + $0x60] sm:$0xff]
  %v293 = vld [vmem:[%s275 + $0x68] sm:$0xf]
  %s294 = scalar_lea.vmem %s4, 3
  %v295 = vld [vmem:[%s294] sm:$0x7]
  %v297 = vlaneseq
  %v298 = vshrl.u32 %v297, 7
  %v299 = vsub.s32 0, %v298
  %v300 = vrot.slane %v295, %v299
  %v301 = vlaneseq
  %v302 = vshrl.u32 %v301, 7
  %v303 = vsub.s32 1, %v302
  %v304 = vrot.slane %v295, %v303
  %v305 = vlaneseq
  %v306 = vshrl.u32 %v305, 7
  %v307 = vsub.s32 2, %v306
  %v308 = vrot.slane %v295, %v307
  %v330 = vunpack.c.l.b16 %v276
  %v331 = vunpack.c.h.b16 %v276
  %v332 = vunpack.c.l.b16 %v277
  %v333 = vunpack.c.l.b16 %v278
  %v334 = vunpack.c.h.b16 %v278
  %v335 = vunpack.c.l.b16 %v279
  %v336 = vunpack.c.l.b16 %v280
  %v337 = vunpack.c.h.b16 %v280
  %v338 = vunpack.c.l.b16 %v281
  %v339 = vunpack.c.l.b16 %v282
  %v340 = vunpack.c.h.b16 %v282
  %v341 = vunpack.c.l.b16 %v283
  %v342 = vunpack.c.l.b16 %v284
  %v343 = vunpack.c.h.b16 %v284
  %v344 = vunpack.c.l.b16 %v285
  %v345 = vunpack.c.l.b16 %v286
  %v346 = vunpack.c.h.b16 %v286
  %v347 = vunpack.c.l.b16 %v287
  %v348 = vunpack.c.l.b16 %v288
  %v349 = vunpack.c.h.b16 %v288
  %v350 = vunpack.c.l.b16 %v289
  %v351 = vunpack.c.l.b16 %v290
  %v352 = vunpack.c.h.b16 %v290
  %v353 = vunpack.c.l.b16 %v291
  %v354 = vunpack.c.l.b16 %v292
  %v355 = vunpack.c.h.b16 %v292
  %v356 = vunpack.c.l.b16 %v293
  %v357 = vpack.c.b16 %v333, %v330
  %v358 = vpack.c.b16 %v334, %v331
  %v359 = vpack.c.b16 %v335, %v332
  %v360 = vpack.c.b16 %v339, %v336
  %v361 = vpack.c.b16 %v340, %v337
  %v362 = vpack.c.b16 %v341, %v338
  %v363 = vpack.c.b16 %v345, %v342
  %v364 = vpack.c.b16 %v346, %v343
  %v365 = vpack.c.b16 %v347, %v344
  %v366 = vpack.c.b16 %v351, %v348
  %v367 = vpack.c.b16 %v352, %v349
  %v368 = vpack.c.b16 %v353, %v350
  %v369 = vpack.c.b16 %v354, %v354
  %v370 = vpack.c.b16 %v355, %v355
  %v371 = vpack.c.b16 %v356, %v356
  %v385 = vsel %vm184, %v369, 0
  %v388 = vsel %vm184, %v370, 0
  %v391 = vsel %vm184, %v371, 0
  %393 = vmatprep.subr.bf16.mxu0 0
  %394 = vmatpush1.bf16.msra.mxu0 0
  %395 = vmatprep.subr.bf16.mxu0 0
  %396 = vmatpush1.bf16.msra.mxu0 0
  %397 = vmatprep.subr.bf16.mxu0 0
  %398 = vmatpush1.bf16.msra.mxu0 0
  %399 = vmatprep.subr.bf16.mxu0 %v388
  %400 = vmatpush1.bf16.msra.mxu0 %v385
  %401 = vmatprep.subr.bf16.mxu0 %v367
  %402 = vmatpush1.bf16.msra.mxu0 %v366
  %403 = vmatprep.subr.bf16.mxu0 %v364
  %404 = vmatpush1.bf16.msra.mxu0 %v363
  %405 = vmatprep.subr.bf16.mxu0 %v361
  %406 = vmatpush1.bf16.msra.mxu0 %v360
  %407 = vmatprep.subr.bf16.mxu0 %v358
  %408 = vmatpush1.bf16.msra.mxu0 %v357
  %409 = vmatprep.subr.bf16.mxu0 0
  %410 = vmatpush2.bf16.msra.mxu0 0
  %411 = vmatprep.subr.bf16.mxu0 0
  %412 = vmatpush2.bf16.msra.mxu0 0
  %413 = vmatprep.subr.bf16.mxu0 0
  %414 = vmatpush2.bf16.msra.mxu0 0
  %415 = vmatprep.subr.bf16.mxu0 0
  %416 = vmatpush2.bf16.msra.mxu0 0
  %417 = vmatprep.subr.bf16.mxu0 0
  %418 = vmatpush2.bf16.msra.mxu0 0
  %419 = vmatprep.subr.bf16.mxu0 0
  %420 = vmatpush2.bf16.msra.mxu0 0
  %421 = vmatprep.subr.bf16.mxu0 0
  %422 = vmatpush2.bf16.msra.mxu0 0
  %423 = vmatprep.subr.bf16.mxu0 0
  %424 = vmatpush2.bf16.msra.mxu0 0
  %425 = vmatprep.mubr.bf16.mxu0 0
  %426 = vmatmul.mubr.bf16.gmra.mxu0 %v182
  %v427 = vpop.f32.mrf.mxu0
  %v428 = vadd.f32 %v300, %v427
  %v429 = vpop.f32.mrf.mxu0
  %v430 = vadd.f32 %v304, %v429
  %v431 = vpop.f32.mrf.mxu0
  %v432 = vpop.f32.mrf.mxu0
  %433 = vdwg.mxu0
  %434 = vmatprep.subr.bf16.mxu0 0
  %435 = vmatpush1.bf16.msra.mxu0 0
  %436 = vmatprep.subr.bf16.mxu0 0
  %437 = vmatpush1.bf16.msra.mxu0 0
  %438 = vmatprep.subr.bf16.mxu0 0
  %439 = vmatpush1.bf16.msra.mxu0 0
  %440 = vmatprep.subr.bf16.mxu0 0
  %441 = vmatpush1.bf16.msra.mxu0 %v391
  %442 = vmatprep.subr.bf16.mxu0 0
  %443 = vmatpush1.bf16.msra.mxu0 %v368
  %444 = vmatprep.subr.bf16.mxu0 0
  %445 = vmatpush1.bf16.msra.mxu0 %v365
  %446 = vmatprep.subr.bf16.mxu0 0
  %447 = vmatpush1.bf16.msra.mxu0 %v362
  %448 = vmatprep.subr.bf16.mxu0 0
  %449 = vmatpush1.bf16.msra.mxu0 %v359
  %450 = vmatprep.subr.bf16.mxu0 0
  %451 = vmatpush2.bf16.msra.mxu0 0
  %452 = vmatprep.subr.bf16.mxu0 0
  %453 = vmatpush2.bf16.msra.mxu0 0
  %454 = vmatprep.subr.bf16.mxu0 0
  %455 = vmatpush2.bf16.msra.mxu0 0
  %456 = vmatprep.subr.bf16.mxu0 0
  %457 = vmatpush2.bf16.msra.mxu0 0
  %458 = vmatprep.subr.bf16.mxu0 0
  %459 = vmatpush2.bf16.msra.mxu0 0
  %460 = vmatprep.subr.bf16.mxu0 0
  %461 = vmatpush2.bf16.msra.mxu0 0
  %462 = vmatprep.subr.bf16.mxu0 0
  %463 = vmatpush2.bf16.msra.mxu0 0
  %464 = vmatprep.subr.bf16.mxu0 0
  %465 = vmatpush2.bf16.msra.mxu0 0
  %466 = vmatprep.mubr.bf16.mxu0 0
  %467 = vmatmul.mubr.bf16.gmra.mxu0 %v182
  %v468 = vpop.f32.mrf.mxu0
  %v469 = vadd.f32 %v308, %v468
  %v470 = vpop.f32.mrf.mxu0
  %v471 = vpop.f32.mrf.mxu0
  %v472 = vpop.f32.mrf.mxu0
  %473 = vdwg.mxu0
  %v474 = vld [vmem:[%s5] sm:$0x1]
  %s475 = scalar_lea.vmem %s5, 1
  %v476 = vld [vmem:[%s475] sm:$0x1]
  %v477 = vld [vmem:[%s3] sm:$0xff]
  %v478 = vld [vmem:[%s3 + $0x8] sm:$0xf]
  %v479 = vld [vmem:[%s3 + $0xc] sm:$0xff]
  %v480 = vld [vmem:[%s3 + $0x14] sm:$0xf]
  %v481 = vld [vmem:[%s3 + $0x18] sm:$0xff]
  %v482 = vld [vmem:[%s3 + $0x20] sm:$0xf]
  %v483 = vld [vmem:[%s3 + $0x24] sm:$0xff]
  %v484 = vld [vmem:[%s3 + $0x2c] sm:$0xf]
  %v485 = vld [vmem:[%s3 + $0x30] sm:$0xff]
  %v486 = vld [vmem:[%s3 + $0x38] sm:$0xf]
  %v487 = vld [vmem:[%s3 + $0x3c] sm:$0xff]
  %v488 = vld [vmem:[%s3 + $0x44] sm:$0xf]
  %v489 = vld [vmem:[%s3 + $0x48] sm:$0xff]
  %v490 = vld [vmem:[%s3 + $0x50] sm:$0xf]
  %v491 = vld [vmem:[%s3 + $0x54] sm:$0xff]
  %v492 = vld [vmem:[%s3 + $0x5c] sm:$0xf]
  %v493 = vld [vmem:[%s3 + $0x60] sm:$0xff]
  %v494 = vld [vmem:[%s3 + $0x68] sm:$0xf]
  %v495 = vld [vmem:[%s3 + $0x6c] sm:$0xff]
  %v496 = vld [vmem:[%s3 + $0x74] sm:$0xf]
  %v497 = vld [vmem:[%s3 + $0x78] sm:$0xff]
  %v498 = vld [vmem:[%s3 + $0x80] sm:$0xf]
  %v499 = vld [vmem:[%s3 + $0x84] sm:$0xff]
  %v500 = vld [vmem:[%s3 + $0x8c] sm:$0xf]
  %v501 = vld [vmem:[%s3 + $0x90] sm:$0xff]
  %v502 = vld [vmem:[%s3 + $0x98] sm:$0xf]
  %v503 = vld [vmem:[%s3 + $0x9c] sm:$0xff]
  %v504 = vld [vmem:[%s3 + $0xa4] sm:$0xf]
  %v505 = vld [vmem:[%s3 + $0xa8] sm:$0xff]
  %v506 = vld [vmem:[%s3 + $0xb0] sm:$0xf]
  %v507 = vld [vmem:[%s3 + $0xb4] sm:$0xff]
  %v508 = vld [vmem:[%s3 + $0xbc] sm:$0xf]
  %v541 = vunpack.c.l.b16 %v477
  %v542 = vunpack.c.h.b16 %v477
  %v543 = vunpack.c.l.b16 %v478
  %v544 = vunpack.c.l.b16 %v479
  %v545 = vunpack.c.h.b16 %v479
  %v546 = vunpack.c.l.b16 %v480
  %v547 = vunpack.c.l.b16 %v481
  %v548 = vunpack.c.h.b16 %v481
  %v549 = vunpack.c.l.b16 %v482
  %v550 = vunpack.c.l.b16 %v483
  %v551 = vunpack.c.h.b16 %v483
  %v552 = vunpack.c.l.b16 %v484
  %v553 = vunpack.c.l.b16 %v485
  %v554 = vunpack.c.h.b16 %v485
  %v555 = vunpack.c.l.b16 %v486
  %v556 = vunpack.c.l.b16 %v487
  %v557 = vunpack.c.h.b16 %v487
  %v558 = vunpack.c.l.b16 %v488
  %v559 = vunpack.c.l.b16 %v489
  %v560 = vunpack.c.h.b16 %v489
  %v561 = vunpack.c.l.b16 %v490
  %v562 = vunpack.c.l.b16 %v491
  %v563 = vunpack.c.h.b16 %v491
  %v564 = vunpack.c.l.b16 %v492
  %v565 = vunpack.c.l.b16 %v493
  %v566 = vunpack.c.h.b16 %v493
  %v567 = vunpack.c.l.b16 %v494
  %v568 = vunpack.c.l.b16 %v495
  %v569 = vunpack.c.h.b16 %v495
  %v570 = vunpack.c.l.b16 %v496
  %v571 = vunpack.c.l.b16 %v497
  %v572 = vunpack.c.h.b16 %v497
  %v573 = vunpack.c.l.b16 %v498
  %v574 = vunpack.c.l.b16 %v499
  %v575 = vunpack.c.h.b16 %v499
  %v576 = vunpack.c.l.b16 %v500
  %v577 = vunpack.c.l.b16 %v501
  %v578 = vunpack.c.h.b16 %v501
  %v579 = vunpack.c.l.b16 %v502
  %v580 = vunpack.c.l.b16 %v503
  %v581 = vunpack.c.h.b16 %v503
  %v582 = vunpack.c.l.b16 %v504
  %v583 = vunpack.c.l.b16 %v505
  %v584 = vunpack.c.h.b16 %v505
  %v585 = vunpack.c.l.b16 %v506
  %v586 = vunpack.c.l.b16 %v507
  %v587 = vunpack.c.h.b16 %v507
  %v588 = vunpack.c.l.b16 %v508
  %v589 = vpack.c.b16 %v544, %v541
  %v590 = vpack.c.b16 %v545, %v542
  %v591 = vpack.c.b16 %v546, %v543
  %v592 = vpack.c.b16 %v550, %v547
  %v593 = vpack.c.b16 %v551, %v548
  %v594 = vpack.c.b16 %v552, %v549
  %v595 = vpack.c.b16 %v556, %v553
  %v596 = vpack.c.b16 %v557, %v554
  %v597 = vpack.c.b16 %v558, %v555
  %v598 = vpack.c.b16 %v562, %v559
  %v599 = vpack.c.b16 %v563, %v560
  %v600 = vpack.c.b16 %v564, %v561
  %v601 = vpack.c.b16 %v568, %v565
  %v602 = vpack.c.b16 %v569, %v566
  %v603 = vpack.c.b16 %v570, %v567
  %v604 = vpack.c.b16 %v574, %v571
  %v605 = vpack.c.b16 %v575, %v572
  %v606 = vpack.c.b16 %v576, %v573
  %v607 = vpack.c.b16 %v580, %v577
  %v608 = vpack.c.b16 %v581, %v578
  %v609 = vpack.c.b16 %v582, %v579
  %v610 = vpack.c.b16 %v586, %v583
  %v611 = vpack.c.b16 %v587, %v584
  %v612 = vpack.c.b16 %v588, %v585
  %637 = vmatprep.subr.bf16.mxu0 %v611
  %638 = vmatpush1.bf16.msra.mxu0 %v610
  %639 = vmatprep.subr.bf16.mxu0 %v608
  %640 = vmatpush1.bf16.msra.mxu0 %v607
  %641 = vmatprep.subr.bf16.mxu0 %v605
  %642 = vmatpush1.bf16.msra.mxu0 %v604
  %643 = vmatprep.subr.bf16.mxu0 %v602
  %644 = vmatpush1.bf16.msra.mxu0 %v601
  %645 = vmatprep.subr.bf16.mxu0 %v599
  %646 = vmatpush1.bf16.msra.mxu0 %v598
  %647 = vmatprep.subr.bf16.mxu0 %v596
  %648 = vmatpush1.bf16.msra.mxu0 %v595
  %649 = vmatprep.subr.bf16.mxu0 %v593
  %650 = vmatpush1.bf16.msra.mxu0 %v592
  %651 = vmatprep.subr.bf16.mxu0 %v590
  %652 = vmatpush1.bf16.msra.mxu0 %v589
  %653 = vmatprep.subr.bf16.mxu0 0
  %654 = vmatpush2.bf16.msra.mxu0 0
  %655 = vmatprep.subr.bf16.mxu0 0
  %656 = vmatpush2.bf16.msra.mxu0 0
  %657 = vmatprep.subr.bf16.mxu0 0
  %658 = vmatpush2.bf16.msra.mxu0 0
  %659 = vmatprep.subr.bf16.mxu0 0
  %660 = vmatpush2.bf16.msra.mxu0 0
  %661 = vmatprep.subr.bf16.mxu0 0
  %662 = vmatpush2.bf16.msra.mxu0 0
  %663 = vmatprep.subr.bf16.mxu0 0
  %664 = vmatpush2.bf16.msra.mxu0 0
  %665 = vmatprep.subr.bf16.mxu0 0
  %666 = vmatpush2.bf16.msra.mxu0 0
  %667 = vmatprep.subr.bf16.mxu0 0
  %668 = vmatpush2.bf16.msra.mxu0 0
  %669 = vmatprep.mubr.bf16.mxu0 0
  %670 = vmatmul.mubr.bf16.gmra.mxu0 0
  %v671 = vpop.f32.mrf.mxu0
  %v672 = vadd.f32 0.0, %v671
  %v673 = vpop.f32.mrf.mxu0
  %v674 = vadd.f32 0.0, %v673
  %v675 = vpop.f32.mrf.mxu0
  %v676 = vpop.f32.mrf.mxu0
  %677 = vdwg.mxu0
  %678 = vmatprep.subr.bf16.mxu0 0
  %679 = vmatpush1.bf16.msra.mxu0 %v612
  %680 = vmatprep.subr.bf16.mxu0 0
  %681 = vmatpush1.bf16.msra.mxu0 %v609
  %682 = vmatprep.subr.bf16.mxu0 0
  %683 = vmatpush1.bf16.msra.mxu0 %v606
  %684 = vmatprep.subr.bf16.mxu0 0
  %685 = vmatpush1.bf16.msra.mxu0 %v603
  %686 = vmatprep.subr.bf16.mxu0 0
  %687 = vmatpush1.bf16.msra.mxu0 %v600
  %688 = vmatprep.subr.bf16.mxu0 0
  %689 = vmatpush1.bf16.msra.mxu0 %v597
  %690 = vmatprep.subr.bf16.mxu0 0
  %691 = vmatpush1.bf16.msra.mxu0 %v594
  %692 = vmatprep.subr.bf16.mxu0 0
  %693 = vmatpush1.bf16.msra.mxu0 %v591
  %694 = vmatprep.subr.bf16.mxu0 0
  %695 = vmatpush2.bf16.msra.mxu0 0
  %696 = vmatprep.subr.bf16.mxu0 0
  %697 = vmatpush2.bf16.msra.mxu0 0
  %698 = vmatprep.subr.bf16.mxu0 0
  %699 = vmatpush2.bf16.msra.mxu0 0
  %700 = vmatprep.subr.bf16.mxu0 0
  %701 = vmatpush2.bf16.msra.mxu0 0
  %702 = vmatprep.subr.bf16.mxu0 0
  %703 = vmatpush2.bf16.msra.mxu0 0
  %704 = vmatprep.subr.bf16.mxu0 0
  %705 = vmatpush2.bf16.msra.mxu0 0
  %706 = vmatprep.subr.bf16.mxu0 0
  %707 = vmatpush2.bf16.msra.mxu0 0
  %708 = vmatprep.subr.bf16.mxu0 0
  %709 = vmatpush2.bf16.msra.mxu0 0
  %710 = vmatprep.mubr.bf16.mxu0 0
  %711 = vmatmul.mubr.bf16.gmra.mxu0 0
  %v712 = vpop.f32.mrf.mxu0
  %v713 = vadd.f32 0.0, %v712
  %v714 = vpop.f32.mrf.mxu0
  %v715 = vpop.f32.mrf.mxu0
  %v716 = vpop.f32.mrf.mxu0
  %717 = vdwg.mxu0
  %v718 = vadd.f32 %v229, %v672
  %v719 = vxor.u32 %v718, 2147483648
  %v720 = vmul.f32 %v719, 1.442695
  %v721 = vpow.pop %v720
  %v722 = vadd.f32 %v721, 1.0
  %v723 = vrcp.pop %v722
  %v724 = vmul.f32 1.0, %v723
  %v725 = vadd.f32 %v231, %v674
  %v726 = vxor.u32 %v725, 2147483648
  %v727 = vmul.f32 %v726, 1.442695
  %v728 = vpow.pop %v727
  %v729 = vadd.f32 %v728, 1.0
  %v730 = vrcp.pop %v729
  %v731 = vmul.f32 1.0, %v730
  %v732 = vadd.f32 %v713, %v474
  %v733 = vmul.f32 %v724, %v732
  %v734 = vadd.f32 %v270, %v733
  %v735 = vtanh.pop %v734
  %v736 = vsub.f32 1.0, %v731
  %v737 = vmul.f32 %v736, %v735
  %v738 = vmul.f32 %v731, 0.0
  %v739 = vadd.f32 %v737, %v738
  %s740 = scalar_lea.vmem %s3, 192
  %v741 = vld [vmem:[%s740] sm:$0xff]
  %v742 = vld [vmem:[%s740 + $0x8] sm:$0xf]
  %v743 = vld [vmem:[%s740 + $0xc] sm:$0xff]
  %v744 = vld [vmem:[%s740 + $0x14] sm:$0xf]
  %v745 = vld [vmem:[%s740 + $0x18] sm:$0xff]
  %v746 = vld [vmem:[%s740 + $0x20] sm:$0xf]
  %v747 = vld [vmem:[%s740 + $0x24] sm:$0xff]
  %v748 = vld [vmem:[%s740 + $0x2c] sm:$0xf]
  %v749 = vld [vmem:[%s740 + $0x30] sm:$0xff]
  %v750 = vld [vmem:[%s740 + $0x38] sm:$0xf]
  %v751 = vld [vmem:[%s740 + $0x3c] sm:$0xff]
  %v752 = vld [vmem:[%s740 + $0x44] sm:$0xf]
  %v753 = vld [vmem:[%s740 + $0x48] sm:$0xff]
  %v754 = vld [vmem:[%s740 + $0x50] sm:$0xf]
  %v755 = vld [vmem:[%s740 + $0x54] sm:$0xff]
  %v756 = vld [vmem:[%s740 + $0x5c] sm:$0xf]
  %v757 = vld [vmem:[%s740 + $0x60] sm:$0xff]
  %v758 = vld [vmem:[%s740 + $0x68] sm:$0xf]
  %v759 = vld [vmem:[%s740 + $0x6c] sm:$0xff]
  %v760 = vld [vmem:[%s740 + $0x74] sm:$0xf]
  %v761 = vld [vmem:[%s740 + $0x78] sm:$0xff]
  %v762 = vld [vmem:[%s740 + $0x80] sm:$0xf]
  %v763 = vld [vmem:[%s740 + $0x84] sm:$0xff]
  %v764 = vld [vmem:[%s740 + $0x8c] sm:$0xf]
  %v765 = vld [vmem:[%s740 + $0x90] sm:$0xff]
  %v766 = vld [vmem:[%s740 + $0x98] sm:$0xf]
  %v767 = vld [vmem:[%s740 + $0x9c] sm:$0xff]
  %v768 = vld [vmem:[%s740 + $0xa4] sm:$0xf]
  %v769 = vld [vmem:[%s740 + $0xa8] sm:$0xff]
  %v770 = vld [vmem:[%s740 + $0xb0] sm:$0xf]
  %v771 = vld [vmem:[%s740 + $0xb4] sm:$0xff]
  %v772 = vld [vmem:[%s740 + $0xbc] sm:$0xf]
  %v805 = vunpack.c.l.b16 %v741
  %v806 = vunpack.c.h.b16 %v741
  %v807 = vunpack.c.l.b16 %v742
  %v808 = vunpack.c.l.b16 %v743
  %v809 = vunpack.c.h.b16 %v743
  %v810 = vunpack.c.l.b16 %v744
  %v811 = vunpack.c.l.b16 %v745
  %v812 = vunpack.c.h.b16 %v745
  %v813 = vunpack.c.l.b16 %v746
  %v814 = vunpack.c.l.b16 %v747
  %v815 = vunpack.c.h.b16 %v747
  %v816 = vunpack.c.l.b16 %v748
  %v817 = vunpack.c.l.b16 %v749
  %v818 = vunpack.c.h.b16 %v749
  %v819 = vunpack.c.l.b16 %v750
  %v820 = vunpack.c.l.b16 %v751
  %v821 = vunpack.c.h.b16 %v751
  %v822 = vunpack.c.l.b16 %v752
  %v823 = vunpack.c.l.b16 %v753
  %v824 = vunpack.c.h.b16 %v753
  %v825 = vunpack.c.l.b16 %v754
  %v826 = vunpack.c.l.b16 %v755
  %v827 = vunpack.c.h.b16 %v755
  %v828 = vunpack.c.l.b16 %v756
  %v829 = vunpack.c.l.b16 %v757
  %v830 = vunpack.c.h.b16 %v757
  %v831 = vunpack.c.l.b16 %v758
  %v832 = vunpack.c.l.b16 %v759
  %v833 = vunpack.c.h.b16 %v759
  %v834 = vunpack.c.l.b16 %v760
  %v835 = vunpack.c.l.b16 %v761
  %v836 = vunpack.c.h.b16 %v761
  %v837 = vunpack.c.l.b16 %v762
  %v838 = vunpack.c.l.b16 %v763
  %v839 = vunpack.c.h.b16 %v763
  %v840 = vunpack.c.l.b16 %v764
  %v841 = vunpack.c.l.b16 %v765
  %v842 = vunpack.c.h.b16 %v765
  %v843 = vunpack.c.l.b16 %v766
  %v844 = vunpack.c.l.b16 %v767
  %v845 = vunpack.c.h.b16 %v767
  %v846 = vunpack.c.l.b16 %v768
  %v847 = vunpack.c.l.b16 %v769
  %v848 = vunpack.c.h.b16 %v769
  %v849 = vunpack.c.l.b16 %v770
  %v850 = vunpack.c.l.b16 %v771
  %v851 = vunpack.c.h.b16 %v771
  %v852 = vunpack.c.l.b16 %v772
  %v853 = vpack.c.b16 %v808, %v805
  %v854 = vpack.c.b16 %v809, %v806
  %v855 = vpack.c.b16 %v810, %v807
  %v856 = vpack.c.b16 %v814, %v811
  %v857 = vpack.c.b16 %v815, %v812
  %v858 = vpack.c.b16 %v816, %v813
  %v859 = vpack.c.b16 %v820, %v817
  %v860 = vpack.c.b16 %v821, %v818
  %v861 = vpack.c.b16 %v822, %v819
  %v862 = vpack.c.b16 %v826, %v823
  %v863 = vpack.c.b16 %v827, %v824
  %v864 = vpack.c.b16 %v828, %v825
  %v865 = vpack.c.b16 %v832, %v829
  %v866 = vpack.c.b16 %v833, %v830
  %v867 = vpack.c.b16 %v834, %v831
  %v868 = vpack.c.b16 %v838, %v835
  %v869 = vpack.c.b16 %v839, %v836
  %v870 = vpack.c.b16 %v840, %v837
  %v871 = vpack.c.b16 %v844, %v841
  %v872 = vpack.c.b16 %v845, %v842
  %v873 = vpack.c.b16 %v846, %v843
  %v874 = vpack.c.b16 %v850, %v847
  %v875 = vpack.c.b16 %v851, %v848
  %v876 = vpack.c.b16 %v852, %v849
  %901 = vmatprep.subr.bf16.mxu0 %v875
  %902 = vmatpush1.bf16.msra.mxu0 %v874
  %903 = vmatprep.subr.bf16.mxu0 %v872
  %904 = vmatpush1.bf16.msra.mxu0 %v871
  %905 = vmatprep.subr.bf16.mxu0 %v869
  %906 = vmatpush1.bf16.msra.mxu0 %v868
  %907 = vmatprep.subr.bf16.mxu0 %v866
  %908 = vmatpush1.bf16.msra.mxu0 %v865
  %909 = vmatprep.subr.bf16.mxu0 %v863
  %910 = vmatpush1.bf16.msra.mxu0 %v862
  %911 = vmatprep.subr.bf16.mxu0 %v860
  %912 = vmatpush1.bf16.msra.mxu0 %v859
  %913 = vmatprep.subr.bf16.mxu0 %v857
  %914 = vmatpush1.bf16.msra.mxu0 %v856
  %915 = vmatprep.subr.bf16.mxu0 %v854
  %916 = vmatpush1.bf16.msra.mxu0 %v853
  %917 = vmatprep.subr.bf16.mxu0 0
  %918 = vmatpush2.bf16.msra.mxu0 0
  %919 = vmatprep.subr.bf16.mxu0 0
  %920 = vmatpush2.bf16.msra.mxu0 0
  %921 = vmatprep.subr.bf16.mxu0 0
  %922 = vmatpush2.bf16.msra.mxu0 0
  %923 = vmatprep.subr.bf16.mxu0 0
  %924 = vmatpush2.bf16.msra.mxu0 0
  %925 = vmatprep.subr.bf16.mxu0 0
  %926 = vmatpush2.bf16.msra.mxu0 0
  %927 = vmatprep.subr.bf16.mxu0 0
  %928 = vmatpush2.bf16.msra.mxu0 0
  %929 = vmatprep.subr.bf16.mxu0 0
  %930 = vmatpush2.bf16.msra.mxu0 0
  %931 = vmatprep.subr.bf16.mxu0 0
  %932 = vmatpush2.bf16.msra.mxu0 0
  %933 = vmatprep.mubr.bf16.mxu0 0
  %934 = vmatmul.mubr.bf16.gmra.mxu0 0
  %v935 = vpop.f32.mrf.mxu0
  %v936 = vadd.f32 0.0, %v935
  %v937 = vpop.f32.mrf.mxu0
  %v938 = vadd.f32 0.0, %v937
  %v939 = vpop.f32.mrf.mxu0
  %v940 = vpop.f32.mrf.mxu0
  %941 = vdwg.mxu0
  %942 = vmatprep.subr.bf16.mxu0 0
  %943 = vmatpush1.bf16.msra.mxu0 %v876
  %944 = vmatprep.subr.bf16.mxu0 0
  %945 = vmatpush1.bf16.msra.mxu0 %v873
  %946 = vmatprep.subr.bf16.mxu0 0
  %947 = vmatpush1.bf16.msra.mxu0 %v870
  %948 = vmatprep.subr.bf16.mxu0 0
  %949 = vmatpush1.bf16.msra.mxu0 %v867
  %950 = vmatprep.subr.bf16.mxu0 0
  %951 = vmatpush1.bf16.msra.mxu0 %v864
  %952 = vmatprep.subr.bf16.mxu0 0
  %953 = vmatpush1.bf16.msra.mxu0 %v861
  %954 = vmatprep.subr.bf16.mxu0 0
  %955 = vmatpush1.bf16.msra.mxu0 %v858
  %956 = vmatprep.subr.bf16.mxu0 0
  %957 = vmatpush1.bf16.msra.mxu0 %v855
  %958 = vmatprep.subr.bf16.mxu0 0
  %959 = vmatpush2.bf16.msra.mxu0 0
  %960 = vmatprep.subr.bf16.mxu0 0
  %961 = vmatpush2.bf16.msra.mxu0 0
  %962 = vmatprep.subr.bf16.mxu0 0
  %963 = vmatpush2.bf16.msra.mxu0 0
  %964 = vmatprep.subr.bf16.mxu0 0
  %965 = vmatpush2.bf16.msra.mxu0 0
  %966 = vmatprep.subr.bf16.mxu0 0
  %967 = vmatpush2.bf16.msra.mxu0 0
  %968 = vmatprep.subr.bf16.mxu0 0
  %969 = vmatpush2.bf16.msra.mxu0 0
  %970 = vmatprep.subr.bf16.mxu0 0
  %971 = vmatpush2.bf16.msra.mxu0 0
  %972 = vmatprep.subr.bf16.mxu0 0
  %973 = vmatpush2.bf16.msra.mxu0 0
  %974 = vmatprep.mubr.bf16.mxu0 0
  %975 = vmatmul.mubr.bf16.gmra.mxu0 0
  %v976 = vpop.f32.mrf.mxu0
  %v977 = vadd.f32 0.0, %v976
  %v978 = vpop.f32.mrf.mxu0
  %v979 = vpop.f32.mrf.mxu0
  %v980 = vpop.f32.mrf.mxu0
  %981 = vdwg.mxu0
  %v983 = vrot.slane %v936, 1
  %v985 = vadd.f32 %v428, %v983
  %v986 = vxor.u32 %v985, 2147483648
  %v987 = vmul.f32 %v986, 1.442695
  %v988 = vpow.pop %v987
  %v989 = vadd.f32 %v988, 1.0
  %v990 = vrcp.pop %v989
  %v991 = vmul.f32 1.0, %v990
  %v993 = vrot.slane %v938, 1
  %v995 = vadd.f32 %v430, %v993
  %v996 = vxor.u32 %v995, 2147483648
  %v997 = vmul.f32 %v996, 1.442695
  %v998 = vpow.pop %v997
  %v999 = vadd.f32 %v998, 1.0
  %v1000 = vrcp.pop %v999
  %v1001 = vmul.f32 1.0, %v1000
  %v1002 = vadd.f32 %v977, %v476
  %v1004 = vrot.slane %v1002, 1
  %v1006 = vmul.f32 %v991, %v1004
  %v1007 = vadd.f32 %v469, %v1006
  %v1008 = vtanh.pop %v1007
  %v1009 = vsub.f32 1.0, %v1001
  %v1010 = vmul.f32 %v1009, %v1008
  %v1011 = vmul.f32 %v1001, 0.0
  %v1012 = vadd.f32 %v1010, %v1011
  %v1013 = vpack.c.bf16 %v739, %v739
  %1014 = vmatprep.subr.bf16.mxu0 %v611
  %1015 = vmatpush1.bf16.msra.mxu0 %v610
  %1016 = vmatprep.subr.bf16.mxu0 %v608
  %1017 = vmatpush1.bf16.msra.mxu0 %v607
  %1018 = vmatprep.subr.bf16.mxu0 %v605
  %1019 = vmatpush1.bf16.msra.mxu0 %v604
  %1020 = vmatprep.subr.bf16.mxu0 %v602
  %1021 = vmatpush1.bf16.msra.mxu0 %v601
  %1022 = vmatprep.subr.bf16.mxu0 %v599
  %1023 = vmatpush1.bf16.msra.mxu0 %v598
  %1024 = vmatprep.subr.bf16.mxu0 %v596
  %1025 = vmatpush1.bf16.msra.mxu0 %v595
  %1026 = vmatprep.subr.bf16.mxu0 %v593
  %1027 = vmatpush1.bf16.msra.mxu0 %v592
  %1028 = vmatprep.subr.bf16.mxu0 %v590
  %1029 = vmatpush1.bf16.msra.mxu0 %v589
  %1030 = vmatprep.subr.bf16.mxu0 0
  %1031 = vmatpush2.bf16.msra.mxu0 0
  %1032 = vmatprep.subr.bf16.mxu0 0
  %1033 = vmatpush2.bf16.msra.mxu0 0
  %1034 = vmatprep.subr.bf16.mxu0 0
  %1035 = vmatpush2.bf16.msra.mxu0 0
  %1036 = vmatprep.subr.bf16.mxu0 0
  %1037 = vmatpush2.bf16.msra.mxu0 0
  %1038 = vmatprep.subr.bf16.mxu0 0
  %1039 = vmatpush2.bf16.msra.mxu0 0
  %1040 = vmatprep.subr.bf16.mxu0 0
  %1041 = vmatpush2.bf16.msra.mxu0 0
  %1042 = vmatprep.subr.bf16.mxu0 0
  %1043 = vmatpush2.bf16.msra.mxu0 0
  %1044 = vmatprep.subr.bf16.mxu0 0
  %1045 = vmatpush2.bf16.msra.mxu0 0
  %1046 = vmatprep.mubr.bf16.mxu0 0
  %1047 = vmatmul.mubr.bf16.gmra.mxu0 %v1013
  %v1048 = vpop.f32.mrf.mxu0
  %v1049 = vadd.f32 0.0, %v1048
  %v1050 = vpop.f32.mrf.mxu0
  %v1051 = vadd.f32 0.0, %v1050
  %v1052 = vpop.f32.mrf.mxu0
  %v1053 = vpop.f32.mrf.mxu0
  %1054 = vdwg.mxu0
  %1055 = vmatprep.subr.bf16.mxu0 0
  %1056 = vmatpush1.bf16.msra.mxu0 %v612
  %1057 = vmatprep.subr.bf16.mxu0 0
  %1058 = vmatpush1.bf16.msra.mxu0 %v609
  %1059 = vmatprep.subr.bf16.mxu0 0
  %1060 = vmatpush1.bf16.msra.mxu0 %v606
  %1061 = vmatprep.subr.bf16.mxu0 0
  %1062 = vmatpush1.bf16.msra.mxu0 %v603
  %1063 = vmatprep.subr.bf16.mxu0 0
  %1064 = vmatpush1.bf16.msra.mxu0 %v600
  %1065 = vmatprep.subr.bf16.mxu0 0
  %1066 = vmatpush1.bf16.msra.mxu0 %v597
  %1067 = vmatprep.subr.bf16.mxu0 0
  %1068 = vmatpush1.bf16.msra.mxu0 %v594
  %1069 = vmatprep.subr.bf16.mxu0 0
  %1070 = vmatpush1.bf16.msra.mxu0 %v591
  %1071 = vmatprep.subr.bf16.mxu0 0
  %1072 = vmatpush2.bf16.msra.mxu0 0
  %1073 = vmatprep.subr.bf16.mxu0 0
  %1074 = vmatpush2.bf16.msra.mxu0 0
  %1075 = vmatprep.subr.bf16.mxu0 0
  %1076 = vmatpush2.bf16.msra.mxu0 0
  %1077 = vmatprep.subr.bf16.mxu0 0
  %1078 = vmatpush2.bf16.msra.mxu0 0
  %1079 = vmatprep.subr.bf16.mxu0 0
  %1080 = vmatpush2.bf16.msra.mxu0 0
  %1081 = vmatprep.subr.bf16.mxu0 0
  %1082 = vmatpush2.bf16.msra.mxu0 0
  %1083 = vmatprep.subr.bf16.mxu0 0
  %1084 = vmatpush2.bf16.msra.mxu0 0
  %1085 = vmatprep.subr.bf16.mxu0 0
  %1086 = vmatpush2.bf16.msra.mxu0 0
  %1087 = vmatprep.mubr.bf16.mxu0 0
  %1088 = vmatmul.mubr.bf16.gmra.mxu0 %v1013
  %v1089 = vpop.f32.mrf.mxu0
  %v1090 = vadd.f32 0.0, %v1089
  %v1091 = vpop.f32.mrf.mxu0
  %v1092 = vpop.f32.mrf.mxu0
  %v1093 = vpop.f32.mrf.mxu0
  %1094 = vdwg.mxu0
  %v1096 = vrot.slane %v1049, 7
  %v1098 = vadd.f32 %v229, %v1096
  %v1099 = vxor.u32 %v1098, 2147483648
  %v1100 = vmul.f32 %v1099, 1.442695
  %v1101 = vpow.pop %v1100
  %v1102 = vadd.f32 %v1101, 1.0
  %v1103 = vrcp.pop %v1102
  %v1104 = vmul.f32 1.0, %v1103
  %v1106 = vrot.slane %v1051, 7
  %v1108 = vadd.f32 %v231, %v1106
  %v1109 = vxor.u32 %v1108, 2147483648
  %v1110 = vmul.f32 %v1109, 1.442695
  %v1111 = vpow.pop %v1110
  %v1112 = vadd.f32 %v1111, 1.0
  %v1113 = vrcp.pop %v1112
  %v1114 = vmul.f32 1.0, %v1113
  %v1115 = vadd.f32 %v1090, %v474
  %v1117 = vrot.slane %v1115, 7
  %v1119 = vmul.f32 %v1104, %v1117
  %v1120 = vadd.f32 %v270, %v1119
  %v1121 = vtanh.pop %v1120
  %v1122 = vsub.f32 1.0, %v1114
  %v1123 = vmul.f32 %v1122, %v1121
  %v1125 = vrot.slane %v739, 7
  %v1127 = vmul.f32 %v1114, %v1125
  %v1128 = vadd.f32 %v1123, %v1127
  %v1129 = vpack.c.bf16 %v1012, %v1012
  %v1131 = vshrl.u32 %v1129, 16
  %v1133 = vrot.slane %v1131, 3
  %1135 = vmatprep.subr.bf16.mxu0 %v875
  %1136 = vmatpush1.bf16.msra.mxu0 %v874
  %1137 = vmatprep.subr.bf16.mxu0 %v872
  %1138 = vmatpush1.bf16.msra.mxu0 %v871
  %1139 = vmatprep.subr.bf16.mxu0 %v869
  %1140 = vmatpush1.bf16.msra.mxu0 %v868
  %1141 = vmatprep.subr.bf16.mxu0 %v866
  %1142 = vmatpush1.bf16.msra.mxu0 %v865
  %1143 = vmatprep.subr.bf16.mxu0 %v863
  %1144 = vmatpush1.bf16.msra.mxu0 %v862
  %1145 = vmatprep.subr.bf16.mxu0 %v860
  %1146 = vmatpush1.bf16.msra.mxu0 %v859
  %1147 = vmatprep.subr.bf16.mxu0 %v857
  %1148 = vmatpush1.bf16.msra.mxu0 %v856
  %1149 = vmatprep.subr.bf16.mxu0 %v854
  %1150 = vmatpush1.bf16.msra.mxu0 %v853
  %1151 = vmatprep.subr.bf16.mxu0 0
  %1152 = vmatpush2.bf16.msra.mxu0 0
  %1153 = vmatprep.subr.bf16.mxu0 0
  %1154 = vmatpush2.bf16.msra.mxu0 0
  %1155 = vmatprep.subr.bf16.mxu0 0
  %1156 = vmatpush2.bf16.msra.mxu0 0
  %1157 = vmatprep.subr.bf16.mxu0 0
  %1158 = vmatpush2.bf16.msra.mxu0 0
  %1159 = vmatprep.subr.bf16.mxu0 0
  %1160 = vmatpush2.bf16.msra.mxu0 0
  %1161 = vmatprep.subr.bf16.mxu0 0
  %1162 = vmatpush2.bf16.msra.mxu0 0
  %1163 = vmatprep.subr.bf16.mxu0 0
  %1164 = vmatpush2.bf16.msra.mxu0 0
  %1165 = vmatprep.subr.bf16.mxu0 0
  %1166 = vmatpush2.bf16.msra.mxu0 0
  %1167 = vmatprep.mubr.bf16.mxu0 0
  %1168 = vmatmul.mubr.bf16.gmra.mxu0 %v1133
  %v1169 = vpop.f32.mrf.mxu0
  %v1170 = vadd.f32 0.0, %v1169
  %v1171 = vpop.f32.mrf.mxu0
  %v1172 = vadd.f32 0.0, %v1171
  %v1173 = vpop.f32.mrf.mxu0
  %v1174 = vpop.f32.mrf.mxu0
  %1175 = vdwg.mxu0
  %1176 = vmatprep.subr.bf16.mxu0 0
  %1177 = vmatpush1.bf16.msra.mxu0 %v876
  %1178 = vmatprep.subr.bf16.mxu0 0
  %1179 = vmatpush1.bf16.msra.mxu0 %v873
  %1180 = vmatprep.subr.bf16.mxu0 0
  %1181 = vmatpush1.bf16.msra.mxu0 %v870
  %1182 = vmatprep.subr.bf16.mxu0 0
  %1183 = vmatpush1.bf16.msra.mxu0 %v867
  %1184 = vmatprep.subr.bf16.mxu0 0
  %1185 = vmatpush1.bf16.msra.mxu0 %v864
  %1186 = vmatprep.subr.bf16.mxu0 0
  %1187 = vmatpush1.bf16.msra.mxu0 %v861
  %1188 = vmatprep.subr.bf16.mxu0 0
  %1189 = vmatpush1.bf16.msra.mxu0 %v858
  %1190 = vmatprep.subr.bf16.mxu0 0
  %1191 = vmatpush1.bf16.msra.mxu0 %v855
  %1192 = vmatprep.subr.bf16.mxu0 0
  %1193 = vmatpush2.bf16.msra.mxu0 0
  %1194 = vmatprep.subr.bf16.mxu0 0
  %1195 = vmatpush2.bf16.msra.mxu0 0
  %1196 = vmatprep.subr.bf16.mxu0 0
  %1197 = vmatpush2.bf16.msra.mxu0 0
  %1198 = vmatprep.subr.bf16.mxu0 0
  %1199 = vmatpush2.bf16.msra.mxu0 0
  %1200 = vmatprep.subr.bf16.mxu0 0
  %1201 = vmatpush2.bf16.msra.mxu0 0
  %1202 = vmatprep.subr.bf16.mxu0 0
  %1203 = vmatpush2.bf16.msra.mxu0 0
  %1204 = vmatprep.subr.bf16.mxu0 0
  %1205 = vmatpush2.bf16.msra.mxu0 0
  %1206 = vmatprep.subr.bf16.mxu0 0
  %1207 = vmatpush2.bf16.msra.mxu0 0
  %1208 = vmatprep.mubr.bf16.mxu0 0
  %1209 = vmatmul.mubr.bf16.gmra.mxu0 %v1133
  %v1210 = vpop.f32.mrf.mxu0
  %v1211 = vadd.f32 0.0, %v1210
  %v1212 = vpop.f32.mrf.mxu0
  %v1213 = vpop.f32.mrf.mxu0
  %v1214 = vpop.f32.mrf.mxu0
  %1215 = vdwg.mxu0
  %v1217 = vrot.slane %v1170, 2
  %v1219 = vadd.f32 %v428, %v1217
  %v1220 = vxor.u32 %v1219, 2147483648
  %v1221 = vmul.f32 %v1220, 1.442695
  %v1222 = vpow.pop %v1221
  %v1223 = vadd.f32 %v1222, 1.0
  %v1224 = vrcp.pop %v1223
  %v1225 = vmul.f32 1.0, %v1224
  %v1227 = vrot.slane %v1172, 2
  %v1229 = vadd.f32 %v430, %v1227
  %v1230 = vxor.u32 %v1229, 2147483648
  %v1231 = vmul.f32 %v1230, 1.442695
  %v1232 = vpow.pop %v1231
  %v1233 = vadd.f32 %v1232, 1.0
  %v1234 = vrcp.pop %v1233
  %v1235 = vmul.f32 1.0, %v1234
  %v1236 = vadd.f32 %v1211, %v476
  %v1238 = vrot.slane %v1236, 2
  %v1240 = vmul.f32 %v1225, %v1238
  %v1241 = vadd.f32 %v469, %v1240
  %v1242 = vtanh.pop %v1241
  %v1243 = vsub.f32 1.0, %v1235
  %v1244 = vmul.f32 %v1243, %v1242
  %v1246 = vrot.slane %v1012, 1
  %v1248 = vmul.f32 %v1235, %v1246
  %v1249 = vadd.f32 %v1244, %v1248
  %v1250 = vpack.c.bf16 %v1128, %v1128
  %v1252 = vshrl.u32 %v1250, 16
  %1255 = vmatprep.subr.bf16.mxu0 %v611
  %1256 = vmatpush1.bf16.msra.mxu0 %v610
  %1257 = vmatprep.subr.bf16.mxu0 %v608
  %1258 = vmatpush1.bf16.msra.mxu0 %v607
  %1259 = vmatprep.subr.bf16.mxu0 %v605
  %1260 = vmatpush1.bf16.msra.mxu0 %v604
  %1261 = vmatprep.subr.bf16.mxu0 %v602
  %1262 = vmatpush1.bf16.msra.mxu0 %v601
  %1263 = vmatprep.subr.bf16.mxu0 %v599
  %1264 = vmatpush1.bf16.msra.mxu0 %v598
  %1265 = vmatprep.subr.bf16.mxu0 %v596
  %1266 = vmatpush1.bf16.msra.mxu0 %v595
  %1267 = vmatprep.subr.bf16.mxu0 %v593
  %1268 = vmatpush1.bf16.msra.mxu0 %v592
  %1269 = vmatprep.subr.bf16.mxu0 %v590
  %1270 = vmatpush1.bf16.msra.mxu0 %v589
  %1271 = vmatprep.subr.bf16.mxu0 0
  %1272 = vmatpush2.bf16.msra.mxu0 0
  %1273 = vmatprep.subr.bf16.mxu0 0
  %1274 = vmatpush2.bf16.msra.mxu0 0
  %1275 = vmatprep.subr.bf16.mxu0 0
  %1276 = vmatpush2.bf16.msra.mxu0 0
  %1277 = vmatprep.subr.bf16.mxu0 0
  %1278 = vmatpush2.bf16.msra.mxu0 0
  %1279 = vmatprep.subr.bf16.mxu0 0
  %1280 = vmatpush2.bf16.msra.mxu0 0
  %1281 = vmatprep.subr.bf16.mxu0 0
  %1282 = vmatpush2.bf16.msra.mxu0 0
  %1283 = vmatprep.subr.bf16.mxu0 0
  %1284 = vmatpush2.bf16.msra.mxu0 0
  %1285 = vmatprep.subr.bf16.mxu0 0
  %1286 = vmatpush2.bf16.msra.mxu0 0
  %1287 = vmatprep.mubr.bf16.mxu0 0
  %1288 = vmatmul.mubr.bf16.gmra.mxu0 %v1252
  %v1289 = vpop.f32.mrf.mxu0
  %v1290 = vadd.f32 0.0, %v1289
  %v1291 = vpop.f32.mrf.mxu0
  %v1292 = vadd.f32 0.0, %v1291
  %v1293 = vpop.f32.mrf.mxu0
  %v1294 = vpop.f32.mrf.mxu0
  %1295 = vdwg.mxu0
  %1296 = vmatprep.subr.bf16.mxu0 0
  %1297 = vmatpush1.bf16.msra.mxu0 %v612
  %1298 = vmatprep.subr.bf16.mxu0 0
  %1299 = vmatpush1.bf16.msra.mxu0 %v609
  %1300 = vmatprep.subr.bf16.mxu0 0
  %1301 = vmatpush1.bf16.msra.mxu0 %v606
  %1302 = vmatprep.subr.bf16.mxu0 0
  %1303 = vmatpush1.bf16.msra.mxu0 %v603
  %1304 = vmatprep.subr.bf16.mxu0 0
  %1305 = vmatpush1.bf16.msra.mxu0 %v600
  %1306 = vmatprep.subr.bf16.mxu0 0
  %1307 = vmatpush1.bf16.msra.mxu0 %v597
  %1308 = vmatprep.subr.bf16.mxu0 0
  %1309 = vmatpush1.bf16.msra.mxu0 %v594
  %1310 = vmatprep.subr.bf16.mxu0 0
  %1311 = vmatpush1.bf16.msra.mxu0 %v591
  %1312 = vmatprep.subr.bf16.mxu0 0
  %1313 = vmatpush2.bf16.msra.mxu0 0
  %1314 = vmatprep.subr.bf16.mxu0 0
  %1315 = vmatpush2.bf16.msra.mxu0 0
  %1316 = vmatprep.subr.bf16.mxu0 0
  %1317 = vmatpush2.bf16.msra.mxu0 0
  %1318 = vmatprep.subr.bf16.mxu0 0
  %1319 = vmatpush2.bf16.msra.mxu0 0
  %1320 = vmatprep.subr.bf16.mxu0 0
  %1321 = vmatpush2.bf16.msra.mxu0 0
  %1322 = vmatprep.subr.bf16.mxu0 0
  %1323 = vmatpush2.bf16.msra.mxu0 0
  %1324 = vmatprep.subr.bf16.mxu0 0
  %1325 = vmatpush2.bf16.msra.mxu0 0
  %1326 = vmatprep.subr.bf16.mxu0 0
  %1327 = vmatpush2.bf16.msra.mxu0 0
  %1328 = vmatprep.mubr.bf16.mxu0 0
  %1329 = vmatmul.mubr.bf16.gmra.mxu0 %v1252
  %v1330 = vpop.f32.mrf.mxu0
  %v1331 = vadd.f32 0.0, %v1330
  %v1332 = vpop.f32.mrf.mxu0
  %v1333 = vpop.f32.mrf.mxu0
  %v1334 = vpop.f32.mrf.mxu0
  %1335 = vdwg.mxu0
  %v1337 = vrot.slane %v1290, 6
  %v1339 = vadd.f32 %v229, %v1337
  %v1340 = vxor.u32 %v1339, 2147483648
  %v1341 = vmul.f32 %v1340, 1.442695
  %v1342 = vpow.pop %v1341
  %v1343 = vadd.f32 %v1342, 1.0
  %v1344 = vrcp.pop %v1343
  %v1345 = vmul.f32 1.0, %v1344
  %v1347 = vrot.slane %v1292, 6
  %v1349 = vadd.f32 %v231, %v1347
  %v1350 = vxor.u32 %v1349, 2147483648
  %v1351 = vmul.f32 %v1350, 1.442695
  %v1352 = vpow.pop %v1351
  %v1353 = vadd.f32 %v1352, 1.0
  %v1354 = vrcp.pop %v1353
  %v1355 = vmul.f32 1.0, %v1354
  %v1356 = vadd.f32 %v1331, %v474
  %v1358 = vrot.slane %v1356, 6
  %v1360 = vmul.f32 %v1345, %v1358
  %v1361 = vadd.f32 %v270, %v1360
  %v1362 = vtanh.pop %v1361
  %v1363 = vsub.f32 1.0, %v1355
  %v1364 = vmul.f32 %v1363, %v1362
  %v1366 = vrot.slane %v1128, 7
  %v1368 = vmul.f32 %v1355, %v1366
  %v1369 = vadd.f32 %v1364, %v1368
  %v1370 = vpack.c.bf16 %v1249, %v1249
  %v1372 = vrot.slane %v1370, 3
  %1374 = vmatprep.subr.bf16.mxu0 %v875
  %1375 = vmatpush1.bf16.msra.mxu0 %v874
  %1376 = vmatprep.subr.bf16.mxu0 %v872
  %1377 = vmatpush1.bf16.msra.mxu0 %v871
  %1378 = vmatprep.subr.bf16.mxu0 %v869
  %1379 = vmatpush1.bf16.msra.mxu0 %v868
  %1380 = vmatprep.subr.bf16.mxu0 %v866
  %1381 = vmatpush1.bf16.msra.mxu0 %v865
  %1382 = vmatprep.subr.bf16.mxu0 %v863
  %1383 = vmatpush1.bf16.msra.mxu0 %v862
  %1384 = vmatprep.subr.bf16.mxu0 %v860
  %1385 = vmatpush1.bf16.msra.mxu0 %v859
  %1386 = vmatprep.subr.bf16.mxu0 %v857
  %1387 = vmatpush1.bf16.msra.mxu0 %v856
  %1388 = vmatprep.subr.bf16.mxu0 %v854
  %1389 = vmatpush1.bf16.msra.mxu0 %v853
  %1390 = vmatprep.subr.bf16.mxu0 0
  %1391 = vmatpush2.bf16.msra.mxu0 0
  %1392 = vmatprep.subr.bf16.mxu0 0
  %1393 = vmatpush2.bf16.msra.mxu0 0
  %1394 = vmatprep.subr.bf16.mxu0 0
  %1395 = vmatpush2.bf16.msra.mxu0 0
  %1396 = vmatprep.subr.bf16.mxu0 0
  %1397 = vmatpush2.bf16.msra.mxu0 0
  %1398 = vmatprep.subr.bf16.mxu0 0
  %1399 = vmatpush2.bf16.msra.mxu0 0
  %1400 = vmatprep.subr.bf16.mxu0 0
  %1401 = vmatpush2.bf16.msra.mxu0 0
  %1402 = vmatprep.subr.bf16.mxu0 0
  %1403 = vmatpush2.bf16.msra.mxu0 0
  %1404 = vmatprep.subr.bf16.mxu0 0
  %1405 = vmatpush2.bf16.msra.mxu0 0
  %1406 = vmatprep.mubr.bf16.mxu0 0
  %1407 = vmatmul.mubr.bf16.gmra.mxu0 %v1372
  %v1408 = vpop.f32.mrf.mxu0
  %v1409 = vadd.f32 0.0, %v1408
  %v1410 = vpop.f32.mrf.mxu0
  %v1411 = vadd.f32 0.0, %v1410
  %v1412 = vpop.f32.mrf.mxu0
  %v1413 = vpop.f32.mrf.mxu0
  %1414 = vdwg.mxu0
  %1415 = vmatprep.subr.bf16.mxu0 0
  %1416 = vmatpush1.bf16.msra.mxu0 %v876
  %1417 = vmatprep.subr.bf16.mxu0 0
  %1418 = vmatpush1.bf16.msra.mxu0 %v873
  %1419 = vmatprep.subr.bf16.mxu0 0
  %1420 = vmatpush1.bf16.msra.mxu0 %v870
  %1421 = vmatprep.subr.bf16.mxu0 0
  %1422 = vmatpush1.bf16.msra.mxu0 %v867
  %1423 = vmatprep.subr.bf16.mxu0 0
  %1424 = vmatpush1.bf16.msra.mxu0 %v864
  %1425 = vmatprep.subr.bf16.mxu0 0
  %1426 = vmatpush1.bf16.msra.mxu0 %v861
  %1427 = vmatprep.subr.bf16.mxu0 0
  %1428 = vmatpush1.bf16.msra.mxu0 %v858
  %1429 = vmatprep.subr.bf16.mxu0 0
  %1430 = vmatpush1.bf16.msra.mxu0 %v855
  %1431 = vmatprep.subr.bf16.mxu0 0
  %1432 = vmatpush2.bf16.msra.mxu0 0
  %1433 = vmatprep.subr.bf16.mxu0 0
  %1434 = vmatpush2.bf16.msra.mxu0 0
  %1435 = vmatprep.subr.bf16.mxu0 0
  %1436 = vmatpush2.bf16.msra.mxu0 0
  %1437 = vmatprep.subr.bf16.mxu0 0
  %1438 = vmatpush2.bf16.msra.mxu0 0
  %1439 = vmatprep.subr.bf16.mxu0 0
  %1440 = vmatpush2.bf16.msra.mxu0 0
  %1441 = vmatprep.subr.bf16.mxu0 0
  %1442 = vmatpush2.bf16.msra.mxu0 0
  %1443 = vmatprep.subr.bf16.mxu0 0
  %1444 = vmatpush2.bf16.msra.mxu0 0
  %1445 = vmatprep.subr.bf16.mxu0 0
  %1446 = vmatpush2.bf16.msra.mxu0 0
  %1447 = vmatprep.mubr.bf16.mxu0 0
  %1448 = vmatmul.mubr.bf16.gmra.mxu0 %v1372
  %v1449 = vpop.f32.mrf.mxu0
  %v1450 = vadd.f32 0.0, %v1449
  %v1451 = vpop.f32.mrf.mxu0
  %v1452 = vpop.f32.mrf.mxu0
  %v1453 = vpop.f32.mrf.mxu0
  %1454 = vdwg.mxu0
  %v1456 = vrot.slane %v1409, 3
  %v1458 = vadd.f32 %v428, %v1456
  %v1459 = vxor.u32 %v1458, 2147483648
  %v1460 = vmul.f32 %v1459, 1.442695
  %v1461 = vpow.pop %v1460
  %v1462 = vadd.f32 %v1461, 1.0
  %v1463 = vrcp.pop %v1462
  %v1464 = vmul.f32 1.0, %v1463
  %v1466 = vrot.slane %v1411, 3
  %v1468 = vadd.f32 %v430, %v1466
  %v1469 = vxor.u32 %v1468, 2147483648
  %v1470 = vmul.f32 %v1469, 1.442695
  %v1471 = vpow.pop %v1470
  %v1472 = vadd.f32 %v1471, 1.0
  %v1473 = vrcp.pop %v1472
  %v1474 = vmul.f32 1.0, %v1473
  %v1475 = vadd.f32 %v1450, %v476
  %v1477 = vrot.slane %v1475, 3
  %v1479 = vmul.f32 %v1464, %v1477
  %v1480 = vadd.f32 %v469, %v1479
  %v1481 = vtanh.pop %v1480
  %v1482 = vsub.f32 1.0, %v1474
  %v1483 = vmul.f32 %v1482, %v1481
  %v1485 = vrot.slane %v1249, 1
  %v1487 = vmul.f32 %v1474, %v1485
  %v1488 = vadd.f32 %v1483, %v1487
  %v1489 = vpack.c.bf16 %v1369, %v1369
  %v1491 = vrot.slane %v1489, 1
  %1493 = vmatprep.subr.bf16.mxu0 %v611
  %1494 = vmatpush1.bf16.msra.mxu0 %v610
  %1495 = vmatprep.subr.bf16.mxu0 %v608
  %1496 = vmatpush1.bf16.msra.mxu0 %v607
  %1497 = vmatprep.subr.bf16.mxu0 %v605
  %1498 = vmatpush1.bf16.msra.mxu0 %v604
  %1499 = vmatprep.subr.bf16.mxu0 %v602
  %1500 = vmatpush1.bf16.msra.mxu0 %v601
  %1501 = vmatprep.subr.bf16.mxu0 %v599
  %1502 = vmatpush1.bf16.msra.mxu0 %v598
  %1503 = vmatprep.subr.bf16.mxu0 %v596
  %1504 = vmatpush1.bf16.msra.mxu0 %v595
  %1505 = vmatprep.subr.bf16.mxu0 %v593
  %1506 = vmatpush1.bf16.msra.mxu0 %v592
  %1507 = vmatprep.subr.bf16.mxu0 %v590
  %1508 = vmatpush1.bf16.msra.mxu0 %v589
  %1509 = vmatprep.subr.bf16.mxu0 0
  %1510 = vmatpush2.bf16.msra.mxu0 0
  %1511 = vmatprep.subr.bf16.mxu0 0
  %1512 = vmatpush2.bf16.msra.mxu0 0
  %1513 = vmatprep.subr.bf16.mxu0 0
  %1514 = vmatpush2.bf16.msra.mxu0 0
  %1515 = vmatprep.subr.bf16.mxu0 0
  %1516 = vmatpush2.bf16.msra.mxu0 0
  %1517 = vmatprep.subr.bf16.mxu0 0
  %1518 = vmatpush2.bf16.msra.mxu0 0
  %1519 = vmatprep.subr.bf16.mxu0 0
  %1520 = vmatpush2.bf16.msra.mxu0 0
  %1521 = vmatprep.subr.bf16.mxu0 0
  %1522 = vmatpush2.bf16.msra.mxu0 0
  %1523 = vmatprep.subr.bf16.mxu0 0
  %1524 = vmatpush2.bf16.msra.mxu0 0
  %1525 = vmatprep.mubr.bf16.mxu0 0
  %1526 = vmatmul.mubr.bf16.gmra.mxu0 %v1491
  %v1527 = vpop.f32.mrf.mxu0
  %v1528 = vadd.f32 0.0, %v1527
  %v1529 = vpop.f32.mrf.mxu0
  %v1530 = vadd.f32 0.0, %v1529
  %v1531 = vpop.f32.mrf.mxu0
  %v1532 = vpop.f32.mrf.mxu0
  %1533 = vdwg.mxu0
  %1534 = vmatprep.subr.bf16.mxu0 0
  %1535 = vmatpush1.bf16.msra.mxu0 %v612
  %1536 = vmatprep.subr.bf16.mxu0 0
  %1537 = vmatpush1.bf16.msra.mxu0 %v609
  %1538 = vmatprep.subr.bf16.mxu0 0
  %1539 = vmatpush1.bf16.msra.mxu0 %v606
  %1540 = vmatprep.subr.bf16.mxu0 0
  %1541 = vmatpush1.bf16.msra.mxu0 %v603
  %1542 = vmatprep.subr.bf16.mxu0 0
  %1543 = vmatpush1.bf16.msra.mxu0 %v600
  %1544 = vmatprep.subr.bf16.mxu0 0
  %1545 = vmatpush1.bf16.msra.mxu0 %v597
  %1546 = vmatprep.subr.bf16.mxu0 0
  %1547 = vmatpush1.bf16.msra.mxu0 %v594
  %1548 = vmatprep.subr.bf16.mxu0 0
  %1549 = vmatpush1.bf16.msra.mxu0 %v591
  %1550 = vmatprep.subr.bf16.mxu0 0
  %1551 = vmatpush2.bf16.msra.mxu0 0
  %1552 = vmatprep.subr.bf16.mxu0 0
  %1553 = vmatpush2.bf16.msra.mxu0 0
  %1554 = vmatprep.subr.bf16.mxu0 0
  %1555 = vmatpush2.bf16.msra.mxu0 0
  %1556 = vmatprep.subr.bf16.mxu0 0
  %1557 = vmatpush2.bf16.msra.mxu0 0
  %1558 = vmatprep.subr.bf16.mxu0 0
  %1559 = vmatpush2.bf16.msra.mxu0 0
  %1560 = vmatprep.subr.bf16.mxu0 0
  %1561 = vmatpush2.bf16.msra.mxu0 0
  %1562 = vmatprep.subr.bf16.mxu0 0
  %1563 = vmatpush2.bf16.msra.mxu0 0
  %1564 = vmatprep.subr.bf16.mxu0 0
  %1565 = vmatpush2.bf16.msra.mxu0 0
  %1566 = vmatprep.mubr.bf16.mxu0 0
  %1567 = vmatmul.mubr.bf16.gmra.mxu0 %v1491
  %v1568 = vpop.f32.mrf.mxu0
  %v1569 = vadd.f32 0.0, %v1568
  %v1570 = vpop.f32.mrf.mxu0
  %v1571 = vpop.f32.mrf.mxu0
  %v1572 = vpop.f32.mrf.mxu0
  %1573 = vdwg.mxu0
  %v1575 = vrot.slane %v1528, 5
  %v1577 = vadd.f32 %v229, %v1575
  %v1578 = vxor.u32 %v1577, 2147483648
  %v1579 = vmul.f32 %v1578, 1.442695
  %v1580 = vpow.pop %v1579
  %v1581 = vadd.f32 %v1580, 1.0
  %v1582 = vrcp.pop %v1581
  %v1583 = vmul.f32 1.0, %v1582
  %v1585 = vrot.slane %v1530, 5
  %v1587 = vadd.f32 %v231, %v1585
  %v1588 = vxor.u32 %v1587, 2147483648
  %v1589 = vmul.f32 %v1588, 1.442695
  %v1590 = vpow.pop %v1589
  %v1591 = vadd.f32 %v1590, 1.0
  %v1592 = vrcp.pop %v1591
  %v1593 = vmul.f32 1.0, %v1592
  %v1594 = vadd.f32 %v1569, %v474
  %v1596 = vrot.slane %v1594, 5
  %v1598 = vmul.f32 %v1583, %v1596
  %v1599 = vadd.f32 %v270, %v1598
  %v1600 = vtanh.pop %v1599
  %v1601 = vsub.f32 1.0, %v1593
  %v1602 = vmul.f32 %v1601, %v1600
  %v1604 = vrot.slane %v1369, 7
  %v1606 = vmul.f32 %v1593, %v1604
  %v1607 = vadd.f32 %v1602, %v1606
  %v1608 = vpack.c.bf16 %v1488, %v1488
  %v1610 = vshrl.u32 %v1608, 16
  %v1612 = vrot.slane %v1610, 2
  %1614 = vmatprep.subr.bf16.mxu0 %v875
  %1615 = vmatpush1.bf16.msra.mxu0 %v874
  %1616 = vmatprep.subr.bf16.mxu0 %v872
  %1617 = vmatpush1.bf16.msra.mxu0 %v871
  %1618 = vmatprep.subr.bf16.mxu0 %v869
  %1619 = vmatpush1.bf16.msra.mxu0 %v868
  %1620 = vmatprep.subr.bf16.mxu0 %v866
  %1621 = vmatpush1.bf16.msra.mxu0 %v865
  %1622 = vmatprep.subr.bf16.mxu0 %v863
  %1623 = vmatpush1.bf16.msra.mxu0 %v862
  %1624 = vmatprep.subr.bf16.mxu0 %v860
  %1625 = vmatpush1.bf16.msra.mxu0 %v859
  %1626 = vmatprep.subr.bf16.mxu0 %v857
  %1627 = vmatpush1.bf16.msra.mxu0 %v856
  %1628 = vmatprep.subr.bf16.mxu0 %v854
  %1629 = vmatpush1.bf16.msra.mxu0 %v853
  %1630 = vmatprep.subr.bf16.mxu0 0
  %1631 = vmatpush2.bf16.msra.mxu0 0
  %1632 = vmatprep.subr.bf16.mxu0 0
  %1633 = vmatpush2.bf16.msra.mxu0 0
  %1634 = vmatprep.subr.bf16.mxu0 0
  %1635 = vmatpush2.bf16.msra.mxu0 0
  %1636 = vmatprep.subr.bf16.mxu0 0
  %1637 = vmatpush2.bf16.msra.mxu0 0
  %1638 = vmatprep.subr.bf16.mxu0 0
  %1639 = vmatpush2.bf16.msra.mxu0 0
  %1640 = vmatprep.subr.bf16.mxu0 0
  %1641 = vmatpush2.bf16.msra.mxu0 0
  %1642 = vmatprep.subr.bf16.mxu0 0
  %1643 = vmatpush2.bf16.msra.mxu0 0
  %1644 = vmatprep.subr.bf16.mxu0 0
  %1645 = vmatpush2.bf16.msra.mxu0 0
  %1646 = vmatprep.mubr.bf16.mxu0 0
  %1647 = vmatmul.mubr.bf16.gmra.mxu0 %v1612
  %v1648 = vpop.f32.mrf.mxu0
  %v1649 = vadd.f32 0.0, %v1648
  %v1650 = vpop.f32.mrf.mxu0
  %v1651 = vadd.f32 0.0, %v1650
  %v1652 = vpop.f32.mrf.mxu0
  %v1653 = vpop.f32.mrf.mxu0
  %1654 = vdwg.mxu0
  %1655 = vmatprep.subr.bf16.mxu0 0
  %1656 = vmatpush1.bf16.msra.mxu0 %v876
  %1657 = vmatprep.subr.bf16.mxu0 0
  %1658 = vmatpush1.bf16.msra.mxu0 %v873
  %1659 = vmatprep.subr.bf16.mxu0 0
  %1660 = vmatpush1.bf16.msra.mxu0 %v870
  %1661 = vmatprep.subr.bf16.mxu0 0
  %1662 = vmatpush1.bf16.msra.mxu0 %v867
  %1663 = vmatprep.subr.bf16.mxu0 0
  %1664 = vmatpush1.bf16.msra.mxu0 %v864
  %1665 = vmatprep.subr.bf16.mxu0 0
  %1666 = vmatpush1.bf16.msra.mxu0 %v861
  %1667 = vmatprep.subr.bf16.mxu0 0
  %1668 = vmatpush1.bf16.msra.mxu0 %v858
  %1669 = vmatprep.subr.bf16.mxu0 0
  %1670 = vmatpush1.bf16.msra.mxu0 %v855
  %1671 = vmatprep.subr.bf16.mxu0 0
  %1672 = vmatpush2.bf16.msra.mxu0 0
  %1673 = vmatprep.subr.bf16.mxu0 0
  %1674 = vmatpush2.bf16.msra.mxu0 0
  %1675 = vmatprep.subr.bf16.mxu0 0
  %1676 = vmatpush2.bf16.msra.mxu0 0
  %1677 = vmatprep.subr.bf16.mxu0 0
  %1678 = vmatpush2.bf16.msra.mxu0 0
  %1679 = vmatprep.subr.bf16.mxu0 0
  %1680 = vmatpush2.bf16.msra.mxu0 0
  %1681 = vmatprep.subr.bf16.mxu0 0
  %1682 = vmatpush2.bf16.msra.mxu0 0
  %1683 = vmatprep.subr.bf16.mxu0 0
  %1684 = vmatpush2.bf16.msra.mxu0 0
  %1685 = vmatprep.subr.bf16.mxu0 0
  %1686 = vmatpush2.bf16.msra.mxu0 0
  %1687 = vmatprep.mubr.bf16.mxu0 0
  %1688 = vmatmul.mubr.bf16.gmra.mxu0 %v1612
  %v1689 = vpop.f32.mrf.mxu0
  %v1690 = vadd.f32 0.0, %v1689
  %v1691 = vpop.f32.mrf.mxu0
  %v1692 = vpop.f32.mrf.mxu0
  %v1693 = vpop.f32.mrf.mxu0
  %1694 = vdwg.mxu0
  %v1696 = vrot.slane %v1649, 4
  %v1698 = vadd.f32 %v428, %v1696
  %v1699 = vxor.u32 %v1698, 2147483648
  %v1700 = vmul.f32 %v1699, 1.442695
  %v1701 = vpow.pop %v1700
  %v1702 = vadd.f32 %v1701, 1.0
  %v1703 = vrcp.pop %v1702
  %v1704 = vmul.f32 1.0, %v1703
  %v1706 = vrot.slane %v1651, 4
  %v1708 = vadd.f32 %v430, %v1706
  %v1709 = vxor.u32 %v1708, 2147483648
  %v1710 = vmul.f32 %v1709, 1.442695
  %v1711 = vpow.pop %v1710
  %v1712 = vadd.f32 %v1711, 1.0
  %v1713 = vrcp.pop %v1712
  %v1714 = vmul.f32 1.0, %v1713
  %v1715 = vadd.f32 %v1690, %v476
  %v1717 = vrot.slane %v1715, 4
  %v1719 = vmul.f32 %v1704, %v1717
  %v1720 = vadd.f32 %v469, %v1719
  %v1721 = vtanh.pop %v1720
  %v1722 = vsub.f32 1.0, %v1714
  %v1723 = vmul.f32 %v1722, %v1721
  %v1725 = vrot.slane %v1488, 1
  %v1727 = vmul.f32 %v1714, %v1725
  %v1728 = vadd.f32 %v1723, %v1727
  %v1729 = vpack.c.bf16 %v1607, %v1607
  %v1731 = vshrl.u32 %v1729, 16
  %v1733 = vrot.slane %v1731, 1
  %1735 = vmatprep.subr.bf16.mxu0 %v611
  %1736 = vmatpush1.bf16.msra.mxu0 %v610
  %1737 = vmatprep.subr.bf16.mxu0 %v608
  %1738 = vmatpush1.bf16.msra.mxu0 %v607
  %1739 = vmatprep.subr.bf16.mxu0 %v605
  %1740 = vmatpush1.bf16.msra.mxu0 %v604
  %1741 = vmatprep.subr.bf16.mxu0 %v602
  %1742 = vmatpush1.bf16.msra.mxu0 %v601
  %1743 = vmatprep.subr.bf16.mxu0 %v599
  %1744 = vmatpush1.bf16.msra.mxu0 %v598
  %1745 = vmatprep.subr.bf16.mxu0 %v596
  %1746 = vmatpush1.bf16.msra.mxu0 %v595
  %1747 = vmatprep.subr.bf16.mxu0 %v593
  %1748 = vmatpush1.bf16.msra.mxu0 %v592
  %1749 = vmatprep.subr.bf16.mxu0 %v590
  %1750 = vmatpush1.bf16.msra.mxu0 %v589
  %1751 = vmatprep.subr.bf16.mxu0 0
  %1752 = vmatpush2.bf16.msra.mxu0 0
  %1753 = vmatprep.subr.bf16.mxu0 0
  %1754 = vmatpush2.bf16.msra.mxu0 0
  %1755 = vmatprep.subr.bf16.mxu0 0
  %1756 = vmatpush2.bf16.msra.mxu0 0
  %1757 = vmatprep.subr.bf16.mxu0 0
  %1758 = vmatpush2.bf16.msra.mxu0 0
  %1759 = vmatprep.subr.bf16.mxu0 0
  %1760 = vmatpush2.bf16.msra.mxu0 0
  %1761 = vmatprep.subr.bf16.mxu0 0
  %1762 = vmatpush2.bf16.msra.mxu0 0
  %1763 = vmatprep.subr.bf16.mxu0 0
  %1764 = vmatpush2.bf16.msra.mxu0 0
  %1765 = vmatprep.subr.bf16.mxu0 0
  %1766 = vmatpush2.bf16.msra.mxu0 0
  %1767 = vmatprep.mubr.bf16.mxu0 0
  %1768 = vmatmul.mubr.bf16.gmra.mxu0 %v1733
  %v1769 = vpop.f32.mrf.mxu0
  %v1770 = vadd.f32 0.0, %v1769
  %v1771 = vpop.f32.mrf.mxu0
  %v1772 = vadd.f32 0.0, %v1771
  %v1773 = vpop.f32.mrf.mxu0
  %v1774 = vpop.f32.mrf.mxu0
  %1775 = vdwg.mxu0
  %1776 = vmatprep.subr.bf16.mxu0 0
  %1777 = vmatpush1.bf16.msra.mxu0 %v612
  %1778 = vmatprep.subr.bf16.mxu0 0
  %1779 = vmatpush1.bf16.msra.mxu0 %v609
  %1780 = vmatprep.subr.bf16.mxu0 0
  %1781 = vmatpush1.bf16.msra.mxu0 %v606
  %1782 = vmatprep.subr.bf16.mxu0 0
  %1783 = vmatpush1.bf16.msra.mxu0 %v603
  %1784 = vmatprep.subr.bf16.mxu0 0
  %1785 = vmatpush1.bf16.msra.mxu0 %v600
  %1786 = vmatprep.subr.bf16.mxu0 0
  %1787 = vmatpush1.bf16.msra.mxu0 %v597
  %1788 = vmatprep.subr.bf16.mxu0 0
  %1789 = vmatpush1.bf16.msra.mxu0 %v594
  %1790 = vmatprep.subr.bf16.mxu0 0
  %1791 = vmatpush1.bf16.msra.mxu0 %v591
  %1792 = vmatprep.subr.bf16.mxu0 0
  %1793 = vmatpush2.bf16.msra.mxu0 0
  %1794 = vmatprep.subr.bf16.mxu0 0
  %1795 = vmatpush2.bf16.msra.mxu0 0
  %1796 = vmatprep.subr.bf16.mxu0 0
  %1797 = vmatpush2.bf16.msra.mxu0 0
  %1798 = vmatprep.subr.bf16.mxu0 0
  %1799 = vmatpush2.bf16.msra.mxu0 0
  %1800 = vmatprep.subr.bf16.mxu0 0
  %1801 = vmatpush2.bf16.msra.mxu0 0
  %1802 = vmatprep.subr.bf16.mxu0 0
  %1803 = vmatpush2.bf16.msra.mxu0 0
  %1804 = vmatprep.subr.bf16.mxu0 0
  %1805 = vmatpush2.bf16.msra.mxu0 0
  %1806 = vmatprep.subr.bf16.mxu0 0
  %1807 = vmatpush2.bf16.msra.mxu0 0
  %1808 = vmatprep.mubr.bf16.mxu0 0
  %1809 = vmatmul.mubr.bf16.gmra.mxu0 %v1733
  %v1810 = vpop.f32.mrf.mxu0
  %v1811 = vadd.f32 0.0, %v1810
  %v1812 = vpop.f32.mrf.mxu0
  %v1813 = vpop.f32.mrf.mxu0
  %v1814 = vpop.f32.mrf.mxu0
  %1815 = vdwg.mxu0
  %v1817 = vrot.slane %v1770, 4
  %v1819 = vadd.f32 %v229, %v1817
  %v1820 = vxor.u32 %v1819, 2147483648
  %v1821 = vmul.f32 %v1820, 1.442695
  %v1822 = vpow.pop %v1821
  %v1823 = vadd.f32 %v1822, 1.0
  %v1824 = vrcp.pop %v1823
  %v1825 = vmul.f32 1.0, %v1824
  %v1827 = vrot.slane %v1772, 4
  %v1829 = vadd.f32 %v231, %v1827
  %v1830 = vxor.u32 %v1829, 2147483648
  %v1831 = vmul.f32 %v1830, 1.442695
  %v1832 = vpow.pop %v1831
  %v1833 = vadd.f32 %v1832, 1.0
  %v1834 = vrcp.pop %v1833
  %v1835 = vmul.f32 1.0, %v1834
  %v1836 = vadd.f32 %v1811, %v474
  %v1838 = vrot.slane %v1836, 4
  %v1840 = vmul.f32 %v1825, %v1838
  %v1841 = vadd.f32 %v270, %v1840
  %v1842 = vtanh.pop %v1841
  %v1843 = vsub.f32 1.0, %v1835
  %v1844 = vmul.f32 %v1843, %v1842
  %v1846 = vrot.slane %v1607, 7
  %v1848 = vmul.f32 %v1835, %v1846
  %v1849 = vadd.f32 %v1844, %v1848
  %v1850 = vpack.c.bf16 %v1728, %v1728
  %v1852 = vrot.slane %v1850, 2
  %1854 = vmatprep.subr.bf16.mxu0 %v875
  %1855 = vmatpush1.bf16.msra.mxu0 %v874
  %1856 = vmatprep.subr.bf16.mxu0 %v872
  %1857 = vmatpush1.bf16.msra.mxu0 %v871
  %1858 = vmatprep.subr.bf16.mxu0 %v869
  %1859 = vmatpush1.bf16.msra.mxu0 %v868
  %1860 = vmatprep.subr.bf16.mxu0 %v866
  %1861 = vmatpush1.bf16.msra.mxu0 %v865
  %1862 = vmatprep.subr.bf16.mxu0 %v863
  %1863 = vmatpush1.bf16.msra.mxu0 %v862
  %1864 = vmatprep.subr.bf16.mxu0 %v860
  %1865 = vmatpush1.bf16.msra.mxu0 %v859
  %1866 = vmatprep.subr.bf16.mxu0 %v857
  %1867 = vmatpush1.bf16.msra.mxu0 %v856
  %1868 = vmatprep.subr.bf16.mxu0 %v854
  %1869 = vmatpush1.bf16.msra.mxu0 %v853
  %1870 = vmatprep.subr.bf16.mxu0 0
  %1871 = vmatpush2.bf16.msra.mxu0 0
  %1872 = vmatprep.subr.bf16.mxu0 0
  %1873 = vmatpush2.bf16.msra.mxu0 0
  %1874 = vmatprep.subr.bf16.mxu0 0
  %1875 = vmatpush2.bf16.msra.mxu0 0
  %1876 = vmatprep.subr.bf16.mxu0 0
  %1877 = vmatpush2.bf16.msra.mxu0 0
  %1878 = vmatprep.subr.bf16.mxu0 0
  %1879 = vmatpush2.bf16.msra.mxu0 0
  %1880 = vmatprep.subr.bf16.mxu0 0
  %1881 = vmatpush2.bf16.msra.mxu0 0
  %1882 = vmatprep.subr.bf16.mxu0 0
  %1883 = vmatpush2.bf16.msra.mxu0 0
  %1884 = vmatprep.subr.bf16.mxu0 0
  %1885 = vmatpush2.bf16.msra.mxu0 0
  %1886 = vmatprep.mubr.bf16.mxu0 0
  %1887 = vmatmul.mubr.bf16.gmra.mxu0 %v1852
  %v1888 = vpop.f32.mrf.mxu0
  %v1889 = vadd.f32 0.0, %v1888
  %v1890 = vpop.f32.mrf.mxu0
  %v1891 = vadd.f32 0.0, %v1890
  %v1892 = vpop.f32.mrf.mxu0
  %v1893 = vpop.f32.mrf.mxu0
  %1894 = vdwg.mxu0
  %1895 = vmatprep.subr.bf16.mxu0 0
  %1896 = vmatpush1.bf16.msra.mxu0 %v876
  %1897 = vmatprep.subr.bf16.mxu0 0
  %1898 = vmatpush1.bf16.msra.mxu0 %v873
  %1899 = vmatprep.subr.bf16.mxu0 0
  %1900 = vmatpush1.bf16.msra.mxu0 %v870
  %1901 = vmatprep.subr.bf16.mxu0 0
  %1902 = vmatpush1.bf16.msra.mxu0 %v867
  %1903 = vmatprep.subr.bf16.mxu0 0
  %1904 = vmatpush1.bf16.msra.mxu0 %v864
  %1905 = vmatprep.subr.bf16.mxu0 0
  %1906 = vmatpush1.bf16.msra.mxu0 %v861
  %1907 = vmatprep.subr.bf16.mxu0 0
  %1908 = vmatpush1.bf16.msra.mxu0 %v858
  %1909 = vmatprep.subr.bf16.mxu0 0
  %1910 = vmatpush1.bf16.msra.mxu0 %v855
  %1911 = vmatprep.subr.bf16.mxu0 0
  %1912 = vmatpush2.bf16.msra.mxu0 0
  %1913 = vmatprep.subr.bf16.mxu0 0
  %1914 = vmatpush2.bf16.msra.mxu0 0
  %1915 = vmatprep.subr.bf16.mxu0 0
  %1916 = vmatpush2.bf16.msra.mxu0 0
  %1917 = vmatprep.subr.bf16.mxu0 0
  %1918 = vmatpush2.bf16.msra.mxu0 0
  %1919 = vmatprep.subr.bf16.mxu0 0
  %1920 = vmatpush2.bf16.msra.mxu0 0
  %1921 = vmatprep.subr.bf16.mxu0 0
  %1922 = vmatpush2.bf16.msra.mxu0 0
  %1923 = vmatprep.subr.bf16.mxu0 0
  %1924 = vmatpush2.bf16.msra.mxu0 0
  %1925 = vmatprep.subr.bf16.mxu0 0
  %1926 = vmatpush2.bf16.msra.mxu0 0
  %1927 = vmatprep.mubr.bf16.mxu0 0
  %1928 = vmatmul.mubr.bf16.gmra.mxu0 %v1852
  %v1929 = vpop.f32.mrf.mxu0
  %v1930 = vadd.f32 0.0, %v1929
  %v1931 = vpop.f32.mrf.mxu0
  %v1932 = vpop.f32.mrf.mxu0
  %v1933 = vpop.f32.mrf.mxu0
  %1934 = vdwg.mxu0
  %v1936 = vrot.slane %v1889, 5
  %v1938 = vadd.f32 %v428, %v1936
  %v1939 = vxor.u32 %v1938, 2147483648
  %v1940 = vmul.f32 %v1939, 1.442695
  %v1941 = vpow.pop %v1940
  %v1942 = vadd.f32 %v1941, 1.0
  %v1943 = vrcp.pop %v1942
  %v1944 = vmul.f32 1.0, %v1943
  %v1946 = vrot.slane %v1891, 5
  %v1948 = vadd.f32 %v430, %v1946
  %v1949 = vxor.u32 %v1948, 2147483648
  %v1950 = vmul.f32 %v1949, 1.442695
  %v1951 = vpow.pop %v1950
  %v1952 = vadd.f32 %v1951, 1.0
  %v1953 = vrcp.pop %v1952
  %v1954 = vmul.f32 1.0, %v1953
  %v1955 = vadd.f32 %v1930, %v476
  %v1957 = vrot.slane %v1955, 5
  %v1959 = vmul.f32 %v1944, %v1957
  %v1960 = vadd.f32 %v469, %v1959
  %v1961 = vtanh.pop %v1960
  %v1962 = vsub.f32 1.0, %v1954
  %v1963 = vmul.f32 %v1962, %v1961
  %v1965 = vrot.slane %v1728, 1
  %v1967 = vmul.f32 %v1954, %v1965
  %v1968 = vadd.f32 %v1963, %v1967
  %v1969 = vpack.c.bf16 %v1849, %v1849
  %v1971 = vrot.slane %v1969, 2
  %1973 = vmatprep.subr.bf16.mxu0 %v611
  %1974 = vmatpush1.bf16.msra.mxu0 %v610
  %1975 = vmatprep.subr.bf16.mxu0 %v608
  %1976 = vmatpush1.bf16.msra.mxu0 %v607
  %1977 = vmatprep.subr.bf16.mxu0 %v605
  %1978 = vmatpush1.bf16.msra.mxu0 %v604
  %1979 = vmatprep.subr.bf16.mxu0 %v602
  %1980 = vmatpush1.bf16.msra.mxu0 %v601
  %1981 = vmatprep.subr.bf16.mxu0 %v599
  %1982 = vmatpush1.bf16.msra.mxu0 %v598
  %1983 = vmatprep.subr.bf16.mxu0 %v596
  %1984 = vmatpush1.bf16.msra.mxu0 %v595
  %1985 = vmatprep.subr.bf16.mxu0 %v593
  %1986 = vmatpush1.bf16.msra.mxu0 %v592
  %1987 = vmatprep.subr.bf16.mxu0 %v590
  %1988 = vmatpush1.bf16.msra.mxu0 %v589
  %1989 = vmatprep.subr.bf16.mxu0 0
  %1990 = vmatpush2.bf16.msra.mxu0 0
  %1991 = vmatprep.subr.bf16.mxu0 0
  %1992 = vmatpush2.bf16.msra.mxu0 0
  %1993 = vmatprep.subr.bf16.mxu0 0
  %1994 = vmatpush2.bf16.msra.mxu0 0
  %1995 = vmatprep.subr.bf16.mxu0 0
  %1996 = vmatpush2.bf16.msra.mxu0 0
  %1997 = vmatprep.subr.bf16.mxu0 0
  %1998 = vmatpush2.bf16.msra.mxu0 0
  %1999 = vmatprep.subr.bf16.mxu0 0
  %2000 = vmatpush2.bf16.msra.mxu0 0
  %2001 = vmatprep.subr.bf16.mxu0 0
  %2002 = vmatpush2.bf16.msra.mxu0 0
  %2003 = vmatprep.subr.bf16.mxu0 0
  %2004 = vmatpush2.bf16.msra.mxu0 0
  %2005 = vmatprep.mubr.bf16.mxu0 0
  %2006 = vmatmul.mubr.bf16.gmra.mxu0 %v1971
  %v2007 = vpop.f32.mrf.mxu0
  %v2008 = vadd.f32 0.0, %v2007
  %v2009 = vpop.f32.mrf.mxu0
  %v2010 = vadd.f32 0.0, %v2009
  %v2011 = vpop.f32.mrf.mxu0
  %v2012 = vpop.f32.mrf.mxu0
  %2013 = vdwg.mxu0
  %2014 = vmatprep.subr.bf16.mxu0 0
  %2015 = vmatpush1.bf16.msra.mxu0 %v612
  %2016 = vmatprep.subr.bf16.mxu0 0
  %2017 = vmatpush1.bf16.msra.mxu0 %v609
  %2018 = vmatprep.subr.bf16.mxu0 0
  %2019 = vmatpush1.bf16.msra.mxu0 %v606
  %2020 = vmatprep.subr.bf16.mxu0 0
  %2021 = vmatpush1.bf16.msra.mxu0 %v603
  %2022 = vmatprep.subr.bf16.mxu0 0
  %2023 = vmatpush1.bf16.msra.mxu0 %v600
  %2024 = vmatprep.subr.bf16.mxu0 0
  %2025 = vmatpush1.bf16.msra.mxu0 %v597
  %2026 = vmatprep.subr.bf16.mxu0 0
  %2027 = vmatpush1.bf16.msra.mxu0 %v594
  %2028 = vmatprep.subr.bf16.mxu0 0
  %2029 = vmatpush1.bf16.msra.mxu0 %v591
  %2030 = vmatprep.subr.bf16.mxu0 0
  %2031 = vmatpush2.bf16.msra.mxu0 0
  %2032 = vmatprep.subr.bf16.mxu0 0
  %2033 = vmatpush2.bf16.msra.mxu0 0
  %2034 = vmatprep.subr.bf16.mxu0 0
  %2035 = vmatpush2.bf16.msra.mxu0 0
  %2036 = vmatprep.subr.bf16.mxu0 0
  %2037 = vmatpush2.bf16.msra.mxu0 0
  %2038 = vmatprep.subr.bf16.mxu0 0
  %2039 = vmatpush2.bf16.msra.mxu0 0
  %2040 = vmatprep.subr.bf16.mxu0 0
  %2041 = vmatpush2.bf16.msra.mxu0 0
  %2042 = vmatprep.subr.bf16.mxu0 0
  %2043 = vmatpush2.bf16.msra.mxu0 0
  %2044 = vmatprep.subr.bf16.mxu0 0
  %2045 = vmatpush2.bf16.msra.mxu0 0
  %2046 = vmatprep.mubr.bf16.mxu0 0
  %2047 = vmatmul.mubr.bf16.gmra.mxu0 %v1971
  %v2048 = vpop.f32.mrf.mxu0
  %v2049 = vadd.f32 0.0, %v2048
  %v2050 = vpop.f32.mrf.mxu0
  %v2051 = vpop.f32.mrf.mxu0
  %v2052 = vpop.f32.mrf.mxu0
  %2053 = vdwg.mxu0
  %v2055 = vrot.slane %v2008, 3
  %v2057 = vadd.f32 %v229, %v2055
  %v2058 = vxor.u32 %v2057, 2147483648
  %v2059 = vmul.f32 %v2058, 1.442695
  %v2060 = vpow.pop %v2059
  %v2061 = vadd.f32 %v2060, 1.0
  %v2062 = vrcp.pop %v2061
  %v2063 = vmul.f32 1.0, %v2062
  %v2065 = vrot.slane %v2010, 3
  %v2067 = vadd.f32 %v231, %v2065
  %v2068 = vxor.u32 %v2067, 2147483648
  %v2069 = vmul.f32 %v2068, 1.442695
  %v2070 = vpow.pop %v2069
  %v2071 = vadd.f32 %v2070, 1.0
  %v2072 = vrcp.pop %v2071
  %v2073 = vmul.f32 1.0, %v2072
  %v2074 = vadd.f32 %v2049, %v474
  %v2076 = vrot.slane %v2074, 3
  %v2078 = vmul.f32 %v2063, %v2076
  %v2079 = vadd.f32 %v270, %v2078
  %v2080 = vtanh.pop %v2079
  %v2081 = vsub.f32 1.0, %v2073
  %v2082 = vmul.f32 %v2081, %v2080
  %v2084 = vrot.slane %v1849, 7
  %v2086 = vmul.f32 %v2073, %v2084
  %v2087 = vadd.f32 %v2082, %v2086
  %v2088 = vpack.c.bf16 %v1968, %v1968
  %v2090 = vshrl.u32 %v2088, 16
  %v2092 = vrot.slane %v2090, 1
  %2094 = vmatprep.subr.bf16.mxu0 %v875
  %2095 = vmatpush1.bf16.msra.mxu0 %v874
  %2096 = vmatprep.subr.bf16.mxu0 %v872
  %2097 = vmatpush1.bf16.msra.mxu0 %v871
  %2098 = vmatprep.subr.bf16.mxu0 %v869
  %2099 = vmatpush1.bf16.msra.mxu0 %v868
  %2100 = vmatprep.subr.bf16.mxu0 %v866
  %2101 = vmatpush1.bf16.msra.mxu0 %v865
  %2102 = vmatprep.subr.bf16.mxu0 %v863
  %2103 = vmatpush1.bf16.msra.mxu0 %v862
  %2104 = vmatprep.subr.bf16.mxu0 %v860
  %2105 = vmatpush1.bf16.msra.mxu0 %v859
  %2106 = vmatprep.subr.bf16.mxu0 %v857
  %2107 = vmatpush1.bf16.msra.mxu0 %v856
  %2108 = vmatprep.subr.bf16.mxu0 %v854
  %2109 = vmatpush1.bf16.msra.mxu0 %v853
  %2110 = vmatprep.subr.bf16.mxu0 0
  %2111 = vmatpush2.bf16.msra.mxu0 0
  %2112 = vmatprep.subr.bf16.mxu0 0
  %2113 = vmatpush2.bf16.msra.mxu0 0
  %2114 = vmatprep.subr.bf16.mxu0 0
  %2115 = vmatpush2.bf16.msra.mxu0 0
  %2116 = vmatprep.subr.bf16.mxu0 0
  %2117 = vmatpush2.bf16.msra.mxu0 0
  %2118 = vmatprep.subr.bf16.mxu0 0
  %2119 = vmatpush2.bf16.msra.mxu0 0
  %2120 = vmatprep.subr.bf16.mxu0 0
  %2121 = vmatpush2.bf16.msra.mxu0 0
  %2122 = vmatprep.subr.bf16.mxu0 0
  %2123 = vmatpush2.bf16.msra.mxu0 0
  %2124 = vmatprep.subr.bf16.mxu0 0
  %2125 = vmatpush2.bf16.msra.mxu0 0
  %2126 = vmatprep.mubr.bf16.mxu0 0
  %2127 = vmatmul.mubr.bf16.gmra.mxu0 %v2092
  %v2128 = vpop.f32.mrf.mxu0
  %v2129 = vadd.f32 0.0, %v2128
  %v2130 = vpop.f32.mrf.mxu0
  %v2131 = vadd.f32 0.0, %v2130
  %v2132 = vpop.f32.mrf.mxu0
  %v2133 = vpop.f32.mrf.mxu0
  %2134 = vdwg.mxu0
  %2135 = vmatprep.subr.bf16.mxu0 0
  %2136 = vmatpush1.bf16.msra.mxu0 %v876
  %2137 = vmatprep.subr.bf16.mxu0 0
  %2138 = vmatpush1.bf16.msra.mxu0 %v873
  %2139 = vmatprep.subr.bf16.mxu0 0
  %2140 = vmatpush1.bf16.msra.mxu0 %v870
  %2141 = vmatprep.subr.bf16.mxu0 0
  %2142 = vmatpush1.bf16.msra.mxu0 %v867
  %2143 = vmatprep.subr.bf16.mxu0 0
  %2144 = vmatpush1.bf16.msra.mxu0 %v864
  %2145 = vmatprep.subr.bf16.mxu0 0
  %2146 = vmatpush1.bf16.msra.mxu0 %v861
  %2147 = vmatprep.subr.bf16.mxu0 0
  %2148 = vmatpush1.bf16.msra.mxu0 %v858
  %2149 = vmatprep.subr.bf16.mxu0 0
  %2150 = vmatpush1.bf16.msra.mxu0 %v855
  %2151 = vmatprep.subr.bf16.mxu0 0
  %2152 = vmatpush2.bf16.msra.mxu0 0
  %2153 = vmatprep.subr.bf16.mxu0 0
  %2154 = vmatpush2.bf16.msra.mxu0 0
  %2155 = vmatprep.subr.bf16.mxu0 0
  %2156 = vmatpush2.bf16.msra.mxu0 0
  %2157 = vmatprep.subr.bf16.mxu0 0
  %2158 = vmatpush2.bf16.msra.mxu0 0
  %2159 = vmatprep.subr.bf16.mxu0 0
  %2160 = vmatpush2.bf16.msra.mxu0 0
  %2161 = vmatprep.subr.bf16.mxu0 0
  %2162 = vmatpush2.bf16.msra.mxu0 0
  %2163 = vmatprep.subr.bf16.mxu0 0
  %2164 = vmatpush2.bf16.msra.mxu0 0
  %2165 = vmatprep.subr.bf16.mxu0 0
  %2166 = vmatpush2.bf16.msra.mxu0 0
  %2167 = vmatprep.mubr.bf16.mxu0 0
  %2168 = vmatmul.mubr.bf16.gmra.mxu0 %v2092
  %v2169 = vpop.f32.mrf.mxu0
  %v2170 = vadd.f32 0.0, %v2169
  %v2171 = vpop.f32.mrf.mxu0
  %v2172 = vpop.f32.mrf.mxu0
  %v2173 = vpop.f32.mrf.mxu0
  %2174 = vdwg.mxu0
  %v2176 = vrot.slane %v2129, 6
  %v2178 = vadd.f32 %v428, %v2176
  %v2179 = vxor.u32 %v2178, 2147483648
  %v2180 = vmul.f32 %v2179, 1.442695
  %v2181 = vpow.pop %v2180
  %v2182 = vadd.f32 %v2181, 1.0
  %v2183 = vrcp.pop %v2182
  %v2184 = vmul.f32 1.0, %v2183
  %v2186 = vrot.slane %v2131, 6
  %v2188 = vadd.f32 %v430, %v2186
  %v2189 = vxor.u32 %v2188, 2147483648
  %v2190 = vmul.f32 %v2189, 1.442695
  %v2191 = vpow.pop %v2190
  %v2192 = vadd.f32 %v2191, 1.0
  %v2193 = vrcp.pop %v2192
  %v2194 = vmul.f32 1.0, %v2193
  %v2195 = vadd.f32 %v2170, %v476
  %v2197 = vrot.slane %v2195, 6
  %v2199 = vmul.f32 %v2184, %v2197
  %v2200 = vadd.f32 %v469, %v2199
  %v2201 = vtanh.pop %v2200
  %v2202 = vsub.f32 1.0, %v2194
  %v2203 = vmul.f32 %v2202, %v2201
  %v2205 = vrot.slane %v1968, 1
  %v2207 = vmul.f32 %v2194, %v2205
  %v2208 = vadd.f32 %v2203, %v2207
  %v2209 = vpack.c.bf16 %v2087, %v2087
  %v2211 = vshrl.u32 %v2209, 16
  %v2213 = vrot.slane %v2211, 2
  %2215 = vmatprep.subr.bf16.mxu0 %v611
  %2216 = vmatpush1.bf16.msra.mxu0 %v610
  %2217 = vmatprep.subr.bf16.mxu0 %v608
  %2218 = vmatpush1.bf16.msra.mxu0 %v607
  %2219 = vmatprep.subr.bf16.mxu0 %v605
  %2220 = vmatpush1.bf16.msra.mxu0 %v604
  %2221 = vmatprep.subr.bf16.mxu0 %v602
  %2222 = vmatpush1.bf16.msra.mxu0 %v601
  %2223 = vmatprep.subr.bf16.mxu0 %v599
  %2224 = vmatpush1.bf16.msra.mxu0 %v598
  %2225 = vmatprep.subr.bf16.mxu0 %v596
  %2226 = vmatpush1.bf16.msra.mxu0 %v595
  %2227 = vmatprep.subr.bf16.mxu0 %v593
  %2228 = vmatpush1.bf16.msra.mxu0 %v592
  %2229 = vmatprep.subr.bf16.mxu0 %v590
  %2230 = vmatpush1.bf16.msra.mxu0 %v589
  %2231 = vmatprep.subr.bf16.mxu0 0
  %2232 = vmatpush2.bf16.msra.mxu0 0
  %2233 = vmatprep.subr.bf16.mxu0 0
  %2234 = vmatpush2.bf16.msra.mxu0 0
  %2235 = vmatprep.subr.bf16.mxu0 0
  %2236 = vmatpush2.bf16.msra.mxu0 0
  %2237 = vmatprep.subr.bf16.mxu0 0
  %2238 = vmatpush2.bf16.msra.mxu0 0
  %2239 = vmatprep.subr.bf16.mxu0 0
  %2240 = vmatpush2.bf16.msra.mxu0 0
  %2241 = vmatprep.subr.bf16.mxu0 0
  %2242 = vmatpush2.bf16.msra.mxu0 0
  %2243 = vmatprep.subr.bf16.mxu0 0
  %2244 = vmatpush2.bf16.msra.mxu0 0
  %2245 = vmatprep.subr.bf16.mxu0 0
  %2246 = vmatpush2.bf16.msra.mxu0 0
  %2247 = vmatprep.mubr.bf16.mxu0 0
  %2248 = vmatmul.mubr.bf16.gmra.mxu0 %v2213
  %v2249 = vpop.f32.mrf.mxu0
  %v2250 = vadd.f32 0.0, %v2249
  %v2251 = vpop.f32.mrf.mxu0
  %v2252 = vadd.f32 0.0, %v2251
  %v2253 = vpop.f32.mrf.mxu0
  %v2254 = vpop.f32.mrf.mxu0
  %2255 = vdwg.mxu0
  %2256 = vmatprep.subr.bf16.mxu0 0
  %2257 = vmatpush1.bf16.msra.mxu0 %v612
  %2258 = vmatprep.subr.bf16.mxu0 0
  %2259 = vmatpush1.bf16.msra.mxu0 %v609
  %2260 = vmatprep.subr.bf16.mxu0 0
  %2261 = vmatpush1.bf16.msra.mxu0 %v606
  %2262 = vmatprep.subr.bf16.mxu0 0
  %2263 = vmatpush1.bf16.msra.mxu0 %v603
  %2264 = vmatprep.subr.bf16.mxu0 0
  %2265 = vmatpush1.bf16.msra.mxu0 %v600
  %2266 = vmatprep.subr.bf16.mxu0 0
  %2267 = vmatpush1.bf16.msra.mxu0 %v597
  %2268 = vmatprep.subr.bf16.mxu0 0
  %2269 = vmatpush1.bf16.msra.mxu0 %v594
  %2270 = vmatprep.subr.bf16.mxu0 0
  %2271 = vmatpush1.bf16.msra.mxu0 %v591
  %2272 = vmatprep.subr.bf16.mxu0 0
  %2273 = vmatpush2.bf16.msra.mxu0 0
  %2274 = vmatprep.subr.bf16.mxu0 0
  %2275 = vmatpush2.bf16.msra.mxu0 0
  %2276 = vmatprep.subr.bf16.mxu0 0
  %2277 = vmatpush2.bf16.msra.mxu0 0
  %2278 = vmatprep.subr.bf16.mxu0 0
  %2279 = vmatpush2.bf16.msra.mxu0 0
  %2280 = vmatprep.subr.bf16.mxu0 0
  %2281 = vmatpush2.bf16.msra.mxu0 0
  %2282 = vmatprep.subr.bf16.mxu0 0
  %2283 = vmatpush2.bf16.msra.mxu0 0
  %2284 = vmatprep.subr.bf16.mxu0 0
  %2285 = vmatpush2.bf16.msra.mxu0 0
  %2286 = vmatprep.subr.bf16.mxu0 0
  %2287 = vmatpush2.bf16.msra.mxu0 0
  %2288 = vmatprep.mubr.bf16.mxu0 0
  %2289 = vmatmul.mubr.bf16.gmra.mxu0 %v2213
  %v2290 = vpop.f32.mrf.mxu0
  %v2291 = vadd.f32 0.0, %v2290
  %v2292 = vpop.f32.mrf.mxu0
  %v2293 = vpop.f32.mrf.mxu0
  %v2294 = vpop.f32.mrf.mxu0
  %2295 = vdwg.mxu0
  %v2297 = vrot.slane %v2250, 2
  %v2299 = vadd.f32 %v229, %v2297
  %v2300 = vxor.u32 %v2299, 2147483648
  %v2301 = vmul.f32 %v2300, 1.442695
  %v2302 = vpow.pop %v2301
  %v2303 = vadd.f32 %v2302, 1.0
  %v2304 = vrcp.pop %v2303
  %v2305 = vmul.f32 1.0, %v2304
  %v2307 = vrot.slane %v2252, 2
  %v2309 = vadd.f32 %v231, %v2307
  %v2310 = vxor.u32 %v2309, 2147483648
  %v2311 = vmul.f32 %v2310, 1.442695
  %v2312 = vpow.pop %v2311
  %v2313 = vadd.f32 %v2312, 1.0
  %v2314 = vrcp.pop %v2313
  %v2315 = vmul.f32 1.0, %v2314
  %v2316 = vadd.f32 %v2291, %v474
  %v2318 = vrot.slane %v2316, 2
  %v2320 = vmul.f32 %v2305, %v2318
  %v2321 = vadd.f32 %v270, %v2320
  %v2322 = vtanh.pop %v2321
  %v2323 = vsub.f32 1.0, %v2315
  %v2324 = vmul.f32 %v2323, %v2322
  %v2326 = vrot.slane %v2087, 7
  %v2328 = vmul.f32 %v2315, %v2326
  %v2329 = vadd.f32 %v2324, %v2328
  %v2330 = vpack.c.bf16 %v2208, %v2208
  %v2332 = vrot.slane %v2330, 1
  %2334 = vmatprep.subr.bf16.mxu0 %v875
  %2335 = vmatpush1.bf16.msra.mxu0 %v874
  %2336 = vmatprep.subr.bf16.mxu0 %v872
  %2337 = vmatpush1.bf16.msra.mxu0 %v871
  %2338 = vmatprep.subr.bf16.mxu0 %v869
  %2339 = vmatpush1.bf16.msra.mxu0 %v868
  %2340 = vmatprep.subr.bf16.mxu0 %v866
  %2341 = vmatpush1.bf16.msra.mxu0 %v865
  %2342 = vmatprep.subr.bf16.mxu0 %v863
  %2343 = vmatpush1.bf16.msra.mxu0 %v862
  %2344 = vmatprep.subr.bf16.mxu0 %v860
  %2345 = vmatpush1.bf16.msra.mxu0 %v859
  %2346 = vmatprep.subr.bf16.mxu0 %v857
  %2347 = vmatpush1.bf16.msra.mxu0 %v856
  %2348 = vmatprep.subr.bf16.mxu0 %v854
  %2349 = vmatpush1.bf16.msra.mxu0 %v853
  %2350 = vmatprep.subr.bf16.mxu0 0
  %2351 = vmatpush2.bf16.msra.mxu0 0
  %2352 = vmatprep.subr.bf16.mxu0 0
  %2353 = vmatpush2.bf16.msra.mxu0 0
  %2354 = vmatprep.subr.bf16.mxu0 0
  %2355 = vmatpush2.bf16.msra.mxu0 0
  %2356 = vmatprep.subr.bf16.mxu0 0
  %2357 = vmatpush2.bf16.msra.mxu0 0
  %2358 = vmatprep.subr.bf16.mxu0 0
  %2359 = vmatpush2.bf16.msra.mxu0 0
  %2360 = vmatprep.subr.bf16.mxu0 0
  %2361 = vmatpush2.bf16.msra.mxu0 0
  %2362 = vmatprep.subr.bf16.mxu0 0
  %2363 = vmatpush2.bf16.msra.mxu0 0
  %2364 = vmatprep.subr.bf16.mxu0 0
  %2365 = vmatpush2.bf16.msra.mxu0 0
  %2366 = vmatprep.mubr.bf16.mxu0 0
  %2367 = vmatmul.mubr.bf16.gmra.mxu0 %v2332
  %v2368 = vpop.f32.mrf.mxu0
  %v2369 = vadd.f32 0.0, %v2368
  %v2370 = vpop.f32.mrf.mxu0
  %v2371 = vadd.f32 0.0, %v2370
  %v2372 = vpop.f32.mrf.mxu0
  %v2373 = vpop.f32.mrf.mxu0
  %2374 = vdwg.mxu0
  %2375 = vmatprep.subr.bf16.mxu0 0
  %2376 = vmatpush1.bf16.msra.mxu0 %v876
  %2377 = vmatprep.subr.bf16.mxu0 0
  %2378 = vmatpush1.bf16.msra.mxu0 %v873
  %2379 = vmatprep.subr.bf16.mxu0 0
  %2380 = vmatpush1.bf16.msra.mxu0 %v870
  %2381 = vmatprep.subr.bf16.mxu0 0
  %2382 = vmatpush1.bf16.msra.mxu0 %v867
  %2383 = vmatprep.subr.bf16.mxu0 0
  %2384 = vmatpush1.bf16.msra.mxu0 %v864
  %2385 = vmatprep.subr.bf16.mxu0 0
  %2386 = vmatpush1.bf16.msra.mxu0 %v861
  %2387 = vmatprep.subr.bf16.mxu0 0
  %2388 = vmatpush1.bf16.msra.mxu0 %v858
  %2389 = vmatprep.subr.bf16.mxu0 0
  %2390 = vmatpush1.bf16.msra.mxu0 %v855
  %2391 = vmatprep.subr.bf16.mxu0 0
  %2392 = vmatpush2.bf16.msra.mxu0 0
  %2393 = vmatprep.subr.bf16.mxu0 0
  %2394 = vmatpush2.bf16.msra.mxu0 0
  %2395 = vmatprep.subr.bf16.mxu0 0
  %2396 = vmatpush2.bf16.msra.mxu0 0
  %2397 = vmatprep.subr.bf16.mxu0 0
  %2398 = vmatpush2.bf16.msra.mxu0 0
  %2399 = vmatprep.subr.bf16.mxu0 0
  %2400 = vmatpush2.bf16.msra.mxu0 0
  %2401 = vmatprep.subr.bf16.mxu0 0
  %2402 = vmatpush2.bf16.msra.mxu0 0
  %2403 = vmatprep.subr.bf16.mxu0 0
  %2404 = vmatpush2.bf16.msra.mxu0 0
  %2405 = vmatprep.subr.bf16.mxu0 0
  %2406 = vmatpush2.bf16.msra.mxu0 0
  %2407 = vmatprep.mubr.bf16.mxu0 0
  %2408 = vmatmul.mubr.bf16.gmra.mxu0 %v2332
  %v2409 = vpop.f32.mrf.mxu0
  %v2410 = vadd.f32 0.0, %v2409
  %v2411 = vpop.f32.mrf.mxu0
  %v2412 = vpop.f32.mrf.mxu0
  %v2413 = vpop.f32.mrf.mxu0
  %2414 = vdwg.mxu0
  %v2416 = vrot.slane %v2369, 7
  %v2418 = vadd.f32 %v428, %v2416
  %v2419 = vxor.u32 %v2418, 2147483648
  %v2420 = vmul.f32 %v2419, 1.442695
  %v2421 = vpow.pop %v2420
  %v2422 = vadd.f32 %v2421, 1.0
  %v2423 = vrcp.pop %v2422
  %v2424 = vmul.f32 1.0, %v2423
  %v2426 = vrot.slane %v2371, 7
  %v2428 = vadd.f32 %v430, %v2426
  %v2429 = vxor.u32 %v2428, 2147483648
  %v2430 = vmul.f32 %v2429, 1.442695
  %v2431 = vpow.pop %v2430
  %v2432 = vadd.f32 %v2431, 1.0
  %v2433 = vrcp.pop %v2432
  %v2434 = vmul.f32 1.0, %v2433
  %v2435 = vadd.f32 %v2410, %v476
  %v2437 = vrot.slane %v2435, 7
  %v2439 = vmul.f32 %v2424, %v2437
  %v2440 = vadd.f32 %v469, %v2439
  %v2441 = vtanh.pop %v2440
  %v2442 = vsub.f32 1.0, %v2434
  %v2443 = vmul.f32 %v2442, %v2441
  %v2445 = vrot.slane %v2208, 1
  %v2447 = vmul.f32 %v2434, %v2445
  %v2448 = vadd.f32 %v2443, %v2447
  %v2449 = vpack.c.bf16 %v2329, %v2329
  %v2451 = vrot.slane %v2449, 3
  %2453 = vmatprep.subr.bf16.mxu0 %v611
  %2454 = vmatpush1.bf16.msra.mxu0 %v610
  %2455 = vmatprep.subr.bf16.mxu0 %v608
  %2456 = vmatpush1.bf16.msra.mxu0 %v607
  %2457 = vmatprep.subr.bf16.mxu0 %v605
  %2458 = vmatpush1.bf16.msra.mxu0 %v604
  %2459 = vmatprep.subr.bf16.mxu0 %v602
  %2460 = vmatpush1.bf16.msra.mxu0 %v601
  %2461 = vmatprep.subr.bf16.mxu0 %v599
  %2462 = vmatpush1.bf16.msra.mxu0 %v598
  %2463 = vmatprep.subr.bf16.mxu0 %v596
  %2464 = vmatpush1.bf16.msra.mxu0 %v595
  %2465 = vmatprep.subr.bf16.mxu0 %v593
  %2466 = vmatpush1.bf16.msra.mxu0 %v592
  %2467 = vmatprep.subr.bf16.mxu0 %v590
  %2468 = vmatpush1.bf16.msra.mxu0 %v589
  %2469 = vmatprep.subr.bf16.mxu0 0
  %2470 = vmatpush2.bf16.msra.mxu0 0
  %2471 = vmatprep.subr.bf16.mxu0 0
  %2472 = vmatpush2.bf16.msra.mxu0 0
  %2473 = vmatprep.subr.bf16.mxu0 0
  %2474 = vmatpush2.bf16.msra.mxu0 0
  %2475 = vmatprep.subr.bf16.mxu0 0
  %2476 = vmatpush2.bf16.msra.mxu0 0
  %2477 = vmatprep.subr.bf16.mxu0 0
  %2478 = vmatpush2.bf16.msra.mxu0 0
  %2479 = vmatprep.subr.bf16.mxu0 0
  %2480 = vmatpush2.bf16.msra.mxu0 0
  %2481 = vmatprep.subr.bf16.mxu0 0
  %2482 = vmatpush2.bf16.msra.mxu0 0
  %2483 = vmatprep.subr.bf16.mxu0 0
  %2484 = vmatpush2.bf16.msra.mxu0 0
  %2485 = vmatprep.mubr.bf16.mxu0 0
  %2486 = vmatmul.mubr.bf16.gmra.mxu0 %v2451
  %v2487 = vpop.f32.mrf.mxu0
  %v2488 = vadd.f32 0.0, %v2487
  %v2489 = vpop.f32.mrf.mxu0
  %v2490 = vadd.f32 0.0, %v2489
  %v2491 = vpop.f32.mrf.mxu0
  %v2492 = vpop.f32.mrf.mxu0
  %2493 = vdwg.mxu0
  %2494 = vmatprep.subr.bf16.mxu0 0
  %2495 = vmatpush1.bf16.msra.mxu0 %v612
  %2496 = vmatprep.subr.bf16.mxu0 0
  %2497 = vmatpush1.bf16.msra.mxu0 %v609
  %2498 = vmatprep.subr.bf16.mxu0 0
  %2499 = vmatpush1.bf16.msra.mxu0 %v606
  %2500 = vmatprep.subr.bf16.mxu0 0
  %2501 = vmatpush1.bf16.msra.mxu0 %v603
  %2502 = vmatprep.subr.bf16.mxu0 0
  %2503 = vmatpush1.bf16.msra.mxu0 %v600
  %2504 = vmatprep.subr.bf16.mxu0 0
  %2505 = vmatpush1.bf16.msra.mxu0 %v597
  %2506 = vmatprep.subr.bf16.mxu0 0
  %2507 = vmatpush1.bf16.msra.mxu0 %v594
  %2508 = vmatprep.subr.bf16.mxu0 0
  %2509 = vmatpush1.bf16.msra.mxu0 %v591
  %2510 = vmatprep.subr.bf16.mxu0 0
  %2511 = vmatpush2.bf16.msra.mxu0 0
  %2512 = vmatprep.subr.bf16.mxu0 0
  %2513 = vmatpush2.bf16.msra.mxu0 0
  %2514 = vmatprep.subr.bf16.mxu0 0
  %2515 = vmatpush2.bf16.msra.mxu0 0
  %2516 = vmatprep.subr.bf16.mxu0 0
  %2517 = vmatpush2.bf16.msra.mxu0 0
  %2518 = vmatprep.subr.bf16.mxu0 0
  %2519 = vmatpush2.bf16.msra.mxu0 0
  %2520 = vmatprep.subr.bf16.mxu0 0
  %2521 = vmatpush2.bf16.msra.mxu0 0
  %2522 = vmatprep.subr.bf16.mxu0 0
  %2523 = vmatpush2.bf16.msra.mxu0 0
  %2524 = vmatprep.subr.bf16.mxu0 0
  %2525 = vmatpush2.bf16.msra.mxu0 0
  %2526 = vmatprep.mubr.bf16.mxu0 0
  %2527 = vmatmul.mubr.bf16.gmra.mxu0 %v2451
  %v2528 = vpop.f32.mrf.mxu0
  %v2529 = vadd.f32 0.0, %v2528
  %v2530 = vpop.f32.mrf.mxu0
  %v2531 = vpop.f32.mrf.mxu0
  %v2532 = vpop.f32.mrf.mxu0
  %2533 = vdwg.mxu0
  %v2535 = vrot.slane %v2488, 1
  %v2537 = vadd.f32 %v229, %v2535
  %v2538 = vxor.u32 %v2537, 2147483648
  %v2539 = vmul.f32 %v2538, 1.442695
  %v2540 = vpow.pop %v2539
  %v2541 = vadd.f32 %v2540, 1.0
  %v2542 = vrcp.pop %v2541
  %v2543 = vmul.f32 1.0, %v2542
  %v2545 = vrot.slane %v2490, 1
  %v2547 = vadd.f32 %v231, %v2545
  %v2548 = vxor.u32 %v2547, 2147483648
  %v2549 = vmul.f32 %v2548, 1.442695
  %v2550 = vpow.pop %v2549
  %v2551 = vadd.f32 %v2550, 1.0
  %v2552 = vrcp.pop %v2551
  %v2553 = vmul.f32 1.0, %v2552
  %v2554 = vadd.f32 %v2529, %v474
  %v2556 = vrot.slane %v2554, 1
  %v2558 = vmul.f32 %v2543, %v2556
  %v2559 = vadd.f32 %v270, %v2558
  %v2560 = vtanh.pop %v2559
  %v2561 = vsub.f32 1.0, %v2553
  %v2562 = vmul.f32 %v2561, %v2560
  %v2564 = vrot.slane %v2329, 7
  %v2566 = vmul.f32 %v2553, %v2564
  %v2567 = vadd.f32 %v2562, %v2566
  %v2568 = vpack.c.bf16 %v2448, %v2448
  %v2570 = vshrl.u32 %v2568, 16
  %2573 = vmatprep.subr.bf16.mxu0 %v875
  %2574 = vmatpush1.bf16.msra.mxu0 %v874
  %2575 = vmatprep.subr.bf16.mxu0 %v872
  %2576 = vmatpush1.bf16.msra.mxu0 %v871
  %2577 = vmatprep.subr.bf16.mxu0 %v869
  %2578 = vmatpush1.bf16.msra.mxu0 %v868
  %2579 = vmatprep.subr.bf16.mxu0 %v866
  %2580 = vmatpush1.bf16.msra.mxu0 %v865
  %2581 = vmatprep.subr.bf16.mxu0 %v863
  %2582 = vmatpush1.bf16.msra.mxu0 %v862
  %2583 = vmatprep.subr.bf16.mxu0 %v860
  %2584 = vmatpush1.bf16.msra.mxu0 %v859
  %2585 = vmatprep.subr.bf16.mxu0 %v857
  %2586 = vmatpush1.bf16.msra.mxu0 %v856
  %2587 = vmatprep.subr.bf16.mxu0 %v854
  %2588 = vmatpush1.bf16.msra.mxu0 %v853
  %2589 = vmatprep.subr.bf16.mxu0 0
  %2590 = vmatpush2.bf16.msra.mxu0 0
  %2591 = vmatprep.subr.bf16.mxu0 0
  %2592 = vmatpush2.bf16.msra.mxu0 0
  %2593 = vmatprep.subr.bf16.mxu0 0
  %2594 = vmatpush2.bf16.msra.mxu0 0
  %2595 = vmatprep.subr.bf16.mxu0 0
  %2596 = vmatpush2.bf16.msra.mxu0 0
  %2597 = vmatprep.subr.bf16.mxu0 0
  %2598 = vmatpush2.bf16.msra.mxu0 0
  %2599 = vmatprep.subr.bf16.mxu0 0
  %2600 = vmatpush2.bf16.msra.mxu0 0
  %2601 = vmatprep.subr.bf16.mxu0 0
  %2602 = vmatpush2.bf16.msra.mxu0 0
  %2603 = vmatprep.subr.bf16.mxu0 0
  %2604 = vmatpush2.bf16.msra.mxu0 0
  %2605 = vmatprep.mubr.bf16.mxu0 0
  %2606 = vmatmul.mubr.bf16.gmra.mxu0 %v2570
  %v2607 = vpop.f32.mrf.mxu0
  %v2608 = vadd.f32 0.0, %v2607
  %v2609 = vpop.f32.mrf.mxu0
  %v2610 = vadd.f32 0.0, %v2609
  %v2611 = vpop.f32.mrf.mxu0
  %v2612 = vpop.f32.mrf.mxu0
  %2613 = vdwg.mxu0
  %2614 = vmatprep.subr.bf16.mxu0 0
  %2615 = vmatpush1.bf16.msra.mxu0 %v876
  %2616 = vmatprep.subr.bf16.mxu0 0
  %2617 = vmatpush1.bf16.msra.mxu0 %v873
  %2618 = vmatprep.subr.bf16.mxu0 0
  %2619 = vmatpush1.bf16.msra.mxu0 %v870
  %2620 = vmatprep.subr.bf16.mxu0 0
  %2621 = vmatpush1.bf16.msra.mxu0 %v867
  %2622 = vmatprep.subr.bf16.mxu0 0
  %2623 = vmatpush1.bf16.msra.mxu0 %v864
  %2624 = vmatprep.subr.bf16.mxu0 0
  %2625 = vmatpush1.bf16.msra.mxu0 %v861
  %2626 = vmatprep.subr.bf16.mxu0 0
  %2627 = vmatpush1.bf16.msra.mxu0 %v858
  %2628 = vmatprep.subr.bf16.mxu0 0
  %2629 = vmatpush1.bf16.msra.mxu0 %v855
  %2630 = vmatprep.subr.bf16.mxu0 0
  %2631 = vmatpush2.bf16.msra.mxu0 0
  %2632 = vmatprep.subr.bf16.mxu0 0
  %2633 = vmatpush2.bf16.msra.mxu0 0
  %2634 = vmatprep.subr.bf16.mxu0 0
  %2635 = vmatpush2.bf16.msra.mxu0 0
  %2636 = vmatprep.subr.bf16.mxu0 0
  %2637 = vmatpush2.bf16.msra.mxu0 0
  %2638 = vmatprep.subr.bf16.mxu0 0
  %2639 = vmatpush2.bf16.msra.mxu0 0
  %2640 = vmatprep.subr.bf16.mxu0 0
  %2641 = vmatpush2.bf16.msra.mxu0 0
  %2642 = vmatprep.subr.bf16.mxu0 0
  %2643 = vmatpush2.bf16.msra.mxu0 0
  %2644 = vmatprep.subr.bf16.mxu0 0
  %2645 = vmatpush2.bf16.msra.mxu0 0
  %2646 = vmatprep.mubr.bf16.mxu0 0
  %2647 = vmatmul.mubr.bf16.gmra.mxu0 %v2570
  %v2648 = vpop.f32.mrf.mxu0
  %v2649 = vadd.f32 0.0, %v2648
  %v2650 = vpop.f32.mrf.mxu0
  %v2651 = vpop.f32.mrf.mxu0
  %v2652 = vpop.f32.mrf.mxu0
  %2653 = vdwg.mxu0
  %v2654 = vadd.f32 %v428, %v2608
  %v2655 = vxor.u32 %v2654, 2147483648
  %v2656 = vmul.f32 %v2655, 1.442695
  %v2657 = vpow.pop %v2656
  %v2658 = vadd.f32 %v2657, 1.0
  %v2659 = vrcp.pop %v2658
  %v2660 = vmul.f32 1.0, %v2659
  %v2661 = vadd.f32 %v430, %v2610
  %v2662 = vxor.u32 %v2661, 2147483648
  %v2663 = vmul.f32 %v2662, 1.442695
  %v2664 = vpow.pop %v2663
  %v2665 = vadd.f32 %v2664, 1.0
  %v2666 = vrcp.pop %v2665
  %v2667 = vmul.f32 1.0, %v2666
  %v2668 = vadd.f32 %v2649, %v476
  %v2669 = vmul.f32 %v2660, %v2668
  %v2670 = vadd.f32 %v469, %v2669
  %v2671 = vtanh.pop %v2670
  %v2672 = vsub.f32 1.0, %v2667
  %v2673 = vmul.f32 %v2672, %v2671
  %v2675 = vrot.slane %v2448, 1
  %v2677 = vmul.f32 %v2667, %v2675
  %v2678 = vadd.f32 %v2673, %v2677
  %vm2679 = vcmask 1040384
  %v2680 = vsel %vm2679, %v739, %v1128
  %vm2681 = vcmask 1041408
  %v2682 = vsel %vm2681, %v2680, %v1369
  %vm2683 = vcmask 1042432
  %v2684 = vsel %vm2683, %v2682, %v1607
  %v2685 = vsel %vm184, %v2684, %v1849
  %vm2686 = vcmask 1044480
  %v2687 = vsel %vm2686, %v2685, %v2087
  %vm2688 = vcmask 1045504
  %v2689 = vsel %vm2688, %v2687, %v2329
  %vm2690 = vcmask 1046528
  %v2691 = vsel %vm2690, %v2689, %v2567
  %v2692 = vsel %vm2679, %v2678, %v2448
  %v2693 = vsel %vm2681, %v2692, %v2208
  %v2694 = vsel %vm2683, %v2693, %v1968
  %v2695 = vsel %vm184, %v2694, %v1728
  %v2696 = vsel %vm2686, %v2695, %v1488
  %v2697 = vsel %vm2688, %v2696, %v1249
  %v2698 = vsel %vm2690, %v2697, %v1012
  %v2699 = vld [vmem:[%s6] sm:$0xff]
  %v2700 = vld [vmem:[%s6 + $0x8] sm:$0xff]
  %v2701 = vld [vmem:[%s6 + $0x10] sm:$0xff]
  %v2702 = vld [vmem:[%s6 + $0x18] sm:$0xff]
  %v2703 = vld [vmem:[%s6 + $0x20] sm:$0xff]
  %v2704 = vld [vmem:[%s6 + $0x28] sm:$0xff]
  %v2705 = vld [vmem:[%s6 + $0x30] sm:$0xff]
  %v2706 = vld [vmem:[%s6 + $0x38] sm:$0xff]
  %v2707 = vld [vmem:[%s6 + $0x40] sm:$0xff]
  %v2708 = vld [vmem:[%s6 + $0x48] sm:$0xff]
  %v2709 = vld [vmem:[%s6 + $0x50] sm:$0xff]
  %v2710 = vld [vmem:[%s6 + $0x58] sm:$0xff]
  %v2711 = vld [vmem:[%s6 + $0x60] sm:$0xff]
  %v2712 = vld [vmem:[%s6 + $0x68] sm:$0xff]
  %v2713 = vld [vmem:[%s6 + $0x70] sm:$0xff]
  %v2714 = vld [vmem:[%s6 + $0x78] sm:$0xff]
  %s2715 = scalar_lea.vmem %s6, 128
  %v2716 = vld [vmem:[%s2715] sm:$0xff]
  %v2717 = vld [vmem:[%s2715 + $0x8] sm:$0xff]
  %v2718 = vld [vmem:[%s2715 + $0x10] sm:$0xff]
  %v2719 = vld [vmem:[%s2715 + $0x18] sm:$0xff]
  %v2720 = vld [vmem:[%s2715 + $0x20] sm:$0xff]
  %v2721 = vld [vmem:[%s2715 + $0x28] sm:$0xff]
  %v2722 = vld [vmem:[%s2715 + $0x30] sm:$0xff]
  %v2723 = vld [vmem:[%s2715 + $0x38] sm:$0xff]
  %v2724 = vld [vmem:[%s2715 + $0x40] sm:$0xff]
  %v2725 = vld [vmem:[%s2715 + $0x48] sm:$0xff]
  %v2726 = vld [vmem:[%s2715 + $0x50] sm:$0xff]
  %v2727 = vld [vmem:[%s2715 + $0x58] sm:$0xff]
  %v2728 = vld [vmem:[%s2715 + $0x60] sm:$0xff]
  %v2729 = vld [vmem:[%s2715 + $0x68] sm:$0xff]
  %v2730 = vld [vmem:[%s2715 + $0x70] sm:$0xff]
  %v2731 = vld [vmem:[%s2715 + $0x78] sm:$0xff]
  %2732 = vmatprep.subr.mxu0 0.0
  %2733 = vmatpush1.msra.mxu0 %v2731
  %2734 = vmatprep.subr.mxu0 0.0
  %2735 = vmatpush1.msra.mxu0 %v2730
  %2736 = vmatprep.subr.mxu0 0.0
  %2737 = vmatpush1.msra.mxu0 %v2729
  %2738 = vmatprep.subr.mxu0 0.0
  %2739 = vmatpush1.msra.mxu0 %v2728
  %2740 = vmatprep.subr.mxu0 0.0
  %2741 = vmatpush1.msra.mxu0 %v2727
  %2742 = vmatprep.subr.mxu0 0.0
  %2743 = vmatpush1.msra.mxu0 %v2726
  %2744 = vmatprep.subr.mxu0 0.0
  %2745 = vmatpush1.msra.mxu0 %v2725
  %2746 = vmatprep.subr.mxu0 0.0
  %2747 = vmatpush1.msra.mxu0 %v2724
  %2748 = vmatprep.subr.mxu0 0.0
  %2749 = vmatpush1.msra.mxu0 %v2723
  %2750 = vmatprep.subr.mxu0 0.0
  %2751 = vmatpush1.msra.mxu0 %v2722
  %2752 = vmatprep.subr.mxu0 0.0
  %2753 = vmatpush1.msra.mxu0 %v2721
  %2754 = vmatprep.subr.mxu0 0.0
  %2755 = vmatpush1.msra.mxu0 %v2720
  %2756 = vmatprep.subr.mxu0 0.0
  %2757 = vmatpush1.msra.mxu0 %v2719
  %2758 = vmatprep.subr.mxu0 0.0
  %2759 = vmatpush1.msra.mxu0 %v2718
  %2760 = vmatprep.subr.mxu0 0.0
  %2761 = vmatpush1.msra.mxu0 %v2717
  %2762 = vmatprep.subr.mxu0 0.0
  %2763 = vmatpush1.msra.mxu0 %v2716
  %2764 = vmatprep.subr.mxu0 0.0
  %2765 = vmatpush2.msra.mxu0 0.0
  %2766 = vmatprep.subr.mxu0 0.0
  %2767 = vmatpush2.msra.mxu0 0.0
  %2768 = vmatprep.subr.mxu0 0.0
  %2769 = vmatpush2.msra.mxu0 0.0
  %2770 = vmatprep.subr.mxu0 0.0
  %2771 = vmatpush2.msra.mxu0 0.0
  %2772 = vmatprep.subr.mxu0 0.0
  %2773 = vmatpush2.msra.mxu0 0.0
  %2774 = vmatprep.subr.mxu0 0.0
  %2775 = vmatpush2.msra.mxu0 0.0
  %2776 = vmatprep.subr.mxu0 0.0
  %2777 = vmatpush2.msra.mxu0 0.0
  %2778 = vmatprep.subr.mxu0 0.0
  %2779 = vmatpush2.msra.mxu0 0.0
  %2780 = vmatprep.subr.mxu0 0.0
  %2781 = vmatpush2.msra.mxu0 0.0
  %2782 = vmatprep.subr.mxu0 0.0
  %2783 = vmatpush2.msra.mxu0 0.0
  %2784 = vmatprep.subr.mxu0 0.0
  %2785 = vmatpush2.msra.mxu0 0.0
  %2786 = vmatprep.subr.mxu0 0.0
  %2787 = vmatpush2.msra.mxu0 0.0
  %2788 = vmatprep.subr.mxu0 0.0
  %2789 = vmatpush2.msra.mxu0 0.0
  %2790 = vmatprep.subr.mxu0 0.0
  %2791 = vmatpush2.msra.mxu0 0.0
  %2792 = vmatprep.subr.mxu0 0.0
  %2793 = vmatpush2.msra.mxu0 0.0
  %2794 = vmatprep.subr.mxu0 0.0
  %2795 = vmatpush2.msra.mxu0 0.0
  %2796 = vmatprep.mubr.f32.mxu0 0.0
  %2797 = vmatmul.mubr.f32.gmra.mxu0 %v2698
  %v2798 = vpop.f32.mrf.mxu0
  %v2799 = vadd.f32 0.0, %v2798
  %v2800 = vpop.f32.mrf.mxu0
  %2801 = vdwg.mxu0
  %2802 = vmatprep.subr.mxu0 0.0
  %2803 = vmatpush1.msra.mxu0 %v2714
  %2804 = vmatprep.subr.mxu0 0.0
  %2805 = vmatpush1.msra.mxu0 %v2713
  %2806 = vmatprep.subr.mxu0 0.0
  %2807 = vmatpush1.msra.mxu0 %v2712
  %2808 = vmatprep.subr.mxu0 0.0
  %2809 = vmatpush1.msra.mxu0 %v2711
  %2810 = vmatprep.subr.mxu0 0.0
  %2811 = vmatpush1.msra.mxu0 %v2710
  %2812 = vmatprep.subr.mxu0 0.0
  %2813 = vmatpush1.msra.mxu0 %v2709
  %2814 = vmatprep.subr.mxu0 0.0
  %2815 = vmatpush1.msra.mxu0 %v2708
  %2816 = vmatprep.subr.mxu0 0.0
  %2817 = vmatpush1.msra.mxu0 %v2707
  %2818 = vmatprep.subr.mxu0 0.0
  %2819 = vmatpush1.msra.mxu0 %v2706
  %2820 = vmatprep.subr.mxu0 0.0
  %2821 = vmatpush1.msra.mxu0 %v2705
  %2822 = vmatprep.subr.mxu0 0.0
  %2823 = vmatpush1.msra.mxu0 %v2704
  %2824 = vmatprep.subr.mxu0 0.0
  %2825 = vmatpush1.msra.mxu0 %v2703
  %2826 = vmatprep.subr.mxu0 0.0
  %2827 = vmatpush1.msra.mxu0 %v2702
  %2828 = vmatprep.subr.mxu0 0.0
  %2829 = vmatpush1.msra.mxu0 %v2701
  %2830 = vmatprep.subr.mxu0 0.0
  %2831 = vmatpush1.msra.mxu0 %v2700
  %2832 = vmatprep.subr.mxu0 0.0
  %2833 = vmatpush1.msra.mxu0 %v2699
  %2834 = vmatprep.subr.mxu0 0.0
  %2835 = vmatpush2.msra.mxu0 0.0
  %2836 = vmatprep.subr.mxu0 0.0
  %2837 = vmatpush2.msra.mxu0 0.0
  %2838 = vmatprep.subr.mxu0 0.0
  %2839 = vmatpush2.msra.mxu0 0.0
  %2840 = vmatprep.subr.mxu0 0.0
  %2841 = vmatpush2.msra.mxu0 0.0
  %2842 = vmatprep.subr.mxu0 0.0
  %2843 = vmatpush2.msra.mxu0 0.0
  %2844 = vmatprep.subr.mxu0 0.0
  %2845 = vmatpush2.msra.mxu0 0.0
  %2846 = vmatprep.subr.mxu0 0.0
  %2847 = vmatpush2.msra.mxu0 0.0
  %2848 = vmatprep.subr.mxu0 0.0
  %2849 = vmatpush2.msra.mxu0 0.0
  %2850 = vmatprep.subr.mxu0 0.0
  %2851 = vmatpush2.msra.mxu0 0.0
  %2852 = vmatprep.subr.mxu0 0.0
  %2853 = vmatpush2.msra.mxu0 0.0
  %2854 = vmatprep.subr.mxu0 0.0
  %2855 = vmatpush2.msra.mxu0 0.0
  %2856 = vmatprep.subr.mxu0 0.0
  %2857 = vmatpush2.msra.mxu0 0.0
  %2858 = vmatprep.subr.mxu0 0.0
  %2859 = vmatpush2.msra.mxu0 0.0
  %2860 = vmatprep.subr.mxu0 0.0
  %2861 = vmatpush2.msra.mxu0 0.0
  %2862 = vmatprep.subr.mxu0 0.0
  %2863 = vmatpush2.msra.mxu0 0.0
  %2864 = vmatprep.subr.mxu0 0.0
  %2865 = vmatpush2.msra.mxu0 0.0
  %2866 = vmatprep.mubr.f32.mxu0 0.0
  %2867 = vmatmul.mubr.f32.gmra.mxu0 %v2691
  %v2868 = vpop.f32.mrf.mxu0
  %v2869 = vadd.f32 %v2799, %v2868
  %v2870 = vpop.f32.mrf.mxu0
  %2871 = vdwg.mxu0
  %v2872 = vld [vmem:[%s7] sm:$0x1]
  %v2874 = vlaneseq
  %v2875 = vshrl.u32 %v2874, 7
  %v2876 = vsub.s32 0, %v2875
  %v2877 = vrot.slane %v2872, %v2876
  %v2879 = vadd.f32 %v2869, %v2877
  %v2880 = vmax.f32 %v2879, 0.0
  %2882 = vrot.lane.b32.xlu0 %v2880, 96
  %v2883 = vpop.permute.xlu0 %2882
  %vm2884 = vcmask 261120
  %v2885 = vsel %vm2884, %v2880, 0
  %v2887 = vsel %vm2884, %v2883, 0
  %2889 = vmatprep.subr.mxu0 0.0
  %2890 = vmatpush1.xpose.msra.mxu0 0.0
  %2891 = vmatprep.subr.mxu0 0.0
  %2892 = vmatpush1.xpose.msra.mxu0 0.0
  %2893 = vmatprep.subr.mxu0 0.0
  %2894 = vmatpush1.xpose.msra.mxu0 0.0
  %2895 = vmatprep.subr.mxu0 0.0
  %2896 = vmatpush1.xpose.msra.mxu0 0.0
  %2897 = vmatprep.subr.mxu0 0.0
  %2898 = vmatpush1.xpose.msra.mxu0 0.0
  %2899 = vmatprep.subr.mxu0 0.0
  %2900 = vmatpush1.xpose.msra.mxu0 0.0
  %2901 = vmatprep.subr.mxu0 0.0
  %2902 = vmatpush1.xpose.msra.mxu0 0.0
  %2903 = vmatprep.subr.mxu0 0.0
  %2904 = vmatpush1.xpose.msra.mxu0 0.0
  %2905 = vmatprep.subr.mxu0 0.0
  %2906 = vmatpush1.xpose.msra.mxu0 0.0
  %2907 = vmatprep.subr.mxu0 0.0
  %2908 = vmatpush1.xpose.msra.mxu0 0.0
  %2909 = vmatprep.subr.mxu0 0.0
  %2910 = vmatpush1.xpose.msra.mxu0 0.0
  %2911 = vmatprep.subr.mxu0 0.0
  %2912 = vmatpush1.xpose.msra.mxu0 0.0
  %2913 = vmatprep.subr.mxu0 0.0
  %2914 = vmatpush1.xpose.msra.mxu0 0.0
  %2915 = vmatprep.subr.mxu0 0.0
  %2916 = vmatpush1.xpose.msra.mxu0 0.0
  %2917 = vmatprep.subr.mxu0 0.0
  %2918 = vmatpush1.xpose.msra.mxu0 0.0
  %2919 = vmatprep.subr.mxu0 0.0
  %2920 = vmatpush1.xpose.msra.mxu0 %v2887
  %2921 = vmatprep.subr.mxu0 0.0
  %2922 = vmatpush2.xpose.msra.mxu0 0.0
  %2923 = vmatprep.subr.mxu0 0.0
  %2924 = vmatpush2.xpose.msra.mxu0 0.0
  %2925 = vmatprep.subr.mxu0 0.0
  %2926 = vmatpush2.xpose.msra.mxu0 0.0
  %2927 = vmatprep.subr.mxu0 0.0
  %2928 = vmatpush2.xpose.msra.mxu0 0.0
  %2929 = vmatprep.subr.mxu0 0.0
  %2930 = vmatpush2.xpose.msra.mxu0 0.0
  %2931 = vmatprep.subr.mxu0 0.0
  %2932 = vmatpush2.xpose.msra.mxu0 0.0
  %2933 = vmatprep.subr.mxu0 0.0
  %2934 = vmatpush2.xpose.msra.mxu0 0.0
  %2935 = vmatprep.subr.mxu0 0.0
  %2936 = vmatpush2.xpose.msra.mxu0 0.0
  %2937 = vmatprep.subr.mxu0 0.0
  %2938 = vmatpush2.xpose.msra.mxu0 0.0
  %2939 = vmatprep.subr.mxu0 0.0
  %2940 = vmatpush2.xpose.msra.mxu0 0.0
  %2941 = vmatprep.subr.mxu0 0.0
  %2942 = vmatpush2.xpose.msra.mxu0 0.0
  %2943 = vmatprep.subr.mxu0 0.0
  %2944 = vmatpush2.xpose.msra.mxu0 0.0
  %2945 = vmatprep.subr.mxu0 0.0
  %2946 = vmatpush2.xpose.msra.mxu0 0.0
  %2947 = vmatprep.subr.mxu0 0.0
  %2948 = vmatpush2.xpose.msra.mxu0 0.0
  %2949 = vmatprep.subr.mxu0 0.0
  %2950 = vmatpush2.xpose.msra.mxu0 0.0
  %2951 = vmatprep.subr.mxu0 0.0
  %2952 = vmatpush2.xpose.msra.mxu0 0.0
  %2953 = vmatprep.mubr.f32.mxu0 0.0
  %2954 = vmatmul.mubr.f32.gmra.mxu0 %v2885
  %v2955 = vpop.f32.mrf.mxu0
  %v2956 = vadd.f32 0.0, %v2955
  %v2957 = vpop.f32.mrf.mxu0
  %2958 = vdwg.mxu0
  %2959 = vmatprep.subr.mxu0 0.0
  %2960 = vmatpush1.xpose.msra.mxu0 0.0
  %2961 = vmatprep.subr.mxu0 0.0
  %2962 = vmatpush1.xpose.msra.mxu0 0.0
  %2963 = vmatprep.subr.mxu0 0.0
  %2964 = vmatpush1.xpose.msra.mxu0 0.0
  %2965 = vmatprep.subr.mxu0 0.0
  %2966 = vmatpush1.xpose.msra.mxu0 0.0
  %2967 = vmatprep.subr.mxu0 0.0
  %2968 = vmatpush1.xpose.msra.mxu0 0.0
  %2969 = vmatprep.subr.mxu0 0.0
  %2970 = vmatpush1.xpose.msra.mxu0 0.0
  %2971 = vmatprep.subr.mxu0 0.0
  %2972 = vmatpush1.xpose.msra.mxu0 0.0
  %2973 = vmatprep.subr.mxu0 0.0
  %2974 = vmatpush1.xpose.msra.mxu0 0.0
  %2975 = vmatprep.subr.mxu0 0.0
  %2976 = vmatpush1.xpose.msra.mxu0 0.0
  %2977 = vmatprep.subr.mxu0 0.0
  %2978 = vmatpush1.xpose.msra.mxu0 0.0
  %2979 = vmatprep.subr.mxu0 0.0
  %2980 = vmatpush1.xpose.msra.mxu0 0.0
  %2981 = vmatprep.subr.mxu0 0.0
  %2982 = vmatpush1.xpose.msra.mxu0 0.0
  %2983 = vmatprep.subr.mxu0 0.0
  %2984 = vmatpush1.xpose.msra.mxu0 0.0
  %2985 = vmatprep.subr.mxu0 0.0
  %2986 = vmatpush1.xpose.msra.mxu0 0.0
  %2987 = vmatprep.subr.mxu0 0.0
  %2988 = vmatpush1.xpose.msra.mxu0 0.0
  %2989 = vmatprep.subr.mxu0 0.0
  %2990 = vmatpush1.xpose.msra.mxu0 %v2885
  %2991 = vmatprep.subr.mxu0 0.0
  %2992 = vmatpush2.xpose.msra.mxu0 0.0
  %2993 = vmatprep.subr.mxu0 0.0
  %2994 = vmatpush2.xpose.msra.mxu0 0.0
  %2995 = vmatprep.subr.mxu0 0.0
  %2996 = vmatpush2.xpose.msra.mxu0 0.0
  %2997 = vmatprep.subr.mxu0 0.0
  %2998 = vmatpush2.xpose.msra.mxu0 0.0
  %2999 = vmatprep.subr.mxu0 0.0
  %3000 = vmatpush2.xpose.msra.mxu0 0.0
  %3001 = vmatprep.subr.mxu0 0.0
  %3002 = vmatpush2.xpose.msra.mxu0 0.0
  %3003 = vmatprep.subr.mxu0 0.0
  %3004 = vmatpush2.xpose.msra.mxu0 0.0
  %3005 = vmatprep.subr.mxu0 0.0
  %3006 = vmatpush2.xpose.msra.mxu0 0.0
  %3007 = vmatprep.subr.mxu0 0.0
  %3008 = vmatpush2.xpose.msra.mxu0 0.0
  %3009 = vmatprep.subr.mxu0 0.0
  %3010 = vmatpush2.xpose.msra.mxu0 0.0
  %3011 = vmatprep.subr.mxu0 0.0
  %3012 = vmatpush2.xpose.msra.mxu0 0.0
  %3013 = vmatprep.subr.mxu0 0.0
  %3014 = vmatpush2.xpose.msra.mxu0 0.0
  %3015 = vmatprep.subr.mxu0 0.0
  %3016 = vmatpush2.xpose.msra.mxu0 0.0
  %3017 = vmatprep.subr.mxu0 0.0
  %3018 = vmatpush2.xpose.msra.mxu0 0.0
  %3019 = vmatprep.subr.mxu0 0.0
  %3020 = vmatpush2.xpose.msra.mxu0 0.0
  %3021 = vmatprep.subr.mxu0 0.0
  %3022 = vmatpush2.xpose.msra.mxu0 0.0
  %3023 = vmatprep.mubr.f32.mxu0 0.0
  %3024 = vmatmul.mubr.f32.gmra.mxu0 %v2887
  %v3025 = vpop.f32.mrf.mxu0
  %v3026 = vadd.f32 0.0, %v3025
  %v3027 = vpop.f32.mrf.mxu0
  %3028 = vdwg.mxu0
  %vm3029 = vcmask 64512
  %v3030 = vsel %vm3029, %v2956, -inf
  %3031 = vmax.xlane.f32.xlu0 %v3030
  %v3032 = vpop.xlane.xlu0 %3031
  %v3033 = vsub.f32 %v2956, %v3032
  %v3034 = vmul.f32 %v3033, 1.442695
  %v3035 = vpow.pop %v3034
  %v3036 = vsel %vm3029, %v3035, 0.0
  %3037 = vadd.xlane.f32.xlu0 %v3036
  %v3038 = vpop.xlane.xlu0 %3037
  %v3039 = vrcp.pop %v3038
  %v3040 = vmul.f32 %v3035, %v3039
  %v3043 = vsel %vm3029, %v3040, 0
  %3045 = vmatprep.subr.mxu0 0.0
  %3046 = vmatpush1.msra.mxu0 0.0
  %3047 = vmatprep.subr.mxu0 0.0
  %3048 = vmatpush1.msra.mxu0 0.0
  %3049 = vmatprep.subr.mxu0 0.0
  %3050 = vmatpush1.msra.mxu0 0.0
  %3051 = vmatprep.subr.mxu0 0.0
  %3052 = vmatpush1.msra.mxu0 0.0
  %3053 = vmatprep.subr.mxu0 0.0
  %3054 = vmatpush1.msra.mxu0 0.0
  %3055 = vmatprep.subr.mxu0 0.0
  %3056 = vmatpush1.msra.mxu0 0.0
  %3057 = vmatprep.subr.mxu0 0.0
  %3058 = vmatpush1.msra.mxu0 0.0
  %3059 = vmatprep.subr.mxu0 0.0
  %3060 = vmatpush1.msra.mxu0 0.0
  %3061 = vmatprep.subr.mxu0 0.0
  %3062 = vmatpush1.msra.mxu0 0.0
  %3063 = vmatprep.subr.mxu0 0.0
  %3064 = vmatpush1.msra.mxu0 0.0
  %3065 = vmatprep.subr.mxu0 0.0
  %3066 = vmatpush1.msra.mxu0 0.0
  %3067 = vmatprep.subr.mxu0 0.0
  %3068 = vmatpush1.msra.mxu0 0.0
  %3069 = vmatprep.subr.mxu0 0.0
  %3070 = vmatpush1.msra.mxu0 0.0
  %3071 = vmatprep.subr.mxu0 0.0
  %3072 = vmatpush1.msra.mxu0 0.0
  %3073 = vmatprep.subr.mxu0 0.0
  %3074 = vmatpush1.msra.mxu0 0.0
  %3075 = vmatprep.subr.mxu0 0.0
  %3076 = vmatpush1.msra.mxu0 %v2883
  %3077 = vmatprep.subr.mxu0 0.0
  %3078 = vmatpush2.msra.mxu0 0.0
  %3079 = vmatprep.subr.mxu0 0.0
  %3080 = vmatpush2.msra.mxu0 0.0
  %3081 = vmatprep.subr.mxu0 0.0
  %3082 = vmatpush2.msra.mxu0 0.0
  %3083 = vmatprep.subr.mxu0 0.0
  %3084 = vmatpush2.msra.mxu0 0.0
  %3085 = vmatprep.subr.mxu0 0.0
  %3086 = vmatpush2.msra.mxu0 0.0
  %3087 = vmatprep.subr.mxu0 0.0
  %3088 = vmatpush2.msra.mxu0 0.0
  %3089 = vmatprep.subr.mxu0 0.0
  %3090 = vmatpush2.msra.mxu0 0.0
  %3091 = vmatprep.subr.mxu0 0.0
  %3092 = vmatpush2.msra.mxu0 0.0
  %3093 = vmatprep.subr.mxu0 0.0
  %3094 = vmatpush2.msra.mxu0 0.0
  %3095 = vmatprep.subr.mxu0 0.0
  %3096 = vmatpush2.msra.mxu0 0.0
  %3097 = vmatprep.subr.mxu0 0.0
  %3098 = vmatpush2.msra.mxu0 0.0
  %3099 = vmatprep.subr.mxu0 0.0
  %3100 = vmatpush2.msra.mxu0 0.0
  %3101 = vmatprep.subr.mxu0 0.0
  %3102 = vmatpush2.msra.mxu0 0.0
  %3103 = vmatprep.subr.mxu0 0.0
  %3104 = vmatpush2.msra.mxu0 0.0
  %3105 = vmatprep.subr.mxu0 0.0
  %3106 = vmatpush2.msra.mxu0 0.0
  %3107 = vmatprep.subr.mxu0 0.0
  %3108 = vmatpush2.msra.mxu0 0.0
  %3109 = vmatprep.mubr.f32.mxu0 0.0
  %3110 = vmatmul.mubr.f32.gmra.mxu0 %v3043
  %v3111 = vpop.f32.mrf.mxu0
  %v3112 = vadd.f32 0.0, %v3111
  %v3113 = vpop.f32.mrf.mxu0
  %3114 = vdwg.mxu0
  %v3115 = vsel %vm3029, %v3026, -inf
  %3116 = vmax.xlane.f32.xlu0 %v3115
  %v3117 = vpop.xlane.xlu0 %3116
  %v3118 = vsub.f32 %v3026, %v3117
  %v3119 = vmul.f32 %v3118, 1.442695
  %v3120 = vpow.pop %v3119
  %v3121 = vsel %vm3029, %v3120, 0.0
  %3122 = vadd.xlane.f32.xlu0 %v3121
  %v3123 = vpop.xlane.xlu0 %3122
  %v3124 = vrcp.pop %v3123
  %v3125 = vmul.f32 %v3120, %v3124
  %v3127 = vsel %vm3029, %v3125, 0
  %3129 = vmatprep.subr.mxu0 0.0
  %3130 = vmatpush1.msra.mxu0 0.0
  %3131 = vmatprep.subr.mxu0 0.0
  %3132 = vmatpush1.msra.mxu0 0.0
  %3133 = vmatprep.subr.mxu0 0.0
  %3134 = vmatpush1.msra.mxu0 0.0
  %3135 = vmatprep.subr.mxu0 0.0
  %3136 = vmatpush1.msra.mxu0 0.0
  %3137 = vmatprep.subr.mxu0 0.0
  %3138 = vmatpush1.msra.mxu0 0.0
  %3139 = vmatprep.subr.mxu0 0.0
  %3140 = vmatpush1.msra.mxu0 0.0
  %3141 = vmatprep.subr.mxu0 0.0
  %3142 = vmatpush1.msra.mxu0 0.0
  %3143 = vmatprep.subr.mxu0 0.0
  %3144 = vmatpush1.msra.mxu0 0.0
  %3145 = vmatprep.subr.mxu0 0.0
  %3146 = vmatpush1.msra.mxu0 0.0
  %3147 = vmatprep.subr.mxu0 0.0
  %3148 = vmatpush1.msra.mxu0 0.0
  %3149 = vmatprep.subr.mxu0 0.0
  %3150 = vmatpush1.msra.mxu0 0.0
  %3151 = vmatprep.subr.mxu0 0.0
  %3152 = vmatpush1.msra.mxu0 0.0
  %3153 = vmatprep.subr.mxu0 0.0
  %3154 = vmatpush1.msra.mxu0 0.0
  %3155 = vmatprep.subr.mxu0 0.0
  %3156 = vmatpush1.msra.mxu0 0.0
  %3157 = vmatprep.subr.mxu0 0.0
  %3158 = vmatpush1.msra.mxu0 0.0
  %3159 = vmatprep.subr.mxu0 0.0
  %3160 = vmatpush1.msra.mxu0 %v2880
  %3161 = vmatprep.subr.mxu0 0.0
  %3162 = vmatpush2.msra.mxu0 0.0
  %3163 = vmatprep.subr.mxu0 0.0
  %3164 = vmatpush2.msra.mxu0 0.0
  %3165 = vmatprep.subr.mxu0 0.0
  %3166 = vmatpush2.msra.mxu0 0.0
  %3167 = vmatprep.subr.mxu0 0.0
  %3168 = vmatpush2.msra.mxu0 0.0
  %3169 = vmatprep.subr.mxu0 0.0
  %3170 = vmatpush2.msra.mxu0 0.0
  %3171 = vmatprep.subr.mxu0 0.0
  %3172 = vmatpush2.msra.mxu0 0.0
  %3173 = vmatprep.subr.mxu0 0.0
  %3174 = vmatpush2.msra.mxu0 0.0
  %3175 = vmatprep.subr.mxu0 0.0
  %3176 = vmatpush2.msra.mxu0 0.0
  %3177 = vmatprep.subr.mxu0 0.0
  %3178 = vmatpush2.msra.mxu0 0.0
  %3179 = vmatprep.subr.mxu0 0.0
  %3180 = vmatpush2.msra.mxu0 0.0
  %3181 = vmatprep.subr.mxu0 0.0
  %3182 = vmatpush2.msra.mxu0 0.0
  %3183 = vmatprep.subr.mxu0 0.0
  %3184 = vmatpush2.msra.mxu0 0.0
  %3185 = vmatprep.subr.mxu0 0.0
  %3186 = vmatpush2.msra.mxu0 0.0
  %3187 = vmatprep.subr.mxu0 0.0
  %3188 = vmatpush2.msra.mxu0 0.0
  %3189 = vmatprep.subr.mxu0 0.0
  %3190 = vmatpush2.msra.mxu0 0.0
  %3191 = vmatprep.subr.mxu0 0.0
  %3192 = vmatpush2.msra.mxu0 0.0
  %3193 = vmatprep.mubr.f32.mxu0 0.0
  %3194 = vmatmul.mubr.f32.gmra.mxu0 %v3127
  %v3195 = vpop.f32.mrf.mxu0
  %v3196 = vadd.f32 0.0, %v3195
  %v3197 = vpop.f32.mrf.mxu0
  %3198 = vdwg.mxu0
  %v3199 = vmul.f32 %v3112, %v2880
  %v3200 = vmul.f32 %v3196, %v2883
  %3201 = vrot.lane.b32.xlu0 %v2880, 64
  %v3202 = vpop.permute.xlu0 %3201
  %v3203 = vsel %vm2884, %v3202, 0
  %3205 = vmatprep.subr.mxu0 0.0
  %3206 = vmatpush1.xpose.msra.mxu0 0.0
  %3207 = vmatprep.subr.mxu0 0.0
  %3208 = vmatpush1.xpose.msra.mxu0 0.0
  %3209 = vmatprep.subr.mxu0 0.0
  %3210 = vmatpush1.xpose.msra.mxu0 0.0
  %3211 = vmatprep.subr.mxu0 0.0
  %3212 = vmatpush1.xpose.msra.mxu0 0.0
  %3213 = vmatprep.subr.mxu0 0.0
  %3214 = vmatpush1.xpose.msra.mxu0 0.0
  %3215 = vmatprep.subr.mxu0 0.0
  %3216 = vmatpush1.xpose.msra.mxu0 0.0
  %3217 = vmatprep.subr.mxu0 0.0
  %3218 = vmatpush1.xpose.msra.mxu0 0.0
  %3219 = vmatprep.subr.mxu0 0.0
  %3220 = vmatpush1.xpose.msra.mxu0 0.0
  %3221 = vmatprep.subr.mxu0 0.0
  %3222 = vmatpush1.xpose.msra.mxu0 0.0
  %3223 = vmatprep.subr.mxu0 0.0
  %3224 = vmatpush1.xpose.msra.mxu0 0.0
  %3225 = vmatprep.subr.mxu0 0.0
  %3226 = vmatpush1.xpose.msra.mxu0 0.0
  %3227 = vmatprep.subr.mxu0 0.0
  %3228 = vmatpush1.xpose.msra.mxu0 0.0
  %3229 = vmatprep.subr.mxu0 0.0
  %3230 = vmatpush1.xpose.msra.mxu0 0.0
  %3231 = vmatprep.subr.mxu0 0.0
  %3232 = vmatpush1.xpose.msra.mxu0 0.0
  %3233 = vmatprep.subr.mxu0 0.0
  %3234 = vmatpush1.xpose.msra.mxu0 0.0
  %3235 = vmatprep.subr.mxu0 0.0
  %3236 = vmatpush1.xpose.msra.mxu0 %v3203
  %3237 = vmatprep.subr.mxu0 0.0
  %3238 = vmatpush2.xpose.msra.mxu0 0.0
  %3239 = vmatprep.subr.mxu0 0.0
  %3240 = vmatpush2.xpose.msra.mxu0 0.0
  %3241 = vmatprep.subr.mxu0 0.0
  %3242 = vmatpush2.xpose.msra.mxu0 0.0
  %3243 = vmatprep.subr.mxu0 0.0
  %3244 = vmatpush2.xpose.msra.mxu0 0.0
  %3245 = vmatprep.subr.mxu0 0.0
  %3246 = vmatpush2.xpose.msra.mxu0 0.0
  %3247 = vmatprep.subr.mxu0 0.0
  %3248 = vmatpush2.xpose.msra.mxu0 0.0
  %3249 = vmatprep.subr.mxu0 0.0
  %3250 = vmatpush2.xpose.msra.mxu0 0.0
  %3251 = vmatprep.subr.mxu0 0.0
  %3252 = vmatpush2.xpose.msra.mxu0 0.0
  %3253 = vmatprep.subr.mxu0 0.0
  %3254 = vmatpush2.xpose.msra.mxu0 0.0
  %3255 = vmatprep.subr.mxu0 0.0
  %3256 = vmatpush2.xpose.msra.mxu0 0.0
  %3257 = vmatprep.subr.mxu0 0.0
  %3258 = vmatpush2.xpose.msra.mxu0 0.0
  %3259 = vmatprep.subr.mxu0 0.0
  %3260 = vmatpush2.xpose.msra.mxu0 0.0
  %3261 = vmatprep.subr.mxu0 0.0
  %3262 = vmatpush2.xpose.msra.mxu0 0.0
  %3263 = vmatprep.subr.mxu0 0.0
  %3264 = vmatpush2.xpose.msra.mxu0 0.0
  %3265 = vmatprep.subr.mxu0 0.0
  %3266 = vmatpush2.xpose.msra.mxu0 0.0
  %3267 = vmatprep.subr.mxu0 0.0
  %3268 = vmatpush2.xpose.msra.mxu0 0.0
  %3269 = vmatprep.mubr.f32.mxu0 0.0
  %3270 = vmatmul.mubr.f32.gmra.mxu0 %v2887
  %v3271 = vpop.f32.mrf.mxu0
  %v3272 = vadd.f32 0.0, %v3271
  %v3273 = vpop.f32.mrf.mxu0
  %3274 = vdwg.mxu0
  %3275 = vmatprep.subr.mxu0 0.0
  %3276 = vmatpush1.xpose.msra.mxu0 0.0
  %3277 = vmatprep.subr.mxu0 0.0
  %3278 = vmatpush1.xpose.msra.mxu0 0.0
  %3279 = vmatprep.subr.mxu0 0.0
  %3280 = vmatpush1.xpose.msra.mxu0 0.0
  %3281 = vmatprep.subr.mxu0 0.0
  %3282 = vmatpush1.xpose.msra.mxu0 0.0
  %3283 = vmatprep.subr.mxu0 0.0
  %3284 = vmatpush1.xpose.msra.mxu0 0.0
  %3285 = vmatprep.subr.mxu0 0.0
  %3286 = vmatpush1.xpose.msra.mxu0 0.0
  %3287 = vmatprep.subr.mxu0 0.0
  %3288 = vmatpush1.xpose.msra.mxu0 0.0
  %3289 = vmatprep.subr.mxu0 0.0
  %3290 = vmatpush1.xpose.msra.mxu0 0.0
  %3291 = vmatprep.subr.mxu0 0.0
  %3292 = vmatpush1.xpose.msra.mxu0 0.0
  %3293 = vmatprep.subr.mxu0 0.0
  %3294 = vmatpush1.xpose.msra.mxu0 0.0
  %3295 = vmatprep.subr.mxu0 0.0
  %3296 = vmatpush1.xpose.msra.mxu0 0.0
  %3297 = vmatprep.subr.mxu0 0.0
  %3298 = vmatpush1.xpose.msra.mxu0 0.0
  %3299 = vmatprep.subr.mxu0 0.0
  %3300 = vmatpush1.xpose.msra.mxu0 0.0
  %3301 = vmatprep.subr.mxu0 0.0
  %3302 = vmatpush1.xpose.msra.mxu0 0.0
  %3303 = vmatprep.subr.mxu0 0.0
  %3304 = vmatpush1.xpose.msra.mxu0 0.0
  %3305 = vmatprep.subr.mxu0 0.0
  %3306 = vmatpush1.xpose.msra.mxu0 %v2887
  %3307 = vmatprep.subr.mxu0 0.0
  %3308 = vmatpush2.xpose.msra.mxu0 0.0
  %3309 = vmatprep.subr.mxu0 0.0
  %3310 = vmatpush2.xpose.msra.mxu0 0.0
  %3311 = vmatprep.subr.mxu0 0.0
  %3312 = vmatpush2.xpose.msra.mxu0 0.0
  %3313 = vmatprep.subr.mxu0 0.0
  %3314 = vmatpush2.xpose.msra.mxu0 0.0
  %3315 = vmatprep.subr.mxu0 0.0
  %3316 = vmatpush2.xpose.msra.mxu0 0.0
  %3317 = vmatprep.subr.mxu0 0.0
  %3318 = vmatpush2.xpose.msra.mxu0 0.0
  %3319 = vmatprep.subr.mxu0 0.0
  %3320 = vmatpush2.xpose.msra.mxu0 0.0
  %3321 = vmatprep.subr.mxu0 0.0
  %3322 = vmatpush2.xpose.msra.mxu0 0.0
  %3323 = vmatprep.subr.mxu0 0.0
  %3324 = vmatpush2.xpose.msra.mxu0 0.0
  %3325 = vmatprep.subr.mxu0 0.0
  %3326 = vmatpush2.xpose.msra.mxu0 0.0
  %3327 = vmatprep.subr.mxu0 0.0
  %3328 = vmatpush2.xpose.msra.mxu0 0.0
  %3329 = vmatprep.subr.mxu0 0.0
  %3330 = vmatpush2.xpose.msra.mxu0 0.0
  %3331 = vmatprep.subr.mxu0 0.0
  %3332 = vmatpush2.xpose.msra.mxu0 0.0
  %3333 = vmatprep.subr.mxu0 0.0
  %3334 = vmatpush2.xpose.msra.mxu0 0.0
  %3335 = vmatprep.subr.mxu0 0.0
  %3336 = vmatpush2.xpose.msra.mxu0 0.0
  %3337 = vmatprep.subr.mxu0 0.0
  %3338 = vmatpush2.xpose.msra.mxu0 0.0
  %3339 = vmatprep.mubr.f32.mxu0 0.0
  %3340 = vmatmul.mubr.f32.gmra.mxu0 %v3203
  %v3341 = vpop.f32.mrf.mxu0
  %v3342 = vadd.f32 0.0, %v3341
  %v3343 = vpop.f32.mrf.mxu0
  %3344 = vdwg.mxu0
  %v3345 = vsel %vm3029, %v3272, -inf
  %3346 = vmax.xlane.f32.xlu0 %v3345
  %v3347 = vpop.xlane.xlu0 %3346
  %v3348 = vsub.f32 %v3272, %v3347
  %v3349 = vmul.f32 %v3348, 1.442695
  %v3350 = vpow.pop %v3349
  %v3351 = vsel %vm3029, %v3350, 0.0
  %3352 = vadd.xlane.f32.xlu0 %v3351
  %v3353 = vpop.xlane.xlu0 %3352
  %v3354 = vrcp.pop %v3353
  %v3355 = vmul.f32 %v3350, %v3354
  %v3358 = vsel %vm3029, %v3355, 0
  %3360 = vmatprep.subr.mxu0 0.0
  %3361 = vmatpush1.msra.mxu0 0.0
  %3362 = vmatprep.subr.mxu0 0.0
  %3363 = vmatpush1.msra.mxu0 0.0
  %3364 = vmatprep.subr.mxu0 0.0
  %3365 = vmatpush1.msra.mxu0 0.0
  %3366 = vmatprep.subr.mxu0 0.0
  %3367 = vmatpush1.msra.mxu0 0.0
  %3368 = vmatprep.subr.mxu0 0.0
  %3369 = vmatpush1.msra.mxu0 0.0
  %3370 = vmatprep.subr.mxu0 0.0
  %3371 = vmatpush1.msra.mxu0 0.0
  %3372 = vmatprep.subr.mxu0 0.0
  %3373 = vmatpush1.msra.mxu0 0.0
  %3374 = vmatprep.subr.mxu0 0.0
  %3375 = vmatpush1.msra.mxu0 0.0
  %3376 = vmatprep.subr.mxu0 0.0
  %3377 = vmatpush1.msra.mxu0 0.0
  %3378 = vmatprep.subr.mxu0 0.0
  %3379 = vmatpush1.msra.mxu0 0.0
  %3380 = vmatprep.subr.mxu0 0.0
  %3381 = vmatpush1.msra.mxu0 0.0
  %3382 = vmatprep.subr.mxu0 0.0
  %3383 = vmatpush1.msra.mxu0 0.0
  %3384 = vmatprep.subr.mxu0 0.0
  %3385 = vmatpush1.msra.mxu0 0.0
  %3386 = vmatprep.subr.mxu0 0.0
  %3387 = vmatpush1.msra.mxu0 0.0
  %3388 = vmatprep.subr.mxu0 0.0
  %3389 = vmatpush1.msra.mxu0 0.0
  %3390 = vmatprep.subr.mxu0 0.0
  %3391 = vmatpush1.msra.mxu0 %v3202
  %3392 = vmatprep.subr.mxu0 0.0
  %3393 = vmatpush2.msra.mxu0 0.0
  %3394 = vmatprep.subr.mxu0 0.0
  %3395 = vmatpush2.msra.mxu0 0.0
  %3396 = vmatprep.subr.mxu0 0.0
  %3397 = vmatpush2.msra.mxu0 0.0
  %3398 = vmatprep.subr.mxu0 0.0
  %3399 = vmatpush2.msra.mxu0 0.0
  %3400 = vmatprep.subr.mxu0 0.0
  %3401 = vmatpush2.msra.mxu0 0.0
  %3402 = vmatprep.subr.mxu0 0.0
  %3403 = vmatpush2.msra.mxu0 0.0
  %3404 = vmatprep.subr.mxu0 0.0
  %3405 = vmatpush2.msra.mxu0 0.0
  %3406 = vmatprep.subr.mxu0 0.0
  %3407 = vmatpush2.msra.mxu0 0.0
  %3408 = vmatprep.subr.mxu0 0.0
  %3409 = vmatpush2.msra.mxu0 0.0
  %3410 = vmatprep.subr.mxu0 0.0
  %3411 = vmatpush2.msra.mxu0 0.0
  %3412 = vmatprep.subr.mxu0 0.0
  %3413 = vmatpush2.msra.mxu0 0.0
  %3414 = vmatprep.subr.mxu0 0.0
  %3415 = vmatpush2.msra.mxu0 0.0
  %3416 = vmatprep.subr.mxu0 0.0
  %3417 = vmatpush2.msra.mxu0 0.0
  %3418 = vmatprep.subr.mxu0 0.0
  %3419 = vmatpush2.msra.mxu0 0.0
  %3420 = vmatprep.subr.mxu0 0.0
  %3421 = vmatpush2.msra.mxu0 0.0
  %3422 = vmatprep.subr.mxu0 0.0
  %3423 = vmatpush2.msra.mxu0 0.0
  %3424 = vmatprep.mubr.f32.mxu0 0.0
  %3425 = vmatmul.mubr.f32.gmra.mxu0 %v3358
  %v3426 = vpop.f32.mrf.mxu0
  %v3427 = vadd.f32 0.0, %v3426
  %v3428 = vpop.f32.mrf.mxu0
  %3429 = vdwg.mxu0
  %v3430 = vsel %vm3029, %v3342, -inf
  %3431 = vmax.xlane.f32.xlu0 %v3430
  %v3432 = vpop.xlane.xlu0 %3431
  %v3433 = vsub.f32 %v3342, %v3432
  %v3434 = vmul.f32 %v3433, 1.442695
  %v3435 = vpow.pop %v3434
  %v3436 = vsel %vm3029, %v3435, 0.0
  %3437 = vadd.xlane.f32.xlu0 %v3436
  %v3438 = vpop.xlane.xlu0 %3437
  %v3439 = vrcp.pop %v3438
  %v3440 = vmul.f32 %v3435, %v3439
  %v3442 = vsel %vm3029, %v3440, 0
  %3444 = vmatprep.subr.mxu0 0.0
  %3445 = vmatpush1.msra.mxu0 0.0
  %3446 = vmatprep.subr.mxu0 0.0
  %3447 = vmatpush1.msra.mxu0 0.0
  %3448 = vmatprep.subr.mxu0 0.0
  %3449 = vmatpush1.msra.mxu0 0.0
  %3450 = vmatprep.subr.mxu0 0.0
  %3451 = vmatpush1.msra.mxu0 0.0
  %3452 = vmatprep.subr.mxu0 0.0
  %3453 = vmatpush1.msra.mxu0 0.0
  %3454 = vmatprep.subr.mxu0 0.0
  %3455 = vmatpush1.msra.mxu0 0.0
  %3456 = vmatprep.subr.mxu0 0.0
  %3457 = vmatpush1.msra.mxu0 0.0
  %3458 = vmatprep.subr.mxu0 0.0
  %3459 = vmatpush1.msra.mxu0 0.0
  %3460 = vmatprep.subr.mxu0 0.0
  %3461 = vmatpush1.msra.mxu0 0.0
  %3462 = vmatprep.subr.mxu0 0.0
  %3463 = vmatpush1.msra.mxu0 0.0
  %3464 = vmatprep.subr.mxu0 0.0
  %3465 = vmatpush1.msra.mxu0 0.0
  %3466 = vmatprep.subr.mxu0 0.0
  %3467 = vmatpush1.msra.mxu0 0.0
  %3468 = vmatprep.subr.mxu0 0.0
  %3469 = vmatpush1.msra.mxu0 0.0
  %3470 = vmatprep.subr.mxu0 0.0
  %3471 = vmatpush1.msra.mxu0 0.0
  %3472 = vmatprep.subr.mxu0 0.0
  %3473 = vmatpush1.msra.mxu0 0.0
  %3474 = vmatprep.subr.mxu0 0.0
  %3475 = vmatpush1.msra.mxu0 %v2883
  %3476 = vmatprep.subr.mxu0 0.0
  %3477 = vmatpush2.msra.mxu0 0.0
  %3478 = vmatprep.subr.mxu0 0.0
  %3479 = vmatpush2.msra.mxu0 0.0
  %3480 = vmatprep.subr.mxu0 0.0
  %3481 = vmatpush2.msra.mxu0 0.0
  %3482 = vmatprep.subr.mxu0 0.0
  %3483 = vmatpush2.msra.mxu0 0.0
  %3484 = vmatprep.subr.mxu0 0.0
  %3485 = vmatpush2.msra.mxu0 0.0
  %3486 = vmatprep.subr.mxu0 0.0
  %3487 = vmatpush2.msra.mxu0 0.0
  %3488 = vmatprep.subr.mxu0 0.0
  %3489 = vmatpush2.msra.mxu0 0.0
  %3490 = vmatprep.subr.mxu0 0.0
  %3491 = vmatpush2.msra.mxu0 0.0
  %3492 = vmatprep.subr.mxu0 0.0
  %3493 = vmatpush2.msra.mxu0 0.0
  %3494 = vmatprep.subr.mxu0 0.0
  %3495 = vmatpush2.msra.mxu0 0.0
  %3496 = vmatprep.subr.mxu0 0.0
  %3497 = vmatpush2.msra.mxu0 0.0
  %3498 = vmatprep.subr.mxu0 0.0
  %3499 = vmatpush2.msra.mxu0 0.0
  %3500 = vmatprep.subr.mxu0 0.0
  %3501 = vmatpush2.msra.mxu0 0.0
  %3502 = vmatprep.subr.mxu0 0.0
  %3503 = vmatpush2.msra.mxu0 0.0
  %3504 = vmatprep.subr.mxu0 0.0
  %3505 = vmatpush2.msra.mxu0 0.0
  %3506 = vmatprep.subr.mxu0 0.0
  %3507 = vmatpush2.msra.mxu0 0.0
  %3508 = vmatprep.mubr.f32.mxu0 0.0
  %3509 = vmatmul.mubr.f32.gmra.mxu0 %v3442
  %v3510 = vpop.f32.mrf.mxu0
  %v3511 = vadd.f32 0.0, %v3510
  %v3512 = vpop.f32.mrf.mxu0
  %3513 = vdwg.mxu0
  %v3514 = vmul.f32 %v3427, %v2883
  %v3515 = vmul.f32 %v3511, %v3202
  %3516 = vmatprep.subr.mxu0 0.0
  %3517 = vmatpush1.xpose.msra.mxu0 0.0
  %3518 = vmatprep.subr.mxu0 0.0
  %3519 = vmatpush1.xpose.msra.mxu0 0.0
  %3520 = vmatprep.subr.mxu0 0.0
  %3521 = vmatpush1.xpose.msra.mxu0 0.0
  %3522 = vmatprep.subr.mxu0 0.0
  %3523 = vmatpush1.xpose.msra.mxu0 0.0
  %3524 = vmatprep.subr.mxu0 0.0
  %3525 = vmatpush1.xpose.msra.mxu0 0.0
  %3526 = vmatprep.subr.mxu0 0.0
  %3527 = vmatpush1.xpose.msra.mxu0 0.0
  %3528 = vmatprep.subr.mxu0 0.0
  %3529 = vmatpush1.xpose.msra.mxu0 0.0
  %3530 = vmatprep.subr.mxu0 0.0
  %3531 = vmatpush1.xpose.msra.mxu0 0.0
  %3532 = vmatprep.subr.mxu0 0.0
  %3533 = vmatpush1.xpose.msra.mxu0 0.0
  %3534 = vmatprep.subr.mxu0 0.0
  %3535 = vmatpush1.xpose.msra.mxu0 0.0
  %3536 = vmatprep.subr.mxu0 0.0
  %3537 = vmatpush1.xpose.msra.mxu0 0.0
  %3538 = vmatprep.subr.mxu0 0.0
  %3539 = vmatpush1.xpose.msra.mxu0 0.0
  %3540 = vmatprep.subr.mxu0 0.0
  %3541 = vmatpush1.xpose.msra.mxu0 0.0
  %3542 = vmatprep.subr.mxu0 0.0
  %3543 = vmatpush1.xpose.msra.mxu0 0.0
  %3544 = vmatprep.subr.mxu0 0.0
  %3545 = vmatpush1.xpose.msra.mxu0 0.0
  %3546 = vmatprep.subr.mxu0 0.0
  %3547 = vmatpush1.xpose.msra.mxu0 %v2885
  %3548 = vmatprep.subr.mxu0 0.0
  %3549 = vmatpush2.xpose.msra.mxu0 0.0
  %3550 = vmatprep.subr.mxu0 0.0
  %3551 = vmatpush2.xpose.msra.mxu0 0.0
  %3552 = vmatprep.subr.mxu0 0.0
  %3553 = vmatpush2.xpose.msra.mxu0 0.0
  %3554 = vmatprep.subr.mxu0 0.0
  %3555 = vmatpush2.xpose.msra.mxu0 0.0
  %3556 = vmatprep.subr.mxu0 0.0
  %3557 = vmatpush2.xpose.msra.mxu0 0.0
  %3558 = vmatprep.subr.mxu0 0.0
  %3559 = vmatpush2.xpose.msra.mxu0 0.0
  %3560 = vmatprep.subr.mxu0 0.0
  %3561 = vmatpush2.xpose.msra.mxu0 0.0
  %3562 = vmatprep.subr.mxu0 0.0
  %3563 = vmatpush2.xpose.msra.mxu0 0.0
  %3564 = vmatprep.subr.mxu0 0.0
  %3565 = vmatpush2.xpose.msra.mxu0 0.0
  %3566 = vmatprep.subr.mxu0 0.0
  %3567 = vmatpush2.xpose.msra.mxu0 0.0
  %3568 = vmatprep.subr.mxu0 0.0
  %3569 = vmatpush2.xpose.msra.mxu0 0.0
  %3570 = vmatprep.subr.mxu0 0.0
  %3571 = vmatpush2.xpose.msra.mxu0 0.0
  %3572 = vmatprep.subr.mxu0 0.0
  %3573 = vmatpush2.xpose.msra.mxu0 0.0
  %3574 = vmatprep.subr.mxu0 0.0
  %3575 = vmatpush2.xpose.msra.mxu0 0.0
  %3576 = vmatprep.subr.mxu0 0.0
  %3577 = vmatpush2.xpose.msra.mxu0 0.0
  %3578 = vmatprep.subr.mxu0 0.0
  %3579 = vmatpush2.xpose.msra.mxu0 0.0
  %3580 = vmatprep.mubr.f32.mxu0 0.0
  %3581 = vmatmul.mubr.f32.gmra.mxu0 %v3203
  %v3582 = vpop.f32.mrf.mxu0
  %v3583 = vadd.f32 0.0, %v3582
  %v3584 = vpop.f32.mrf.mxu0
  %3585 = vdwg.mxu0
  %3586 = vmatprep.subr.mxu0 0.0
  %3587 = vmatpush1.xpose.msra.mxu0 0.0
  %3588 = vmatprep.subr.mxu0 0.0
  %3589 = vmatpush1.xpose.msra.mxu0 0.0
  %3590 = vmatprep.subr.mxu0 0.0
  %3591 = vmatpush1.xpose.msra.mxu0 0.0
  %3592 = vmatprep.subr.mxu0 0.0
  %3593 = vmatpush1.xpose.msra.mxu0 0.0
  %3594 = vmatprep.subr.mxu0 0.0
  %3595 = vmatpush1.xpose.msra.mxu0 0.0
  %3596 = vmatprep.subr.mxu0 0.0
  %3597 = vmatpush1.xpose.msra.mxu0 0.0
  %3598 = vmatprep.subr.mxu0 0.0
  %3599 = vmatpush1.xpose.msra.mxu0 0.0
  %3600 = vmatprep.subr.mxu0 0.0
  %3601 = vmatpush1.xpose.msra.mxu0 0.0
  %3602 = vmatprep.subr.mxu0 0.0
  %3603 = vmatpush1.xpose.msra.mxu0 0.0
  %3604 = vmatprep.subr.mxu0 0.0
  %3605 = vmatpush1.xpose.msra.mxu0 0.0
  %3606 = vmatprep.subr.mxu0 0.0
  %3607 = vmatpush1.xpose.msra.mxu0 0.0
  %3608 = vmatprep.subr.mxu0 0.0
  %3609 = vmatpush1.xpose.msra.mxu0 0.0
  %3610 = vmatprep.subr.mxu0 0.0
  %3611 = vmatpush1.xpose.msra.mxu0 0.0
  %3612 = vmatprep.subr.mxu0 0.0
  %3613 = vmatpush1.xpose.msra.mxu0 0.0
  %3614 = vmatprep.subr.mxu0 0.0
  %3615 = vmatpush1.xpose.msra.mxu0 0.0
  %3616 = vmatprep.subr.mxu0 0.0
  %3617 = vmatpush1.xpose.msra.mxu0 %v3203
  %3618 = vmatprep.subr.mxu0 0.0
  %3619 = vmatpush2.xpose.msra.mxu0 0.0
  %3620 = vmatprep.subr.mxu0 0.0
  %3621 = vmatpush2.xpose.msra.mxu0 0.0
  %3622 = vmatprep.subr.mxu0 0.0
  %3623 = vmatpush2.xpose.msra.mxu0 0.0
  %3624 = vmatprep.subr.mxu0 0.0
  %3625 = vmatpush2.xpose.msra.mxu0 0.0
  %3626 = vmatprep.subr.mxu0 0.0
  %3627 = vmatpush2.xpose.msra.mxu0 0.0
  %3628 = vmatprep.subr.mxu0 0.0
  %3629 = vmatpush2.xpose.msra.mxu0 0.0
  %3630 = vmatprep.subr.mxu0 0.0
  %3631 = vmatpush2.xpose.msra.mxu0 0.0
  %3632 = vmatprep.subr.mxu0 0.0
  %3633 = vmatpush2.xpose.msra.mxu0 0.0
  %3634 = vmatprep.subr.mxu0 0.0
  %3635 = vmatpush2.xpose.msra.mxu0 0.0
  %3636 = vmatprep.subr.mxu0 0.0
  %3637 = vmatpush2.xpose.msra.mxu0 0.0
  %3638 = vmatprep.subr.mxu0 0.0
  %3639 = vmatpush2.xpose.msra.mxu0 0.0
  %3640 = vmatprep.subr.mxu0 0.0
  %3641 = vmatpush2.xpose.msra.mxu0 0.0
  %3642 = vmatprep.subr.mxu0 0.0
  %3643 = vmatpush2.xpose.msra.mxu0 0.0
  %3644 = vmatprep.subr.mxu0 0.0
  %3645 = vmatpush2.xpose.msra.mxu0 0.0
  %3646 = vmatprep.subr.mxu0 0.0
  %3647 = vmatpush2.xpose.msra.mxu0 0.0
  %3648 = vmatprep.subr.mxu0 0.0
  %3649 = vmatpush2.xpose.msra.mxu0 0.0
  %3650 = vmatprep.mubr.f32.mxu0 0.0
  %3651 = vmatmul.mubr.f32.gmra.mxu0 %v2885
  %v3652 = vpop.f32.mrf.mxu0
  %v3653 = vadd.f32 0.0, %v3652
  %v3654 = vpop.f32.mrf.mxu0
  %3655 = vdwg.mxu0
  %v3656 = vsel %vm3029, %v3583, -inf
  %3657 = vmax.xlane.f32.xlu0 %v3656
  %v3658 = vpop.xlane.xlu0 %3657
  %v3659 = vsub.f32 %v3583, %v3658
  %v3660 = vmul.f32 %v3659, 1.442695
  %v3661 = vpow.pop %v3660
  %v3662 = vsel %vm3029, %v3661, 0.0
  %3663 = vadd.xlane.f32.xlu0 %v3662
  %v3664 = vpop.xlane.xlu0 %3663
  %v3665 = vrcp.pop %v3664
  %v3666 = vmul.f32 %v3661, %v3665
  %v3668 = vsel %vm3029, %v3666, 0
  %3670 = vmatprep.subr.mxu0 0.0
  %3671 = vmatpush1.msra.mxu0 0.0
  %3672 = vmatprep.subr.mxu0 0.0
  %3673 = vmatpush1.msra.mxu0 0.0
  %3674 = vmatprep.subr.mxu0 0.0
  %3675 = vmatpush1.msra.mxu0 0.0
  %3676 = vmatprep.subr.mxu0 0.0
  %3677 = vmatpush1.msra.mxu0 0.0
  %3678 = vmatprep.subr.mxu0 0.0
  %3679 = vmatpush1.msra.mxu0 0.0
  %3680 = vmatprep.subr.mxu0 0.0
  %3681 = vmatpush1.msra.mxu0 0.0
  %3682 = vmatprep.subr.mxu0 0.0
  %3683 = vmatpush1.msra.mxu0 0.0
  %3684 = vmatprep.subr.mxu0 0.0
  %3685 = vmatpush1.msra.mxu0 0.0
  %3686 = vmatprep.subr.mxu0 0.0
  %3687 = vmatpush1.msra.mxu0 0.0
  %3688 = vmatprep.subr.mxu0 0.0
  %3689 = vmatpush1.msra.mxu0 0.0
  %3690 = vmatprep.subr.mxu0 0.0
  %3691 = vmatpush1.msra.mxu0 0.0
  %3692 = vmatprep.subr.mxu0 0.0
  %3693 = vmatpush1.msra.mxu0 0.0
  %3694 = vmatprep.subr.mxu0 0.0
  %3695 = vmatpush1.msra.mxu0 0.0
  %3696 = vmatprep.subr.mxu0 0.0
  %3697 = vmatpush1.msra.mxu0 0.0
  %3698 = vmatprep.subr.mxu0 0.0
  %3699 = vmatpush1.msra.mxu0 0.0
  %3700 = vmatprep.subr.mxu0 0.0
  %3701 = vmatpush1.msra.mxu0 %v2880
  %3702 = vmatprep.subr.mxu0 0.0
  %3703 = vmatpush2.msra.mxu0 0.0
  %3704 = vmatprep.subr.mxu0 0.0
  %3705 = vmatpush2.msra.mxu0 0.0
  %3706 = vmatprep.subr.mxu0 0.0
  %3707 = vmatpush2.msra.mxu0 0.0
  %3708 = vmatprep.subr.mxu0 0.0
  %3709 = vmatpush2.msra.mxu0 0.0
  %3710 = vmatprep.subr.mxu0 0.0
  %3711 = vmatpush2.msra.mxu0 0.0
  %3712 = vmatprep.subr.mxu0 0.0
  %3713 = vmatpush2.msra.mxu0 0.0
  %3714 = vmatprep.subr.mxu0 0.0
  %3715 = vmatpush2.msra.mxu0 0.0
  %3716 = vmatprep.subr.mxu0 0.0
  %3717 = vmatpush2.msra.mxu0 0.0
  %3718 = vmatprep.subr.mxu0 0.0
  %3719 = vmatpush2.msra.mxu0 0.0
  %3720 = vmatprep.subr.mxu0 0.0
  %3721 = vmatpush2.msra.mxu0 0.0
  %3722 = vmatprep.subr.mxu0 0.0
  %3723 = vmatpush2.msra.mxu0 0.0
  %3724 = vmatprep.subr.mxu0 0.0
  %3725 = vmatpush2.msra.mxu0 0.0
  %3726 = vmatprep.subr.mxu0 0.0
  %3727 = vmatpush2.msra.mxu0 0.0
  %3728 = vmatprep.subr.mxu0 0.0
  %3729 = vmatpush2.msra.mxu0 0.0
  %3730 = vmatprep.subr.mxu0 0.0
  %3731 = vmatpush2.msra.mxu0 0.0
  %3732 = vmatprep.subr.mxu0 0.0
  %3733 = vmatpush2.msra.mxu0 0.0
  %3734 = vmatprep.mubr.f32.mxu0 0.0
  %3735 = vmatmul.mubr.f32.gmra.mxu0 %v3668
  %v3736 = vpop.f32.mrf.mxu0
  %v3737 = vadd.f32 0.0, %v3736
  %v3738 = vpop.f32.mrf.mxu0
  %3739 = vdwg.mxu0
  %v3740 = vsel %vm3029, %v3653, -inf
  %3741 = vmax.xlane.f32.xlu0 %v3740
  %v3742 = vpop.xlane.xlu0 %3741
  %v3743 = vsub.f32 %v3653, %v3742
  %v3744 = vmul.f32 %v3743, 1.442695
  %v3745 = vpow.pop %v3744
  %v3746 = vsel %vm3029, %v3745, 0.0
  %3747 = vadd.xlane.f32.xlu0 %v3746
  %v3748 = vpop.xlane.xlu0 %3747
  %v3749 = vrcp.pop %v3748
  %v3750 = vmul.f32 %v3745, %v3749
  %v3752 = vsel %vm3029, %v3750, 0
  %3754 = vmatprep.subr.mxu0 0.0
  %3755 = vmatpush1.msra.mxu0 0.0
  %3756 = vmatprep.subr.mxu0 0.0
  %3757 = vmatpush1.msra.mxu0 0.0
  %3758 = vmatprep.subr.mxu0 0.0
  %3759 = vmatpush1.msra.mxu0 0.0
  %3760 = vmatprep.subr.mxu0 0.0
  %3761 = vmatpush1.msra.mxu0 0.0
  %3762 = vmatprep.subr.mxu0 0.0
  %3763 = vmatpush1.msra.mxu0 0.0
  %3764 = vmatprep.subr.mxu0 0.0
  %3765 = vmatpush1.msra.mxu0 0.0
  %3766 = vmatprep.subr.mxu0 0.0
  %3767 = vmatpush1.msra.mxu0 0.0
  %3768 = vmatprep.subr.mxu0 0.0
  %3769 = vmatpush1.msra.mxu0 0.0
  %3770 = vmatprep.subr.mxu0 0.0
  %3771 = vmatpush1.msra.mxu0 0.0
  %3772 = vmatprep.subr.mxu0 0.0
  %3773 = vmatpush1.msra.mxu0 0.0
  %3774 = vmatprep.subr.mxu0 0.0
  %3775 = vmatpush1.msra.mxu0 0.0
  %3776 = vmatprep.subr.mxu0 0.0
  %3777 = vmatpush1.msra.mxu0 0.0
  %3778 = vmatprep.subr.mxu0 0.0
  %3779 = vmatpush1.msra.mxu0 0.0
  %3780 = vmatprep.subr.mxu0 0.0
  %3781 = vmatpush1.msra.mxu0 0.0
  %3782 = vmatprep.subr.mxu0 0.0
  %3783 = vmatpush1.msra.mxu0 0.0
  %3784 = vmatprep.subr.mxu0 0.0
  %3785 = vmatpush1.msra.mxu0 %v3202
  %3786 = vmatprep.subr.mxu0 0.0
  %3787 = vmatpush2.msra.mxu0 0.0
  %3788 = vmatprep.subr.mxu0 0.0
  %3789 = vmatpush2.msra.mxu0 0.0
  %3790 = vmatprep.subr.mxu0 0.0
  %3791 = vmatpush2.msra.mxu0 0.0
  %3792 = vmatprep.subr.mxu0 0.0
  %3793 = vmatpush2.msra.mxu0 0.0
  %3794 = vmatprep.subr.mxu0 0.0
  %3795 = vmatpush2.msra.mxu0 0.0
  %3796 = vmatprep.subr.mxu0 0.0
  %3797 = vmatpush2.msra.mxu0 0.0
  %3798 = vmatprep.subr.mxu0 0.0
  %3799 = vmatpush2.msra.mxu0 0.0
  %3800 = vmatprep.subr.mxu0 0.0
  %3801 = vmatpush2.msra.mxu0 0.0
  %3802 = vmatprep.subr.mxu0 0.0
  %3803 = vmatpush2.msra.mxu0 0.0
  %3804 = vmatprep.subr.mxu0 0.0
  %3805 = vmatpush2.msra.mxu0 0.0
  %3806 = vmatprep.subr.mxu0 0.0
  %3807 = vmatpush2.msra.mxu0 0.0
  %3808 = vmatprep.subr.mxu0 0.0
  %3809 = vmatpush2.msra.mxu0 0.0
  %3810 = vmatprep.subr.mxu0 0.0
  %3811 = vmatpush2.msra.mxu0 0.0
  %3812 = vmatprep.subr.mxu0 0.0
  %3813 = vmatpush2.msra.mxu0 0.0
  %3814 = vmatprep.subr.mxu0 0.0
  %3815 = vmatpush2.msra.mxu0 0.0
  %3816 = vmatprep.subr.mxu0 0.0
  %3817 = vmatpush2.msra.mxu0 0.0
  %3818 = vmatprep.mubr.f32.mxu0 0.0
  %3819 = vmatmul.mubr.f32.gmra.mxu0 %v3752
  %v3820 = vpop.f32.mrf.mxu0
  %v3821 = vadd.f32 0.0, %v3820
  %v3822 = vpop.f32.mrf.mxu0
  %3823 = vdwg.mxu0
  %v3824 = vmul.f32 %v3737, %v3202
  %v3825 = vmul.f32 %v3821, %v2880
  %3827 = vrot.lane.b32.xlu0 %v3200, 32
  %v3828 = vpop.permute.xlu0 %3827
  %3831 = vrot.lane.b32.xlu0 %v3514, 64
  %v3832 = vpop.permute.xlu0 %3831
  %3835 = vrot.lane.b32.xlu0 %v3515, 96
  %v3836 = vpop.permute.xlu0 %3835
  %3839 = vrot.lane.b32.xlu0 %v3825, 32
  %v3840 = vpop.permute.xlu0 %3839
  %v3842 = vsel %vm2884, %v3199, %v3828
  %vm3843 = vcmask 523264
  %v3844 = vsel %vm3843, %v3842, %v3832
  %vm3845 = vcmask 785408
  %v3846 = vsel %vm3845, %v3844, %v3836
  %v3847 = vsel %vm2884, %v3824, %v3840
  %v3848 = vsel %vm3843, %v3847, %v3202
  %v3849 = vsel %vm3845, %v3848, %v3202
  %v3850 = vld [vmem:[%s8] sm:$0xff]
  %v3851 = vld [vmem:[%s8 + $0x8] sm:$0xff]
  %v3852 = vld [vmem:[%s8 + $0x10] sm:$0xff]
  %v3853 = vld [vmem:[%s8 + $0x18] sm:$0xff]
  %v3854 = vld [vmem:[%s8 + $0x20] sm:$0xff]
  %v3855 = vld [vmem:[%s8 + $0x28] sm:$0xff]
  %v3856 = vld [vmem:[%s8 + $0x30] sm:$0xff]
  %v3857 = vld [vmem:[%s8 + $0x38] sm:$0xff]
  %v3858 = vld [vmem:[%s8 + $0x40] sm:$0xff]
  %v3859 = vld [vmem:[%s8 + $0x48] sm:$0xff]
  %v3860 = vld [vmem:[%s8 + $0x50] sm:$0xff]
  %v3861 = vld [vmem:[%s8 + $0x58] sm:$0xff]
  %v3862 = vld [vmem:[%s8 + $0x60] sm:$0xff]
  %v3863 = vld [vmem:[%s8 + $0x68] sm:$0xff]
  %v3864 = vld [vmem:[%s8 + $0x70] sm:$0xff]
  %v3865 = vld [vmem:[%s8 + $0x78] sm:$0xff]
  %v3866 = vld [vmem:[%s8 + $0x80] sm:$0xff]
  %v3867 = vld [vmem:[%s8 + $0x88] sm:$0xff]
  %v3868 = vld [vmem:[%s8 + $0x90] sm:$0xff]
  %v3869 = vld [vmem:[%s8 + $0x98] sm:$0xff]
  %v3870 = vld [vmem:[%s8 + $0xa0] sm:$0xff]
  %v3871 = vld [vmem:[%s8 + $0xa8] sm:$0xff]
  %v3872 = vld [vmem:[%s8 + $0xb0] sm:$0xff]
  %v3873 = vld [vmem:[%s8 + $0xb8] sm:$0xff]
  %v3874 = vld [vmem:[%s8 + $0xc0] sm:$0xff]
  %v3875 = vld [vmem:[%s8 + $0xc8] sm:$0xff]
  %v3876 = vld [vmem:[%s8 + $0xd0] sm:$0xff]
  %v3877 = vld [vmem:[%s8 + $0xd8] sm:$0xff]
  %v3878 = vld [vmem:[%s8 + $0xe0] sm:$0xff]
  %v3879 = vld [vmem:[%s8 + $0xe8] sm:$0xff]
  %v3880 = vld [vmem:[%s8 + $0xf0] sm:$0xff]
  %v3881 = vld [vmem:[%s8 + $0xf8] sm:$0xff]
  %v3882 = vld [vmem:[%s8 + $0x100] sm:$0xff]
  %v3883 = vld [vmem:[%s8 + $0x108] sm:$0xff]
  %v3884 = vld [vmem:[%s8 + $0x110] sm:$0xff]
  %v3885 = vld [vmem:[%s8 + $0x118] sm:$0xff]
  %v3886 = vld [vmem:[%s9] sm:$0x1]
  %v3888 = vlaneseq
  %v3889 = vshrl.u32 %v3888, 7
  %v3890 = vsub.s32 0, %v3889
  %v3891 = vrot.slane %v3886, %v3890
  %3893 = vmatprep.subr.mxu0 0.0
  %3894 = vmatpush1.msra.mxu0 %v3865
  %3895 = vmatprep.subr.mxu0 0.0
  %3896 = vmatpush1.msra.mxu0 %v3864
  %3897 = vmatprep.subr.mxu0 0.0
  %3898 = vmatpush1.msra.mxu0 %v3863
  %3899 = vmatprep.subr.mxu0 0.0
  %3900 = vmatpush1.msra.mxu0 %v3862
  %3901 = vmatprep.subr.mxu0 0.0
  %3902 = vmatpush1.msra.mxu0 %v3861
  %3903 = vmatprep.subr.mxu0 0.0
  %3904 = vmatpush1.msra.mxu0 %v3860
  %3905 = vmatprep.subr.mxu0 0.0
  %3906 = vmatpush1.msra.mxu0 %v3859
  %3907 = vmatprep.subr.mxu0 0.0
  %3908 = vmatpush1.msra.mxu0 %v3858
  %3909 = vmatprep.subr.mxu0 0.0
  %3910 = vmatpush1.msra.mxu0 %v3857
  %3911 = vmatprep.subr.mxu0 0.0
  %3912 = vmatpush1.msra.mxu0 %v3856
  %3913 = vmatprep.subr.mxu0 0.0
  %3914 = vmatpush1.msra.mxu0 %v3855
  %3915 = vmatprep.subr.mxu0 0.0
  %3916 = vmatpush1.msra.mxu0 %v3854
  %3917 = vmatprep.subr.mxu0 0.0
  %3918 = vmatpush1.msra.mxu0 %v3853
  %3919 = vmatprep.subr.mxu0 0.0
  %3920 = vmatpush1.msra.mxu0 %v3852
  %3921 = vmatprep.subr.mxu0 0.0
  %3922 = vmatpush1.msra.mxu0 %v3851
  %3923 = vmatprep.subr.mxu0 0.0
  %3924 = vmatpush1.msra.mxu0 %v3850
  %3925 = vmatprep.subr.mxu0 0.0
  %3926 = vmatpush2.msra.mxu0 %v3881
  %3927 = vmatprep.subr.mxu0 0.0
  %3928 = vmatpush2.msra.mxu0 %v3880
  %3929 = vmatprep.subr.mxu0 0.0
  %3930 = vmatpush2.msra.mxu0 %v3879
  %3931 = vmatprep.subr.mxu0 0.0
  %3932 = vmatpush2.msra.mxu0 %v3878
  %3933 = vmatprep.subr.mxu0 0.0
  %3934 = vmatpush2.msra.mxu0 %v3877
  %3935 = vmatprep.subr.mxu0 0.0
  %3936 = vmatpush2.msra.mxu0 %v3876
  %3937 = vmatprep.subr.mxu0 0.0
  %3938 = vmatpush2.msra.mxu0 %v3875
  %3939 = vmatprep.subr.mxu0 0.0
  %3940 = vmatpush2.msra.mxu0 %v3874
  %3941 = vmatprep.subr.mxu0 0.0
  %3942 = vmatpush2.msra.mxu0 %v3873
  %3943 = vmatprep.subr.mxu0 0.0
  %3944 = vmatpush2.msra.mxu0 %v3872
  %3945 = vmatprep.subr.mxu0 0.0
  %3946 = vmatpush2.msra.mxu0 %v3871
  %3947 = vmatprep.subr.mxu0 0.0
  %3948 = vmatpush2.msra.mxu0 %v3870
  %3949 = vmatprep.subr.mxu0 0.0
  %3950 = vmatpush2.msra.mxu0 %v3869
  %3951 = vmatprep.subr.mxu0 0.0
  %3952 = vmatpush2.msra.mxu0 %v3868
  %3953 = vmatprep.subr.mxu0 0.0
  %3954 = vmatpush2.msra.mxu0 %v3867
  %3955 = vmatprep.subr.mxu0 0.0
  %3956 = vmatpush2.msra.mxu0 %v3866
  %3957 = vmatprep.mubr.f32.mxu0 %v3849
  %3958 = vmatmul.mubr.f32.gmra.mxu0 %v3846
  %v3959 = vpop.f32.mrf.mxu0
  %v3960 = vadd.f32 %v3891, %v3959
  %v3961 = vpop.f32.mrf.mxu0
  %3962 = vdwg.mxu0
  %3963 = vmatprep.subr.mxu0 0.0
  %3964 = vmatpush1.msra.mxu0 0.0
  %3965 = vmatprep.subr.mxu0 0.0
  %3966 = vmatpush1.msra.mxu0 0.0
  %3967 = vmatprep.subr.mxu0 0.0
  %3968 = vmatpush1.msra.mxu0 0.0
  %3969 = vmatprep.subr.mxu0 0.0
  %3970 = vmatpush1.msra.mxu0 0.0
  %3971 = vmatprep.subr.mxu0 0.0
  %3972 = vmatpush1.msra.mxu0 0.0
  %3973 = vmatprep.subr.mxu0 0.0
  %3974 = vmatpush1.msra.mxu0 0.0
  %3975 = vmatprep.subr.mxu0 0.0
  %3976 = vmatpush1.msra.mxu0 0.0
  %3977 = vmatprep.subr.mxu0 0.0
  %3978 = vmatpush1.msra.mxu0 0.0
  %3979 = vmatprep.subr.mxu0 0.0
  %3980 = vmatpush1.msra.mxu0 0.0
  %3981 = vmatprep.subr.mxu0 0.0
  %3982 = vmatpush1.msra.mxu0 0.0
  %3983 = vmatprep.subr.mxu0 0.0
  %3984 = vmatpush1.msra.mxu0 0.0
  %3985 = vmatprep.subr.mxu0 0.0
  %3986 = vmatpush1.msra.mxu0 0.0
  %3987 = vmatprep.subr.mxu0 0.0
  %3988 = vmatpush1.msra.mxu0 %v3885
  %3989 = vmatprep.subr.mxu0 0.0
  %3990 = vmatpush1.msra.mxu0 %v3884
  %3991 = vmatprep.subr.mxu0 0.0
  %3992 = vmatpush1.msra.mxu0 %v3883
  %3993 = vmatprep.subr.mxu0 0.0
  %3994 = vmatpush1.msra.mxu0 %v3882
  %3995 = vmatprep.subr.mxu0 0.0
  %3996 = vmatpush2.msra.mxu0 0.0
  %3997 = vmatprep.subr.mxu0 0.0
  %3998 = vmatpush2.msra.mxu0 0.0
  %3999 = vmatprep.subr.mxu0 0.0
  %4000 = vmatpush2.msra.mxu0 0.0
  %4001 = vmatprep.subr.mxu0 0.0
  %4002 = vmatpush2.msra.mxu0 0.0
  %4003 = vmatprep.subr.mxu0 0.0
  %4004 = vmatpush2.msra.mxu0 0.0
  %4005 = vmatprep.subr.mxu0 0.0
  %4006 = vmatpush2.msra.mxu0 0.0
  %4007 = vmatprep.subr.mxu0 0.0
  %4008 = vmatpush2.msra.mxu0 0.0
  %4009 = vmatprep.subr.mxu0 0.0
  %4010 = vmatpush2.msra.mxu0 0.0
  %4011 = vmatprep.subr.mxu0 0.0
  %4012 = vmatpush2.msra.mxu0 0.0
  %4013 = vmatprep.subr.mxu0 0.0
  %4014 = vmatpush2.msra.mxu0 0.0
  %4015 = vmatprep.subr.mxu0 0.0
  %4016 = vmatpush2.msra.mxu0 0.0
  %4017 = vmatprep.subr.mxu0 0.0
  %4018 = vmatpush2.msra.mxu0 0.0
  %4019 = vmatprep.subr.mxu0 0.0
  %4020 = vmatpush2.msra.mxu0 0.0
  %4021 = vmatprep.subr.mxu0 0.0
  %4022 = vmatpush2.msra.mxu0 0.0
  %4023 = vmatprep.subr.mxu0 0.0
  %4024 = vmatpush2.msra.mxu0 0.0
  %4025 = vmatprep.subr.mxu0 0.0
  %4026 = vmatpush2.msra.mxu0 0.0
  %4027 = vmatprep.mubr.f32.mxu0 0.0
  %4028 = vmatmul.mubr.f32.gmra.mxu0 %v3203
  %v4029 = vpop.f32.mrf.mxu0
  %v4030 = vadd.f32 %v3960, %v4029
  %v4031 = vpop.f32.mrf.mxu0
  %4032 = vdwg.mxu0
  %vm4033 = vcmask 31744
  %4034 = vst.msk [vmem:[%s10] sm:$0xff] %vm4033, %v4030
  // Predicated region
  $region42: #{mmmu_ba_forward.1} parent=0 // pred_check
    _
  $region43: #{mmmu_ba_forward.1} parent=0 // pred_check_branch
    %4036 = sbr.rel (0) target = $region45
  $region44: #{mmmu_ba_forward.1} parent=0 // pred_region
    _
  $region45: #{mmmu_ba_forward.1} parent=0 // pred_fallthru
    _
  // Predicated region
  $region46: #{mmmu_ba_forward.1} parent=0 // pred_check
    _
  $region47: #{mmmu_ba_forward.1} parent=0 // pred_check_branch
    %4038 = sbr.rel (0) target = $region49
  $region48: #{mmmu_ba_forward.1} parent=0 // pred_region
    _
  $region49: #{mmmu_ba_forward.1} parent=0 // pred_fallthru
    _

</llo_original>
